<compile_context>
chip_gen: v6e
topology: v6e:2x2x1
jax: 0.10.0
libtpu: 0.0.40
codegen_flags: <defaults>
</compile_context>

<pallas_src>
import functools

import jax
import jax.numpy as jnp
from jax import lax
from jax.experimental import pallas as pl
from jax.experimental.pallas import tpu as pltpu


def _round_up(x, m):
    return ((x + m - 1) // m) * m


def _pick_tm(m):
    # Prefer >=2 row tiles so both v7x TensorCores get work, while keeping
    # tiles large enough to amortize the ~0.35us per-grid-step overhead.
    for tm in (512, 256, 128):
        if m >= 2 * tm:
            return tm
    return _round_up(min(m, 128), 8)


# ----------------------------------------------------------------------------
# Kernel 1: offset/mask 3x3 conv (shifted-window tap loop, no im2col)
# ----------------------------------------------------------------------------
def _offset_conv_kernel(x_ref, w_ref, bias_ref, o_ref, acc_ref, *, hw2, w2):
    # x_ref   : (R2, C)        f32  flattened zero-padded raster of one image
    # w_ref   : (9, C, Npad)   bf16 tap-major weights (out cols pre-permuted)
    # bias_ref: (1, Npad)      f32
    # o_ref   : (HW2, Npad)    f32  rows are the padded raster (W+2 wide)
    # acc_ref : (HW2, Npad)    f32  VMEM scratch accumulator
    for t in range(9):                                   # static unroll, 3x3 taps
        base = (t // 3) * w2 + (t % 3)                   # shifted-window origin
        a = x_ref[pl.ds(base, hw2), :].astype(jnp.bfloat16)
        d = jnp.dot(a, w_ref[t], preferred_element_type=jnp.float32)
        if t == 0:
            acc_ref[...] = d
        else:
            acc_ref[...] += d
    acc = acc_ref[...] + bias_ref[...]
    # fused epilogue: sigmoid only on the 9 mask columns (cols 18..26); EUP op
    col = lax.broadcasted_iota(jnp.int32, acc.shape, 1)
    out = jnp.where((col >= 18) & (col < 27), jax.nn.sigmoid(acc), acc)
    o_ref[...] = out.astype(o_ref.dtype)


def _offset_weight_mats(w_off, b_off):
    """Permute output channels so (dy[9], dx[9], mask[9]) are contiguous.
    DCNv2 reads its offset-conv output interleaved: ch 2k -> dy_k, 2k+1 -> dx_k
    (o1=ch0..8, o2=ch9..17 concatenated is the identity), mask = ch18..26."""
    perm = jnp.concatenate([jnp.arange(0, 18, 2), jnp.arange(1, 18, 2),
                            jnp.arange(18, 27)])
    w_p = w_off[perm]                                    # (27, C, 3, 3)
    b_p = b_off[perm]                                    # (27,)
    c = w_off.shape[1]
    w_mat = jnp.transpose(w_p, (2, 3, 1, 0)).reshape(9, c, 27)   # tap-major
    return w_mat, b_p


def _offset_conv(x_nhwc, w_off, b_off):
    """3x3 / stride 1 / pad 1 conv producing dy(9), dx(9), sigmoid(mask)(9)."""
    n, h, w, c = x_nhwc.shape
    w2 = w + 2
    hw2 = h * w2                            # padded-raster rows per image
    r_raw = (h + 2) * w2
    r2 = _round_up(r_raw + 2, 8)            # room for the last shifted window
    n_out = 27
    n_pad = _round_up(n_out, 128)           # lane-dense output

    # one flattened zero-padded copy of x per image (no 9x patch blow-up)
    xpad = jnp.pad(x_nhwc, ((0, 0), (1, 1), (1, 1), (0, 0)))
    xflat = jnp.pad(xpad.reshape(n, r_raw, c), ((0, 0), (0, r2 - r_raw), (0, 0)))
    xflat = xflat.astype(jnp.float32)

    w_mat, b_p = _offset_weight_mats(w_off, b_off)
    w_mat = jnp.pad(w_mat, ((0, 0), (0, 0), (0, n_pad - n_out))).astype(jnp.bfloat16)
    b_vec = jnp.pad(b_p, (0, n_pad - n_out)).reshape(1, n_pad).astype(jnp.float32)

    kernel = functools.partial(_offset_conv_kernel, hw2=hw2, w2=w2)
    cost = pl.CostEstimate(
        flops=2 * n * hw2 * 9 * c * n_pad,
        transcendentals=n * hw2 * n_pad,
        bytes_accessed=n * (r2 * c * 4 + hw2 * n_pad * 4) + 9 * c * n_pad * 2)

    out = pl.pallas_call(
        kernel,
        out_shape=jax.ShapeDtypeStruct((n, hw2, n_pad), jnp.float32),
        grid_spec=pltpu.PrefetchScalarGridSpec(
            num_scalar_prefetch=0,
            grid=(n,),
            in_specs=[pl.BlockSpec((None, r2, c), lambda i: (i, 0, 0)),
                      pl.BlockSpec((9, c, n_pad), lambda i: (0, 0, 0)),
                      pl.BlockSpec((1, n_pad), lambda i: (0, 0))],
            out_specs=pl.BlockSpec((None, hw2, n_pad), lambda i: (i, 0, 0)),
            scratch_shapes=[pltpu.VMEM((hw2, n_pad), jnp.float32)]),
        compiler_params=pltpu.CompilerParams(
            dimension_semantics=("parallel",),
            vmem_limit_bytes=32 * 1024 * 1024),
        cost_estimate=cost,
    )(xflat, w_mat, b_vec)

    om = out.reshape(n, h, w2, n_pad)[:, :, :w, :]       # drop junk raster cols
    return om[..., 0:9], om[..., 9:18], om[..., 18:27]   # dy, dx, sigmoid(mask)


def _offset_conv_reference(x_nhwc, w_off, b_off):
    """Pure-JAX reference with the same bf16 operands (for the self-check)."""
    n, h, w, c = x_nhwc.shape
    w_mat, b_p = _offset_weight_mats(w_off, b_off)
    w_mat = w_mat.astype(jnp.bfloat16)
    xpad = jnp.pad(x_nhwc, ((0, 0), (1, 1), (1, 1), (0, 0)))
    acc = jnp.zeros((n, h, w, 27), jnp.float32)
    for t in range(9):
        ki, kj = t // 3, t % 3
        win = xpad[:, ki:ki + h, kj:kj + w, :].astype(jnp.bfloat16)
        acc = acc + jnp.einsum("nhwc,cd->nhwd", win, w_mat[t],
                               preferred_element_type=jnp.float32)
    acc = acc + b_p
    return acc[..., 0:9], acc[..., 9:18], jax.nn.sigmoid(acc[..., 18:27])


# ----------------------------------------------------------------------------
# Kernel 2: tiled matmul + fused inference-BatchNorm + ReLU epilogue
# ----------------------------------------------------------------------------
def _matmul_bn_relu_kernel(a_ref, b_ref, scale_ref, shift_ref, o_ref, acc_ref):
    @pl.when(pl.program_id(2) == 0)
    def _():
        acc_ref[...] = jnp.zeros_like(acc_ref)

    acc_ref[...] += jnp.dot(a_ref[...], b_ref[...],
                            preferred_element_type=jnp.float32)

    @pl.when(pl.program_id(2) == pl.num_programs(2) - 1)
    def _():
        y = acc_ref[...] * scale_ref[...] + shift_ref[...]   # bias folded in shift
        o_ref[...] = jnp.maximum(y, 0.0).astype(o_ref.dtype)  # ReLU


def _matmul_bn_relu(a, b, scale, shift, *, tm, tn, tk):
    m, k = a.shape
    _, nn = b.shape
    grid = (m // tm, nn // tn, k // tk)
    cost = pl.CostEstimate(flops=2 * m * k * nn, transcendentals=0,
                           bytes_accessed=m * k * 2 + k * nn * 2 + m * nn * 4)
    return pl.pallas_call(
        _matmul_bn_relu_kernel,
        out_shape=jax.ShapeDtypeStruct((m, nn), jnp.float32),
        grid_spec=pltpu.PrefetchScalarGridSpec(
            num_scalar_prefetch=0,
            grid=grid,
            in_specs=[pl.BlockSpec((tm, tk), lambda i, j, kk: (i, kk)),
                      pl.BlockSpec((tk, tn), lambda i, j, kk: (kk, j)),
                      pl.BlockSpec((1, tn), lambda i, j, kk: (0, j)),
                      pl.BlockSpec((1, tn), lambda i, j, kk: (0, j))],
            out_specs=pl.BlockSpec((tm, tn), lambda i, j, kk: (i, j)),
            scratch_shapes=[pltpu.VMEM((tm, tn), jnp.float32)]),
        compiler_params=pltpu.CompilerParams(
            dimension_semantics=("parallel", "parallel", "arbitrary"),
            vmem_limit_bytes=32 * 1024 * 1024),
        cost_estimate=cost,
    )(a, b, scale, shift)


# ----------------------------------------------------------------------------
# Plain-JAX glue: deformable bilinear sampling (data-dependent gather)
# ----------------------------------------------------------------------------
def _deform_columns(x_nhwc, off_y, off_x, mask):
    """Bilinear-sample the 9 deformed taps with the modulation mask folded into
    the corner weights.  Returns (N,H,W,9,C) f32.  Matches DCNv2
    dmcn_im2col_bilinear (zero outside the image)."""
    n, h, w, c = x_nhwc.shape
    hs = jnp.arange(h, dtype=jnp.float32)[None, :, None, None]
    ws = jnp.arange(w, dtype=jnp.float32)[None, None, :, None]
    ki = (jnp.arange(9) // 3).astype(jnp.float32)[None, None, None, :]
    kj = (jnp.arange(9) % 3).astype(jnp.float32)[None, None, None, :]
    py = hs - 1.0 + ki + off_y
    px = ws - 1.0 + kj + off_x

    x_flat = x_nhwc.reshape(n, h * w, c)
    y0 = jnp.floor(py)
    x0 = jnp.floor(px)
    y1 = y0 + 1.0
    x1 = x0 + 1.0
    wy1, wy0 = py - y0, 1.0 - (py - y0)
    wx1, wx0 = px - x0, 1.0 - (px - x0)

    def gather(yi, xi, wgt):
        valid = (yi >= 0) & (yi <= h - 1) & (xi >= 0) & (xi <= w - 1)
        yc = jnp.clip(yi, 0, h - 1).astype(jnp.int32)
        xc = jnp.clip(xi, 0, w - 1).astype(jnp.int32)
        idx = (yc * w + xc).reshape(n, -1)                       # (N, H*W*9)
        # TODO(synk): the offset-driven gather is data-dependent per output
        # pixel; it has no rectangular-BlockSpec / safe in-kernel equivalent,
        # so it stays in plain JAX (XLA fuses the 4 gathers + weighted sum
        # into the bf16 column producer).
        vals = jax.vmap(lambda xf, ii: jnp.take(xf, ii, axis=0))(x_flat, idx)
        vals = vals.reshape(n, h, w, 9, c)
        return vals * (wgt * valid.astype(jnp.float32))[..., None]

    return (gather(y0, x0, wy0 * wx0 * mask) + gather(y0, x1, wy0 * wx1 * mask) +
            gather(y1, x0, wy1 * wx0 * mask) + gather(y1, x1, wy1 * wx1 * mask))


# ----------------------------------------------------------------------------
# Parameters (deterministic, in-script)
# ----------------------------------------------------------------------------
def init_params(key, chi, cho):
    k = jax.random.split(key, 6)
    stdv = 1.0 / float(chi * 3 * 3) ** 0.5
    w_main = jax.random.uniform(k[0], (cho, chi, 3, 3), jnp.float32, -stdv, stdv)
    b_main = jax.random.uniform(k[1], (cho,), jnp.float32, -stdv, stdv)
    # original DCN zero-inits these; use small values so deformation is nontrivial
    w_off = 0.1 * jax.random.normal(k[2], (3 * 3 * 3, chi, 3, 3), jnp.float32)
    b_off = 0.1 * jax.random.normal(k[3], (3 * 3 * 3,), jnp.float32)
    gamma = 1.0 + 0.1 * jax.random.normal(k[4], (cho,), jnp.float32)
    beta = 0.1 * jax.random.normal(k[5], (cho,), jnp.float32)
    return dict(w_main=w_main, b_main=b_main, w_off=w_off, b_off=b_off,
                gamma=gamma, beta=beta,
                running_mean=jnp.zeros((cho,), jnp.float32),
                running_var=jnp.ones((cho,), jnp.float32))


# ----------------------------------------------------------------------------
# DeformConv forward (NCHW in / NCHW out, matching the PyTorch module)
# ----------------------------------------------------------------------------
def deform_conv_forward(x_nchw, params, eps=1e-5, use_pallas=True):
    x = jnp.transpose(x_nchw, (0, 2, 3, 1)).astype(jnp.float32)   # NHWC once
    n, h, w, c = x.shape
    cho = params["w_main"].shape[0]

    # (1) offset/mask conv (Pallas shifted-window kernel, fused sigmoid)
    if use_pallas:
        off_y, off_x, mask = _offset_conv(x, params["w_off"], params["b_off"])
    else:
        off_y, off_x, mask = _offset_conv_reference(x, params["w_off"], params["b_off"])

    # (2) deformable bilinear sampling + modulation (JAX glue), bf16 columns
    cols = _deform_columns(x, off_y, off_x, mask)                 # (N,H,W,9,C) f32
    m_rows = n * h * w
    k_dim = 9 * c
    k_pad = _round_up(k_dim, 128)
    n_pad = _round_up(cho, 128)
    tm = _pick_tm(m_rows)
    m_pad = _round_up(m_rows, tm)
    cols = cols.reshape(m_rows, k_dim).astype(jnp.bfloat16)
    cols = jnp.pad(cols, ((0, m_pad - m_rows), (0, k_pad - k_dim)))

    # (3) main conv as tiled matmul + fused BN(inference, bias folded) + ReLU
    w_mat = jnp.transpose(params["w_main"], (2, 3, 1, 0)).reshape(k_dim, cho)
    w_mat = jnp.pad(w_mat, ((0, k_pad - k_dim), (0, n_pad - cho))).astype(jnp.bfloat16)
    inv_std = 1.0 / jnp.sqrt(params["running_var"] + eps)
    scale = params["gamma"] * inv_std
    shift = (params["b_main"] - params["running_mean"]) * scale + params["beta"]
    scale_p = jnp.pad(scale, (0, n_pad - cho)).reshape(1, n_pad).astype(jnp.float32)
    shift_p = jnp.pad(shift, (0, n_pad - cho)).reshape(1, n_pad).astype(jnp.float32)

    tk = 512 if k_pad % 512 == 0 else (256 if k_pad % 256 == 0 else 128)
    tn = 256 if n_pad % 256 == 0 else 128
    if use_pallas:
        y = _matmul_bn_relu(cols, w_mat, scale_p, shift_p, tm=tm, tn=tn, tk=tk)
    else:
        acc = jnp.dot(cols.astype(jnp.float32), w_mat.astype(jnp.float32))
        y = jnp.maximum(acc * scale_p + shift_p, 0.0)

    y = y[:m_rows, :cho].reshape(n, h, w, cho)
    return jnp.transpose(y, (0, 3, 1, 2))                         # back to NCHW


if __name__ == "__main__":
    chi, cho = 4, 8
    key = jax.random.PRNGKey(0)
    kx, kp = jax.random.split(key)
    x = jax.random.normal(kx, (2, chi, 16, 16), jnp.float32)      # NCHW like PyTorch
    params = init_params(kp, chi, cho)

    y = jax.block_until_ready(jax.jit(deform_conv_forward)(x, params))

    assert y.shape == (2, cho, 16, 16)
    assert bool(jnp.all(jnp.isfinite(y)))
    assert bool(jnp.all(y >= 0.0))                                # ReLU epilogue

    # pure-JAX reference using the same bf16 operands: checks both Pallas kernels
    y_ref = jax.block_until_ready(deform_conv_forward(x, params, use_pallas=False))
    assert float(jnp.max(jnp.abs(y - y_ref))) < 1e-1

    print("KERNEL_OK")
</pallas_src>

<mosaic_0001>
module attributes {stable_mosaic.version = 11 : i64} {
  func.func @_offset_conv_kernel(%arg0: i32, %arg1: memref<1x328x4xf32, #tpu.memory_space<vmem>>, %arg2: memref<9x4x128xbf16, #tpu.memory_space<vmem>>, %arg3: memref<1x128xf32, #tpu.memory_space<vmem>>, %arg4: memref<1x288x128xf32, #tpu.memory_space<vmem>>, %arg5: memref<288x128xf32, #tpu.memory_space<vmem>>) attributes {dimension_semantics = [#tpu.dimension_semantics<parallel>], iteration_bounds = array<i64: 2>, scalar_prefetch = 0 : i64, scratch_operands = 1 : i64, tpu.core_type = #tpu.core_type<tc>, window_params = [{transform_indices = @transform_0, window_bounds = array<i64: 1, 328, 4>}, {pipeline_mode = #tpu.pipeline_mode<synchronous>, transform_indices = @transform_1, window_bounds = array<i64: 9, 4, 128>}, {pipeline_mode = #tpu.pipeline_mode<synchronous>, transform_indices = @transform_2, window_bounds = array<i64: 1, 128>}, {transform_indices = @transform_3, window_bounds = array<i64: 1, 288, 128>}]} {
    %c0 = arith.constant 0 : index
    %c0_0 = arith.constant 0 : index
    %c0_1 = arith.constant 0 : index
    %0 = vector.load %arg1[%c0, %c0_0, %c0_1] : memref<1x328x4xf32, #tpu.memory_space<vmem>>, vector<1x288x4xf32>
    %1 = vector.shape_cast %0 : vector<1x288x4xf32> to vector<288x4xf32>
    %2 = arith.truncf %1 : vector<288x4xf32> to vector<288x4xbf16>
    %c0_2 = arith.constant 0 : index
    %c0_3 = arith.constant 0 : index
    %c0_4 = arith.constant 0 : index
    %3 = vector.load %arg2[%c0_2, %c0_3, %c0_4] : memref<9x4x128xbf16, #tpu.memory_space<vmem>>, vector<1x4x128xbf16>
    %4 = vector.shape_cast %3 : vector<1x4x128xbf16> to vector<4x128xbf16>
    %cst = arith.constant dense<0.000000e+00> : vector<288x128xf32>
    %5 = tpu.matmul %2, %4, %cst {dimension_numbers = #tpu.dot_dimension_numbers<[1], [0], [0], [1], [0, 0, 1, 1], [], []>} : vector<288x4xbf16>, vector<4x128xbf16>, vector<288x128xf32> -> vector<288x128xf32>
    %c0_5 = arith.constant 0 : index
    %c0_6 = arith.constant 0 : index
    %6 = vector.load %arg5[%c0_5, %c0_6] : memref<288x128xf32, #tpu.memory_space<vmem>>, vector<288x128xf32>
    tpu.vector_store %arg5[%c0_5, %c0_6], %5 {strides = array<i32>} : memref<288x128xf32, #tpu.memory_space<vmem>>, vector<288x128xf32>,
    %c0_7 = arith.constant 0 : index
    %c1 = arith.constant 1 : index
    %c0_8 = arith.constant 0 : index
    %7 = vector.load %arg1[%c0_7, %c1, %c0_8] : memref<1x328x4xf32, #tpu.memory_space<vmem>>, vector<1x288x4xf32>
    %8 = vector.shape_cast %7 : vector<1x288x4xf32> to vector<288x4xf32>
    %9 = arith.truncf %8 : vector<288x4xf32> to vector<288x4xbf16>
    %c1_9 = arith.constant 1 : index
    %c0_10 = arith.constant 0 : index
    %c0_11 = arith.constant 0 : index
    %10 = vector.load %arg2[%c1_9, %c0_10, %c0_11] : memref<9x4x128xbf16, #tpu.memory_space<vmem>>, vector<1x4x128xbf16>
    %11 = vector.shape_cast %10 : vector<1x4x128xbf16> to vector<4x128xbf16>
    %cst_12 = arith.constant dense<0.000000e+00> : vector<288x128xf32>
    %12 = tpu.matmul %9, %11, %cst_12 {dimension_numbers = #tpu.dot_dimension_numbers<[1], [0], [0], [1], [0, 0, 1, 1], [], []>} : vector<288x4xbf16>, vector<4x128xbf16>, vector<288x128xf32> -> vector<288x128xf32>
    %c0_13 = arith.constant 0 : index
    %c0_14 = arith.constant 0 : index
    %13 = vector.load %arg5[%c0_13, %c0_14] : memref<288x128xf32, #tpu.memory_space<vmem>>, vector<288x128xf32>
    %14 = arith.addf %13, %12 : vector<288x128xf32>
    %c0_15 = arith.constant 0 : index
    %c0_16 = arith.constant 0 : index
    %15 = vector.load %arg5[%c0_15, %c0_16] : memref<288x128xf32, #tpu.memory_space<vmem>>, vector<288x128xf32>
    tpu.vector_store %arg5[%c0_15, %c0_16], %14 {strides = array<i32>} : memref<288x128xf32, #tpu.memory_space<vmem>>, vector<288x128xf32>,
    %c0_17 = arith.constant 0 : index
    %c2 = arith.constant 2 : index
    %c0_18 = arith.constant 0 : index
    %16 = vector.load %arg1[%c0_17, %c2, %c0_18] : memref<1x328x4xf32, #tpu.memory_space<vmem>>, vector<1x288x4xf32>
    %17 = vector.shape_cast %16 : vector<1x288x4xf32> to vector<288x4xf32>
    %18 = arith.truncf %17 : vector<288x4xf32> to vector<288x4xbf16>
    %c2_19 = arith.constant 2 : index
    %c0_20 = arith.constant 0 : index
    %c0_21 = arith.constant 0 : index
    %19 = vector.load %arg2[%c2_19, %c0_20, %c0_21] : memref<9x4x128xbf16, #tpu.memory_space<vmem>>, vector<1x4x128xbf16>
    %20 = vector.shape_cast %19 : vector<1x4x128xbf16> to vector<4x128xbf16>
    %cst_22 = arith.constant dense<0.000000e+00> : vector<288x128xf32>
    %21 = tpu.matmul %18, %20, %cst_22 {dimension_numbers = #tpu.dot_dimension_numbers<[1], [0], [0], [1], [0, 0, 1, 1], [], []>} : vector<288x4xbf16>, vector<4x128xbf16>, vector<288x128xf32> -> vector<288x128xf32>
    %c0_23 = arith.constant 0 : index
    %c0_24 = arith.constant 0 : index
    %22 = vector.load %arg5[%c0_23, %c0_24] : memref<288x128xf32, #tpu.memory_space<vmem>>, vector<288x128xf32>
    %23 = arith.addf %22, %21 : vector<288x128xf32>
    %c0_25 = arith.constant 0 : index
    %c0_26 = arith.constant 0 : index
    %24 = vector.load %arg5[%c0_25, %c0_26] : memref<288x128xf32, #tpu.memory_space<vmem>>, vector<288x128xf32>
    tpu.vector_store %arg5[%c0_25, %c0_26], %23 {strides = array<i32>} : memref<288x128xf32, #tpu.memory_space<vmem>>, vector<288x128xf32>,
    %c0_27 = arith.constant 0 : index
    %c18 = arith.constant 18 : index
    %c0_28 = arith.constant 0 : index
    %25 = vector.load %arg1[%c0_27, %c18, %c0_28] : memref<1x328x4xf32, #tpu.memory_space<vmem>>, vector<1x288x4xf32>
    %26 = vector.shape_cast %25 : vector<1x288x4xf32> to vector<288x4xf32>
    %27 = arith.truncf %26 : vector<288x4xf32> to vector<288x4xbf16>
    %c3 = arith.constant 3 : index
    %c0_29 = arith.constant 0 : index
    %c0_30 = arith.constant 0 : index
    %28 = vector.load %arg2[%c3, %c0_29, %c0_30] : memref<9x4x128xbf16, #tpu.memory_space<vmem>>, vector<1x4x128xbf16>
    %29 = vector.shape_cast %28 : vector<1x4x128xbf16> to vector<4x128xbf16>
    %cst_31 = arith.constant dense<0.000000e+00> : vector<288x128xf32>
    %30 = tpu.matmul %27, %29, %cst_31 {dimension_numbers = #tpu.dot_dimension_numbers<[1], [0], [0], [1], [0, 0, 1, 1], [], []>} : vector<288x4xbf16>, vector<4x128xbf16>, vector<288x128xf32> -> vector<288x128xf32>
    %c0_32 = arith.constant 0 : index
    %c0_33 = arith.constant 0 : index
    %31 = vector.load %arg5[%c0_32, %c0_33] : memref<288x128xf32, #tpu.memory_space<vmem>>, vector<288x128xf32>
    %32 = arith.addf %31, %30 : vector<288x128xf32>
    %c0_34 = arith.constant 0 : index
    %c0_35 = arith.constant 0 : index
    %33 = vector.load %arg5[%c0_34, %c0_35] : memref<288x128xf32, #tpu.memory_space<vmem>>, vector<288x128xf32>
    tpu.vector_store %arg5[%c0_34, %c0_35], %32 {strides = array<i32>} : memref<288x128xf32, #tpu.memory_space<vmem>>, vector<288x128xf32>,
    %c0_36 = arith.constant 0 : index
    %c19 = arith.constant 19 : index
    %c0_37 = arith.constant 0 : index
    %34 = vector.load %arg1[%c0_36, %c19, %c0_37] : memref<1x328x4xf32, #tpu.memory_space<vmem>>, vector<1x288x4xf32>
    %35 = vector.shape_cast %34 : vector<1x288x4xf32> to vector<288x4xf32>
    %36 = arith.truncf %35 : vector<288x4xf32> to vector<288x4xbf16>
    %c4 = arith.constant 4 : index
    %c0_38 = arith.constant 0 : index
    %c0_39 = arith.constant 0 : index
    %37 = vector.load %arg2[%c4, %c0_38, %c0_39] : memref<9x4x128xbf16, #tpu.memory_space<vmem>>, vector<1x4x128xbf16>
    %38 = vector.shape_cast %37 : vector<1x4x128xbf16> to vector<4x128xbf16>
    %cst_40 = arith.constant dense<0.000000e+00> : vector<288x128xf32>
    %39 = tpu.matmul %36, %38, %cst_40 {dimension_numbers = #tpu.dot_dimension_numbers<[1], [0], [0], [1], [0, 0, 1, 1], [], []>} : vector<288x4xbf16>, vector<4x128xbf16>, vector<288x128xf32> -> vector<288x128xf32>
    %c0_41 = arith.constant 0 : index
    %c0_42 = arith.constant 0 : index
    %40 = vector.load %arg5[%c0_41, %c0_42] : memref<288x128xf32, #tpu.memory_space<vmem>>, vector<288x128xf32>
    %41 = arith.addf %40, %39 : vector<288x128xf32>
    %c0_43 = arith.constant 0 : index
    %c0_44 = arith.constant 0 : index
    %42 = vector.load %arg5[%c0_43, %c0_44] : memref<288x128xf32, #tpu.memory_space<vmem>>, vector<288x128xf32>
    tpu.vector_store %arg5[%c0_43, %c0_44], %41 {strides = array<i32>} : memref<288x128xf32, #tpu.memory_space<vmem>>, vector<288x128xf32>,
    %c0_45 = arith.constant 0 : index
    %c20 = arith.constant 20 : index
    %c0_46 = arith.constant 0 : index
    %43 = vector.load %arg1[%c0_45, %c20, %c0_46] : memref<1x328x4xf32, #tpu.memory_space<vmem>>, vector<1x288x4xf32>
    %44 = vector.shape_cast %43 : vector<1x288x4xf32> to vector<288x4xf32>
    %45 = arith.truncf %44 : vector<288x4xf32> to vector<288x4xbf16>
    %c5 = arith.constant 5 : index
    %c0_47 = arith.constant 0 : index
    %c0_48 = arith.constant 0 : index
    %46 = vector.load %arg2[%c5, %c0_47, %c0_48] : memref<9x4x128xbf16, #tpu.memory_space<vmem>>, vector<1x4x128xbf16>
    %47 = vector.shape_cast %46 : vector<1x4x128xbf16> to vector<4x128xbf16>
    %cst_49 = arith.constant dense<0.000000e+00> : vector<288x128xf32>
    %48 = tpu.matmul %45, %47, %cst_49 {dimension_numbers = #tpu.dot_dimension_numbers<[1], [0], [0], [1], [0, 0, 1, 1], [], []>} : vector<288x4xbf16>, vector<4x128xbf16>, vector<288x128xf32> -> vector<288x128xf32>
    %c0_50 = arith.constant 0 : index
    %c0_51 = arith.constant 0 : index
    %49 = vector.load %arg5[%c0_50, %c0_51] : memref<288x128xf32, #tpu.memory_space<vmem>>, vector<288x128xf32>
    %50 = arith.addf %49, %48 : vector<288x128xf32>
    %c0_52 = arith.constant 0 : index
    %c0_53 = arith.constant 0 : index
    %51 = vector.load %arg5[%c0_52, %c0_53] : memref<288x128xf32, #tpu.memory_space<vmem>>, vector<288x128xf32>
    tpu.vector_store %arg5[%c0_52, %c0_53], %50 {strides = array<i32>} : memref<288x128xf32, #tpu.memory_space<vmem>>, vector<288x128xf32>,
    %c0_54 = arith.constant 0 : index
    %c36 = arith.constant 36 : index
    %c0_55 = arith.constant 0 : index
    %52 = vector.load %arg1[%c0_54, %c36, %c0_55] : memref<1x328x4xf32, #tpu.memory_space<vmem>>, vector<1x288x4xf32>
    %53 = vector.shape_cast %52 : vector<1x288x4xf32> to vector<288x4xf32>
    %54 = arith.truncf %53 : vector<288x4xf32> to vector<288x4xbf16>
    %c6 = arith.constant 6 : index
    %c0_56 = arith.constant 0 : index
    %c0_57 = arith.constant 0 : index
    %55 = vector.load %arg2[%c6, %c0_56, %c0_57] : memref<9x4x128xbf16, #tpu.memory_space<vmem>>, vector<1x4x128xbf16>
    %56 = vector.shape_cast %55 : vector<1x4x128xbf16> to vector<4x128xbf16>
    %cst_58 = arith.constant dense<0.000000e+00> : vector<288x128xf32>
    %57 = tpu.matmul %54, %56, %cst_58 {dimension_numbers = #tpu.dot_dimension_numbers<[1], [0], [0], [1], [0, 0, 1, 1], [], []>} : vector<288x4xbf16>, vector<4x128xbf16>, vector<288x128xf32> -> vector<288x128xf32>
    %c0_59 = arith.constant 0 : index
    %c0_60 = arith.constant 0 : index
    %58 = vector.load %arg5[%c0_59, %c0_60] : memref<288x128xf32, #tpu.memory_space<vmem>>, vector<288x128xf32>
    %59 = arith.addf %58, %57 : vector<288x128xf32>
    %c0_61 = arith.constant 0 : index
    %c0_62 = arith.constant 0 : index
    %60 = vector.load %arg5[%c0_61, %c0_62] : memref<288x128xf32, #tpu.memory_space<vmem>>, vector<288x128xf32>
    tpu.vector_store %arg5[%c0_61, %c0_62], %59 {strides = array<i32>} : memref<288x128xf32, #tpu.memory_space<vmem>>, vector<288x128xf32>,
    %c0_63 = arith.constant 0 : index
    %c37 = arith.constant 37 : index
    %c0_64 = arith.constant 0 : index
    %61 = vector.load %arg1[%c0_63, %c37, %c0_64] : memref<1x328x4xf32, #tpu.memory_space<vmem>>, vector<1x288x4xf32>
    %62 = vector.shape_cast %61 : vector<1x288x4xf32> to vector<288x4xf32>
    %63 = arith.truncf %62 : vector<288x4xf32> to vector<288x4xbf16>
    %c7 = arith.constant 7 : index
    %c0_65 = arith.constant 0 : index
    %c0_66 = arith.constant 0 : index
    %64 = vector.load %arg2[%c7, %c0_65, %c0_66] : memref<9x4x128xbf16, #tpu.memory_space<vmem>>, vector<1x4x128xbf16>
    %65 = vector.shape_cast %64 : vector<1x4x128xbf16> to vector<4x128xbf16>
    %cst_67 = arith.constant dense<0.000000e+00> : vector<288x128xf32>
    %66 = tpu.matmul %63, %65, %cst_67 {dimension_numbers = #tpu.dot_dimension_numbers<[1], [0], [0], [1], [0, 0, 1, 1], [], []>} : vector<288x4xbf16>, vector<4x128xbf16>, vector<288x128xf32> -> vector<288x128xf32>
    %c0_68 = arith.constant 0 : index
    %c0_69 = arith.constant 0 : index
    %67 = vector.load %arg5[%c0_68, %c0_69] : memref<288x128xf32, #tpu.memory_space<vmem>>, vector<288x128xf32>
    %68 = arith.addf %67, %66 : vector<288x128xf32>
    %c0_70 = arith.constant 0 : index
    %c0_71 = arith.constant 0 : index
    %69 = vector.load %arg5[%c0_70, %c0_71] : memref<288x128xf32, #tpu.memory_space<vmem>>, vector<288x128xf32>
    tpu.vector_store %arg5[%c0_70, %c0_71], %68 {strides = array<i32>} : memref<288x128xf32, #tpu.memory_space<vmem>>, vector<288x128xf32>,
    %c0_72 = arith.constant 0 : index
    %c38 = arith.constant 38 : index
    %c0_73 = arith.constant 0 : index
    %70 = vector.load %arg1[%c0_72, %c38, %c0_73] : memref<1x328x4xf32, #tpu.memory_space<vmem>>, vector<1x288x4xf32>
    %71 = vector.shape_cast %70 : vector<1x288x4xf32> to vector<288x4xf32>
    %72 = arith.truncf %71 : vector<288x4xf32> to vector<288x4xbf16>
    %c8 = arith.constant 8 : index
    %c0_74 = arith.constant 0 : index
    %c0_75 = arith.constant 0 : index
    %73 = vector.load %arg2[%c8, %c0_74, %c0_75] : memref<9x4x128xbf16, #tpu.memory_space<vmem>>, vector<1x4x128xbf16>
    %74 = vector.shape_cast %73 : vector<1x4x128xbf16> to vector<4x128xbf16>
    %cst_76 = arith.constant dense<0.000000e+00> : vector<288x128xf32>
    %75 = tpu.matmul %72, %74, %cst_76 {dimension_numbers = #tpu.dot_dimension_numbers<[1], [0], [0], [1], [0, 0, 1, 1], [], []>} : vector<288x4xbf16>, vector<4x128xbf16>, vector<288x128xf32> -> vector<288x128xf32>
    %c0_77 = arith.constant 0 : index
    %c0_78 = arith.constant 0 : index
    %76 = vector.load %arg5[%c0_77, %c0_78] : memref<288x128xf32, #tpu.memory_space<vmem>>, vector<288x128xf32>
    %77 = arith.addf %76, %75 : vector<288x128xf32>
    %c0_79 = arith.constant 0 : index
    %c0_80 = arith.constant 0 : index
    %78 = vector.load %arg5[%c0_79, %c0_80] : memref<288x128xf32, #tpu.memory_space<vmem>>, vector<288x128xf32>
    tpu.vector_store %arg5[%c0_79, %c0_80], %77 {strides = array<i32>} : memref<288x128xf32, #tpu.memory_space<vmem>>, vector<288x128xf32>,
    %c0_81 = arith.constant 0 : index
    %c0_82 = arith.constant 0 : index
    %79 = vector.load %arg5[%c0_81, %c0_82] : memref<288x128xf32, #tpu.memory_space<vmem>>, vector<288x128xf32>
    %c0_83 = arith.constant 0 : index
    %c0_84 = arith.constant 0 : index
    %80 = vector.load %arg3[%c0_83, %c0_84] : memref<1x128xf32, #tpu.memory_space<vmem>>, vector<1x128xf32>
    %81 = vector.broadcast %80 : vector<1x128xf32> to vector<288x128xf32>
    %82 = arith.addf %79, %81 : vector<288x128xf32>
    %83 = tpu.iota {dimensions = array<i32: 1>} : vector<288x128xi32>
    %c18_i32 = arith.constant 18 : i32
    %84 = vector.broadcast %c18_i32 : i32 to vector<288x128xi32>
    %85 = arith.cmpi sge, %83, %84 : vector<288x128xi32>
    %c27_i32 = arith.constant 27 : i32
    %86 = vector.broadcast %c27_i32 : i32 to vector<288x128xi32>
    %87 = arith.cmpi slt, %83, %86 : vector<288x128xi32>
    %88 = arith.andi %85, %87 : vector<288x128xi1>
    %89 = arith.negf %82 : vector<288x128xf32>
    %90 = math.exp %89 : vector<288x128xf32>
    %cst_85 = arith.constant 1.000000e+00 : f32
    %91 = vector.broadcast %cst_85 : f32 to vector<288x128xf32>
    %92 = arith.addf %91, %90 : vector<288x128xf32>
    %93 = arith.divf %91, %92 : vector<288x128xf32>
    %94 = arith.select %88, %93, %82 : vector<288x128xi1>, vector<288x128xf32>
    %c0_86 = arith.constant 0 : index
    %c0_87 = arith.constant 0 : index
    %c0_88 = arith.constant 0 : index
    %95 = vector.load %arg4[%c0_86, %c0_87, %c0_88] : memref<1x288x128xf32, #tpu.memory_space<vmem>>, vector<1x288x128xf32>
    %96 = vector.shape_cast %95 : vector<1x288x128xf32> to vector<288x128xf32>
    %97 = vector.shape_cast %94 : vector<288x128xf32> to vector<1x288x128xf32>
    tpu.vector_store %arg4[%c0_86, %c0_87, %c0_88], %97 {strides = array<i32>} : memref<1x288x128xf32, #tpu.memory_space<vmem>>, vector<1x288x128xf32>,
    return
  }
  func.func @transform_0(%arg0: i32) -> (i32, i32, i32) {
    %c0_i32 = arith.constant 0 : i32
    %c0_i32_0 = arith.constant 0 : i32
    %c0_i32_1 = arith.constant 0 : i32
    return %arg0, %c0_i32, %c0_i32_0 : i32, i32, i32
  }
  func.func @transform_1(%arg0: i32) -> (i32, i32, i32) {
    %c0_i32 = arith.constant 0 : i32
    %c0_i32_0 = arith.constant 0 : i32
    %c0_i32_1 = arith.constant 0 : i32
    %c0_i32_2 = arith.constant 0 : i32
    return %c0_i32, %c0_i32_0, %c0_i32_1 : i32, i32, i32
  }
  func.func @transform_2(%arg0: i32) -> (i32, i32) {
    %c0_i32 = arith.constant 0 : i32
    %c0_i32_0 = arith.constant 0 : i32
    %c0_i32_1 = arith.constant 0 : i32
    return %c0_i32, %c0_i32_0 : i32, i32
  }
  func.func @transform_3(%arg0: i32) -> (i32, i32, i32) {
    %c0_i32 = arith.constant 0 : i32
    %c0_i32_0 = arith.constant 0 : i32
    %c0_i32_1 = arith.constant 0 : i32
    return %arg0, %c0_i32, %c0_i32_0 : i32, i32, i32
  }
}

module attributes {stable_mosaic.version = 11 : i64} {
  func.func @_matmul_bn_relu_kernel(%arg0: i32, %arg1: i32, %arg2: i32, %arg3: memref<256x128xbf16, #tpu.memory_space<vmem>>, %arg4: memref<128x128xbf16, #tpu.memory_space<vmem>>, %arg5: memref<1x128xf32, #tpu.memory_space<vmem>>, %arg6: memref<1x128xf32, #tpu.memory_space<vmem>>, %arg7: memref<256x128xf32, #tpu.memory_space<vmem>>, %arg8: memref<256x128xf32, #tpu.memory_space<vmem>>) attributes {dimension_semantics = [#tpu.dimension_semantics<parallel>, #tpu.dimension_semantics<parallel>, #tpu.dimension_semantics<arbitrary>], iteration_bounds = array<i64: 2, 1, 1>, scalar_prefetch = 0 : i64, scratch_operands = 1 : i64, tpu.core_type = #tpu.core_type<tc>, window_params = [{transform_indices = @transform_0, window_bounds = array<i64: 256, 128>}, {transform_indices = @transform_1, window_bounds = array<i64: 128, 128>}, {transform_indices = @transform_2, window_bounds = array<i64: 1, 128>}, {transform_indices = @transform_3, window_bounds = array<i64: 1, 128>}, {transform_indices = @transform_4, window_bounds = array<i64: 256, 128>}]} {
    %c0_i32 = arith.constant 0 : i32
    %0 = arith.cmpi eq, %arg2, %c0_i32 : i32
    %1 = arith.extui %0 : i1 to i32
    %c0_i32_0 = arith.constant 0 : i32
    %2 = arith.cmpi ne, %1, %c0_i32_0 : i32
    scf.if %2 {
      %cst_10 = arith.constant 0.000000e+00 : f32
      %12 = vector.broadcast %cst_10 : f32 to vector<256x128xf32>
      %c0_11 = arith.constant 0 : index
      %c0_12 = arith.constant 0 : index
      %13 = vector.load %arg8[%c0_11, %c0_12] : memref<256x128xf32, #tpu.memory_space<vmem>>, vector<256x128xf32>
      tpu.vector_store %arg8[%c0_11, %c0_12], %12 {strides = array<i32>} : memref<256x128xf32, #tpu.memory_space<vmem>>, vector<256x128xf32>,
    } else {
    }
    %c0 = arith.constant 0 : index
    %c0_1 = arith.constant 0 : index
    %3 = vector.load %arg8[%c0, %c0_1] : memref<256x128xf32, #tpu.memory_space<vmem>>, vector<256x128xf32>
    %c0_2 = arith.constant 0 : index
    %c0_3 = arith.constant 0 : index
    %4 = vector.load %arg3[%c0_2, %c0_3] : memref<256x128xbf16, #tpu.memory_space<vmem>>, vector<256x128xbf16>
    %c0_4 = arith.constant 0 : index
    %c0_5 = arith.constant 0 : index
    %5 = vector.load %arg4[%c0_4, %c0_5] : memref<128x128xbf16, #tpu.memory_space<vmem>>, vector<128x128xbf16>
    %cst = arith.constant dense<0.000000e+00> : vector<256x128xf32>
    %6 = tpu.matmul %4, %5, %cst {dimension_numbers = #tpu.dot_dimension_numbers<[1], [0], [0], [1], [0, 0, 1, 1], [], []>} : vector<256x128xbf16>, vector<128x128xbf16>, vector<256x128xf32> -> vector<256x128xf32>
    %7 = arith.addf %3, %6 : vector<256x128xf32>
    %c0_6 = arith.constant 0 : index
    %c0_7 = arith.constant 0 : index
    %8 = vector.load %arg8[%c0_6, %c0_7] : memref<256x128xf32, #tpu.memory_space<vmem>>, vector<256x128xf32>
    tpu.vector_store %arg8[%c0_6, %c0_7], %7 {strides = array<i32>} : memref<256x128xf32, #tpu.memory_space<vmem>>, vector<256x128xf32>,
    %c0_i32_8 = arith.constant 0 : i32
    %9 = arith.cmpi eq, %arg2, %c0_i32_8 : i32
    %10 = arith.extui %9 : i1 to i32
    %c0_i32_9 = arith.constant 0 : i32
    %11 = arith.cmpi ne, %10, %c0_i32_9 : i32
    scf.if %11 {
      %c0_10 = arith.constant 0 : index
      %c0_11 = arith.constant 0 : index
      %12 = vector.load %arg8[%c0_10, %c0_11] : memref<256x128xf32, #tpu.memory_space<vmem>>, vector<256x128xf32>
      %c0_12 = arith.constant 0 : index
      %c0_13 = arith.constant 0 : index
      %13 = vector.load %arg5[%c0_12, %c0_13] : memref<1x128xf32, #tpu.memory_space<vmem>>, vector<1x128xf32>
      %14 = vector.broadcast %13 : vector<1x128xf32> to vector<256x128xf32>
      %15 = arith.mulf %12, %14 : vector<256x128xf32>
      %c0_14 = arith.constant 0 : index
      %c0_15 = arith.constant 0 : index
      %16 = vector.load %arg6[%c0_14, %c0_15] : memref<1x128xf32, #tpu.memory_space<vmem>>, vector<1x128xf32>
      %17 = vector.broadcast %16 : vector<1x128xf32> to vector<256x128xf32>
      %18 = arith.addf %15, %17 : vector<256x128xf32>
      %cst_16 = arith.constant 0.000000e+00 : f32
      %19 = vector.broadcast %cst_16 : f32 to vector<256x128xf32>
      %20 = arith.maximumf %18, %19 : vector<256x128xf32>
      %c0_17 = arith.constant 0 : index
      %c0_18 = arith.constant 0 : index
      %21 = vector.load %arg7[%c0_17, %c0_18] : memref<256x128xf32, #tpu.memory_space<vmem>>, vector<256x128xf32>
      tpu.vector_store %arg7[%c0_17, %c0_18], %20 {strides = array<i32>} : memref<256x128xf32, #tpu.memory_space<vmem>>, vector<256x128xf32>,
    } else {
    }
    return
  }
  func.func @transform_0(%arg0: i32, %arg1: i32, %arg2: i32) -> (i32, i32) {
    %c0_i32 = arith.constant 0 : i32
    return %arg0, %arg2 : i32, i32
  }
  func.func @transform_1(%arg0: i32, %arg1: i32, %arg2: i32) -> (i32, i32) {
    %c0_i32 = arith.constant 0 : i32
    return %arg2, %arg1 : i32, i32
  }
  func.func @transform_2(%arg0: i32, %arg1: i32, %arg2: i32) -> (i32, i32) {
    %c0_i32 = arith.constant 0 : i32
    %c0_i32_0 = arith.constant 0 : i32
    return %c0_i32, %arg1 : i32, i32
  }
  func.func @transform_3(%arg0: i32, %arg1: i32, %arg2: i32) -> (i32, i32) {
    %c0_i32 = arith.constant 0 : i32
    %c0_i32_0 = arith.constant 0 : i32
    return %c0_i32, %arg1 : i32, i32
  }
  func.func @transform_4(%arg0: i32, %arg1: i32, %arg2: i32) -> (i32, i32) {
    %c0_i32 = arith.constant 0 : i32
    return %arg0, %arg1 : i32, i32
  }
}

</mosaic_0001>

<llo_original>
// kernel: deform_conv_forward.2
$region0: #{deform_conv_forward.2}
  #allocation0 [shape = 'u32[]', space=smem, size = 0x4, offset = 0x4, fixed_abs, tag = 'smem constant byte address 0x4 - core index']
  #allocation1 [shape = 'u32[144,128]{1,0:T(1,128)}', space=vmem, size = 0x12000, scoped, tag = 'internal scratch']
  #allocation2 [shape = 'f32[288,128]{1,0:T(8,128)}', space=vmem, size = 0x24000, scoped, tag = 'scratch operand']
  %s0 = inlined_call_operand.vmem [shape: f32[2,328,4], index: 0, kind: input, shape index: {}]
  %s1 = inlined_call_operand.vmem [shape: bf16[9,4,128], index: 1, kind: input, shape index: {}]
  %s2 = inlined_call_operand.vmem [shape: f32[1,128], index: 2, kind: input, shape index: {}]
  %s3 = inlined_call_operand.vmem [shape: f32[2,288,128], index: 3, kind: output, shape index: {}]
  %s4 = sld [smem:[#allocation0]]
  $region45: #{deform_conv_forward.2} parent=0
    _
  %s6 = ssub.s32 1, %s4
  %s7 = scalar_select 0, %s6, %s4
  loop: start=0, step=1, limit=4
  $region2: #{deform_conv_forward.2} parent=0 // loop_pre_header
    _
  $region3: #{deform_conv_forward.2} parent=0 // loop_header
    %s9 = sphi 0, %s13
    %p10 = scmp.ge.s32.totalorder %s9, 4
    %s19 = sphi 0, %s21
    %s22 = sphi 0, %s19
    %s23 = sphi 0, %s22
    %s39 = sphi 0, %s23
    %s43 = sphi 0, %s43
    %s45 = sphi 0, %s43
    %s46 = sphi 0, %s45
    %s60 = sphi 0, %s46
    %s64 = sphi 0, %s64
    %s66 = sphi 0, %s64
    %s67 = sphi 0, %s66
    %s81 = sphi 0, %s67
    %s87 = sphi 0, %s89
    %s90 = sphi 0, %s87
    %s91 = sphi 0, %s90
    %s107 = sphi 0, %s91
  $region4: #{deform_conv_forward.2} parent=0 // loop_header_branch
    %12 = sbr.rel (%p10) target = $region8
  $region5: #{deform_conv_forward.2} parent=0 // loop_body
    %s14 = ssub.s32 %s9, 1
    %s15 = ssub.s32 %s9, 2
    %s16 = sadd.s32 %s9, 1
    %s17 = ssub.s32 %s9, %s16
    %p18 = scmp.eq.s32.totalorder %s17, 0
    %s20 = sadd.s32 %s19, 1
    %s21 = scalar_select %p18, %s19, %s20
    %p24 = pneg %p18
    %p25 = scmp.eq.s32.totalorder %s9, 1
    %p26 = por %p24, %p25
    %p27 = scmp.ne.s32.totalorder %s19, %s22
    %p28 = scmp.eq.s32.totalorder %s9, 0
    %p29 = por %p27, %p28
    %p30 = scmp.ne.s32.totalorder %s19, %s22
    %p31 = scmp.eq.s32.totalorder %s14, 1
    %p32 = por %p30, %p31
    %p33 = scmp.ne.s32.totalorder %s22, %s23
    %p34 = scmp.eq.s32.totalorder %s14, 0
    %p35 = por %p33, %p34
    %p36 = scmp.ne.s32.totalorder %s22, %s23
    %p37 = scmp.eq.s32.totalorder %s15, 1
    %p38 = por %p36, %p37
    %p40 = scmp.ne.s32.totalorder %s23, %s39
    %p41 = scmp.eq.s32.totalorder %s15, 0
    %p42 = por %p40, %p41
    %s44 = sadd.s32 %s43, 1
    %p47 = scmp.eq.s32.totalorder %s9, 1
    %p48 = scmp.ne.s32.totalorder %s43, %s45
    %p49 = scmp.eq.s32.totalorder %s9, 0
    %p50 = por %p48, %p49
    %p51 = scmp.ne.s32.totalorder %s43, %s45
    %p52 = scmp.eq.s32.totalorder %s14, 1
    %p53 = por %p51, %p52
    %p54 = scmp.ne.s32.totalorder %s45, %s46
    %p55 = scmp.eq.s32.totalorder %s14, 0
    %p56 = por %p54, %p55
    %p57 = scmp.ne.s32.totalorder %s45, %s46
    %p58 = scmp.eq.s32.totalorder %s15, 1
    %p59 = por %p57, %p58
    %p61 = scmp.ne.s32.totalorder %s46, %s60
    %p62 = scmp.eq.s32.totalorder %s15, 0
    %p63 = por %p61, %p62
    %s65 = sadd.s32 %s64, 1
    %p68 = scmp.eq.s32.totalorder %s9, 1
    %p69 = scmp.ne.s32.totalorder %s64, %s66
    %p70 = scmp.eq.s32.totalorder %s9, 0
    %p71 = por %p69, %p70
    %p72 = scmp.ne.s32.totalorder %s64, %s66
    %p73 = scmp.eq.s32.totalorder %s14, 1
    %p74 = por %p72, %p73
    %p75 = scmp.ne.s32.totalorder %s66, %s67
    %p76 = scmp.eq.s32.totalorder %s14, 0
    %p77 = por %p75, %p76
    %p78 = scmp.ne.s32.totalorder %s66, %s67
    %p79 = scmp.eq.s32.totalorder %s15, 1
    %p80 = por %p78, %p79
    %p82 = scmp.ne.s32.totalorder %s67, %s81
    %p83 = scmp.eq.s32.totalorder %s15, 0
    %p84 = por %p82, %p83
    %s85 = ssub.s32 %s9, %s16
    %p86 = scmp.eq.s32.totalorder %s85, 0
    %s88 = sadd.s32 %s87, 1
    %s89 = scalar_select %p86, %s87, %s88
    %p92 = pneg %p86
    %p93 = scmp.eq.s32.totalorder %s9, 1
    %p94 = por %p92, %p93
    %p95 = scmp.ne.s32.totalorder %s87, %s90
    %p96 = scmp.eq.s32.totalorder %s9, 0
    %p97 = por %p95, %p96
    %p98 = scmp.ne.s32.totalorder %s87, %s90
    %p99 = scmp.eq.s32.totalorder %s14, 1
    %p100 = por %p98, %p99
    %p101 = scmp.ne.s32.totalorder %s90, %s91
    %p102 = scmp.eq.s32.totalorder %s14, 0
    %p103 = por %p101, %p102
    %p104 = scmp.ne.s32.totalorder %s90, %s91
    %p105 = scmp.eq.s32.totalorder %s15, 1
    %p106 = por %p104, %p105
    %p108 = scmp.ne.s32.totalorder %s91, %s107
    %p109 = scmp.eq.s32.totalorder %s15, 0
    %p110 = por %p108, %p109
    %p111 = scmp.le.s32.totalorder 1, %s9
    %p112 = scmp.lt.s32.totalorder %s9, 3
    %p113 = pnand %p111, %p112
    %p114 = pneg %p113
    // Predicated region
    $region9: #{deform_conv_forward.2} parent=5 // pred_check
      _
    $region10: #{deform_conv_forward.2} parent=5 // pred_check_branch
      %116 = sbr.rel (%p113) target = $region12
    $region11: #{deform_conv_forward.2} parent=5 // pred_region
      %s117 = ssub.s32 %s9, 1
      // Predicated region
      $region13: #{deform_conv_forward.2} parent=11 // pred_check
        %p118 = pneg %p56
      $region14: #{deform_conv_forward.2} parent=11 // pred_check_branch
        %120 = sbr.rel (%p118) target = $region16
      $region15: #{deform_conv_forward.2} parent=11 // pred_region
        _
      $region16: #{deform_conv_forward.2} parent=11 // pred_fallthru
        _
      // Predicated region
      $region17: #{deform_conv_forward.2} parent=11 // pred_check
        %p121 = pneg %p77
      $region18: #{deform_conv_forward.2} parent=11 // pred_check_branch
        %123 = sbr.rel (%p121) target = $region20
      $region19: #{deform_conv_forward.2} parent=11 // pred_region
        _
      $region20: #{deform_conv_forward.2} parent=11 // pred_fallthru
        _
    $region12: #{deform_conv_forward.2} parent=5 // pred_fallthru
      _
    %p124 = scmp.lt.s32.totalorder %s9, 2
    // Predicated region
    $region21: #{deform_conv_forward.2} parent=5 // pred_check
      %p125 = pneg %p124
    $region22: #{deform_conv_forward.2} parent=5 // pred_check_branch
      %127 = sbr.rel (%p125) target = $region24
    $region23: #{deform_conv_forward.2} parent=5 // pred_region
      // Predicated region
      $region25: #{deform_conv_forward.2} parent=23 // pred_check
        %p128 = pneg %p29
      $region26: #{deform_conv_forward.2} parent=23 // pred_check_branch
        %130 = sbr.rel (%p128) target = $region28
      $region27: #{deform_conv_forward.2} parent=23 // pred_region
        %p131 = scmp.lt.s32.totalorder %s9, 1
        %s132 = scalar_select %p131, %s9, 1
        %s133 = smul.addr %s132, 41
        %s134 = smul.addr %s133, 8
        %s135 = scalar_lea.vmem %s0, %s134
      $region28: #{deform_conv_forward.2} parent=23 // pred_fallthru
        _
    $region24: #{deform_conv_forward.2} parent=5 // pred_fallthru
      _
    %p136 = scmp.le.s32.totalorder 1, %s9
    %p137 = scmp.lt.s32.totalorder %s9, 3
    %p138 = pnand %p136, %p137
    %p139 = pneg %p138
    // Predicated region
    $region29: #{deform_conv_forward.2} parent=5 // pred_check
      _
    $region30: #{deform_conv_forward.2} parent=5 // pred_check_branch
      %141 = sbr.rel (%p138) target = $region32
    $region31: #{deform_conv_forward.2} parent=5 // pred_region
      %s142 = ssub.s32 %s9, 1
      %p143 = scmp.lt.s32.totalorder %s14, 1
      %s144 = scalar_select %p143, %s14, 1
      %s145 = smul.addr %s144, 41
      %s146 = smul.addr %s145, 8
      %s147 = scalar_lea.vmem %s0, %s146
      %p148 = pneg %p35
      %p149 = pneg %p32
      %p150 = pneg %p56
      %p151 = pneg %p53
      %p152 = pneg %p77
      %p153 = pneg %p74
      %p154 = pneg %p103
      %p155 = pneg %p100
      %p156 = scmp.lt.s32.totalorder %s14, 1
      %s157 = scalar_select %p156, %s14, 1
      %s158 = smul.addr %s157, 36
      %s159 = smul.addr %s158, 8
      %s160 = scalar_lea.vmem %s3, %s159
      %p161 = scmp.lt.s32.totalorder %s14, 1
      %s162 = scalar_select %p161, %s14, 1
      %s163 = smul.addr %s162, 41
      %s164 = smul.addr %s163, 8
      %s165 = scalar_lea.vmem %s0, %s164
      %p166 = scmp.lt.s32.totalorder %s14, 1
      %s167 = scalar_select %p166, %s14, 1
      %s168 = smul.addr %s167, 36
      %s169 = smul.addr %s168, 8
      %s170 = scalar_lea.vmem %s3, %s169
      %v172 = vld [vmem:[%s165] sm:$0xff]
      %v173 = vld [vmem:[%s165 + $0x8] sm:$0xff]
      %v174 = vld [vmem:[%s165 + $0x10] sm:$0xff]
      %v175 = vld [vmem:[%s165 + $0x18] sm:$0xff]
      %v176 = vld [vmem:[%s165 + $0x20] sm:$0xff]
      %v177 = vld [vmem:[%s165 + $0x28] sm:$0xff]
      %v178 = vld [vmem:[%s165 + $0x30] sm:$0xff]
      %v179 = vld [vmem:[%s165 + $0x38] sm:$0xff]
      %v180 = vld [vmem:[%s165 + $0x40] sm:$0xff]
      %v181 = vld [vmem:[%s165 + $0x48] sm:$0xff]
      %v182 = vld [vmem:[%s165 + $0x50] sm:$0xff]
      %v183 = vld [vmem:[%s165 + $0x58] sm:$0xff]
      %v184 = vld [vmem:[%s165 + $0x60] sm:$0xff]
      %v185 = vld [vmem:[%s165 + $0x68] sm:$0xff]
      %v186 = vld [vmem:[%s165 + $0x70] sm:$0xff]
      %v187 = vld [vmem:[%s165 + $0x78] sm:$0xff]
      %v188 = vld [vmem:[%s165 + $0x80] sm:$0xff]
      %v189 = vld [vmem:[%s165 + $0x88] sm:$0xff]
      %v190 = vld [vmem:[%s165 + $0x90] sm:$0xff]
      %v191 = vld [vmem:[%s165 + $0x98] sm:$0xff]
      %v192 = vld [vmem:[%s165 + $0xa0] sm:$0xff]
      %v193 = vld [vmem:[%s165 + $0xa8] sm:$0xff]
      %v194 = vld [vmem:[%s165 + $0xb0] sm:$0xff]
      %v195 = vld [vmem:[%s165 + $0xb8] sm:$0xff]
      %v196 = vld [vmem:[%s165 + $0xc0] sm:$0xff]
      %v197 = vld [vmem:[%s165 + $0xc8] sm:$0xff]
      %v198 = vld [vmem:[%s165 + $0xd0] sm:$0xff]
      %v199 = vld [vmem:[%s165 + $0xd8] sm:$0xff]
      %v200 = vld [vmem:[%s165 + $0xe0] sm:$0xff]
      %v201 = vld [vmem:[%s165 + $0xe8] sm:$0xff]
      %v202 = vld [vmem:[%s165 + $0xf0] sm:$0xff]
      %v203 = vld [vmem:[%s165 + $0xf8] sm:$0xff]
      %v204 = vld [vmem:[%s165 + $0x100] sm:$0xff]
      %v205 = vld [vmem:[%s165 + $0x108] sm:$0xff]
      %v206 = vld [vmem:[%s165 + $0x110] sm:$0xff]
      %v207 = vld [vmem:[%s165 + $0x118] sm:$0xff]
      %v208 = vpack.c.bf16 %v173, %v172
      %v209 = vpack.c.bf16 %v175, %v174
      %v210 = vpack.c.bf16 %v177, %v176
      %v211 = vpack.c.bf16 %v179, %v178
      %v212 = vpack.c.bf16 %v181, %v180
      %v213 = vpack.c.bf16 %v183, %v182
      %v214 = vpack.c.bf16 %v185, %v184
      %v215 = vpack.c.bf16 %v187, %v186
      %v216 = vpack.c.bf16 %v189, %v188
      %v217 = vpack.c.bf16 %v191, %v190
      %v218 = vpack.c.bf16 %v193, %v192
      %v219 = vpack.c.bf16 %v195, %v194
      %v220 = vpack.c.bf16 %v197, %v196
      %v221 = vpack.c.bf16 %v199, %v198
      %v222 = vpack.c.bf16 %v201, %v200
      %v223 = vpack.c.bf16 %v203, %v202
      %v224 = vpack.c.bf16 %v205, %v204
      %v225 = vpack.c.bf16 %v207, %v206
      %v226 = vld [vmem:[%s1] sm:$0x3]
      %vm227 = vcmask 31744
      %v229 = vsel %vm227, %v208, 0
      %v232 = vsel %vm227, %v209, 0
      %v235 = vsel %vm227, %v210, 0
      %v238 = vsel %vm227, %v211, 0
      %v241 = vsel %vm227, %v212, 0
      %v244 = vsel %vm227, %v213, 0
      %v247 = vsel %vm227, %v214, 0
      %v250 = vsel %vm227, %v215, 0
      %v253 = vsel %vm227, %v216, 0
      %v256 = vsel %vm227, %v217, 0
      %v259 = vsel %vm227, %v218, 0
      %v262 = vsel %vm227, %v219, 0
      %v265 = vsel %vm227, %v220, 0
      %v268 = vsel %vm227, %v221, 0
      %v271 = vsel %vm227, %v222, 0
      %v274 = vsel %vm227, %v223, 0
      %v277 = vsel %vm227, %v224, 0
      %v280 = vsel %vm227, %v225, 0
      %vm282 = vcmask 1041408
      %v284 = vsel %vm282, %v226, 0
      %286 = vmatprep.subr.bf16.mxu0 0
      %287 = vmatpush1.bf16.msra.mxu0 0
      %288 = vmatprep.subr.bf16.mxu0 0
      %289 = vmatpush1.bf16.msra.mxu0 0
      %290 = vmatprep.subr.bf16.mxu0 0
      %291 = vmatpush1.bf16.msra.mxu0 0
      %292 = vmatprep.subr.bf16.mxu0 0
      %293 = vmatpush1.bf16.msra.mxu0 0
      %294 = vmatprep.subr.bf16.mxu0 0
      %295 = vmatpush1.bf16.msra.mxu0 0
      %296 = vmatprep.subr.bf16.mxu0 0
      %297 = vmatpush1.bf16.msra.mxu0 0
      %298 = vmatprep.subr.bf16.mxu0 0
      %299 = vmatpush1.bf16.msra.mxu0 0
      %300 = vmatprep.subr.bf16.mxu0 0
      %301 = vmatpush1.bf16.msra.mxu0 %v284
      %302 = vmatprep.subr.bf16.mxu0 0
      %303 = vmatpush2.bf16.msra.mxu0 0
      %304 = vmatprep.subr.bf16.mxu0 0
      %305 = vmatpush2.bf16.msra.mxu0 0
      %306 = vmatprep.subr.bf16.mxu0 0
      %307 = vmatpush2.bf16.msra.mxu0 0
      %308 = vmatprep.subr.bf16.mxu0 0
      %309 = vmatpush2.bf16.msra.mxu0 0
      %310 = vmatprep.subr.bf16.mxu0 0
      %311 = vmatpush2.bf16.msra.mxu0 0
      %312 = vmatprep.subr.bf16.mxu0 0
      %313 = vmatpush2.bf16.msra.mxu0 0
      %314 = vmatprep.subr.bf16.mxu0 0
      %315 = vmatpush2.bf16.msra.mxu0 0
      %316 = vmatprep.subr.bf16.mxu0 0
      %317 = vmatpush2.bf16.msra.mxu0 0
      %318 = vmatprep.mubr.bf16.mxu0 0
      %319 = vmatmul.mubr.bf16.gmra.mxu0 %v229
      %v320 = vpop.f32.mrf.mxu0
      %v321 = vadd.f32 0.0, %v320
      %v322 = vpop.f32.mrf.mxu0
      %v323 = vpop.f32.mrf.mxu0
      %v324 = vadd.f32 0.0, %v323
      %v325 = vpop.f32.mrf.mxu0
      %326 = vmatprep.mubr.bf16.mxu0 0
      %327 = vmatmul.mubr.bf16.gmra.mxu0 %v232
      %v328 = vpop.f32.mrf.mxu0
      %v329 = vadd.f32 0.0, %v328
      %v330 = vpop.f32.mrf.mxu0
      %v331 = vpop.f32.mrf.mxu0
      %v332 = vadd.f32 0.0, %v331
      %v333 = vpop.f32.mrf.mxu0
      %334 = vmatprep.mubr.bf16.mxu0 0
      %335 = vmatmul.mubr.bf16.gmra.mxu0 %v235
      %v336 = vpop.f32.mrf.mxu0
      %v337 = vadd.f32 0.0, %v336
      %v338 = vpop.f32.mrf.mxu0
      %v339 = vpop.f32.mrf.mxu0
      %v340 = vadd.f32 0.0, %v339
      %v341 = vpop.f32.mrf.mxu0
      %342 = vmatprep.mubr.bf16.mxu0 0
      %343 = vmatmul.mubr.bf16.gmra.mxu0 %v238
      %v344 = vpop.f32.mrf.mxu0
      %v345 = vadd.f32 0.0, %v344
      %v346 = vpop.f32.mrf.mxu0
      %v347 = vpop.f32.mrf.mxu0
      %v348 = vadd.f32 0.0, %v347
      %v349 = vpop.f32.mrf.mxu0
      %350 = vmatprep.mubr.bf16.mxu0 0
      %351 = vmatmul.mubr.bf16.gmra.mxu0 %v241
      %v352 = vpop.f32.mrf.mxu0
      %v353 = vadd.f32 0.0, %v352
      %v354 = vpop.f32.mrf.mxu0
      %v355 = vpop.f32.mrf.mxu0
      %v356 = vadd.f32 0.0, %v355
      %v357 = vpop.f32.mrf.mxu0
      %358 = vmatprep.mubr.bf16.mxu0 0
      %359 = vmatmul.mubr.bf16.gmra.mxu0 %v244
      %v360 = vpop.f32.mrf.mxu0
      %v361 = vadd.f32 0.0, %v360
      %v362 = vpop.f32.mrf.mxu0
      %v363 = vpop.f32.mrf.mxu0
      %v364 = vadd.f32 0.0, %v363
      %v365 = vpop.f32.mrf.mxu0
      %366 = vmatprep.mubr.bf16.mxu0 0
      %367 = vmatmul.mubr.bf16.gmra.mxu0 %v247
      %v368 = vpop.f32.mrf.mxu0
      %v369 = vadd.f32 0.0, %v368
      %v370 = vpop.f32.mrf.mxu0
      %v371 = vpop.f32.mrf.mxu0
      %v372 = vadd.f32 0.0, %v371
      %v373 = vpop.f32.mrf.mxu0
      %374 = vmatprep.mubr.bf16.mxu0 0
      %375 = vmatmul.mubr.bf16.gmra.mxu0 %v250
      %v376 = vpop.f32.mrf.mxu0
      %v377 = vadd.f32 0.0, %v376
      %v378 = vpop.f32.mrf.mxu0
      %v379 = vpop.f32.mrf.mxu0
      %v380 = vadd.f32 0.0, %v379
      %v381 = vpop.f32.mrf.mxu0
      %382 = vmatprep.mubr.bf16.mxu0 0
      %383 = vmatmul.mubr.bf16.gmra.mxu0 %v253
      %v384 = vpop.f32.mrf.mxu0
      %v385 = vadd.f32 0.0, %v384
      %v386 = vpop.f32.mrf.mxu0
      %v387 = vpop.f32.mrf.mxu0
      %v388 = vadd.f32 0.0, %v387
      %v389 = vpop.f32.mrf.mxu0
      %390 = vmatprep.mubr.bf16.mxu0 0
      %391 = vmatmul.mubr.bf16.gmra.mxu0 %v256
      %v392 = vpop.f32.mrf.mxu0
      %v393 = vadd.f32 0.0, %v392
      %v394 = vpop.f32.mrf.mxu0
      %v395 = vpop.f32.mrf.mxu0
      %v396 = vadd.f32 0.0, %v395
      %v397 = vpop.f32.mrf.mxu0
      %398 = vmatprep.mubr.bf16.mxu0 0
      %399 = vmatmul.mubr.bf16.gmra.mxu0 %v259
      %v400 = vpop.f32.mrf.mxu0
      %v401 = vadd.f32 0.0, %v400
      %v402 = vpop.f32.mrf.mxu0
      %v403 = vpop.f32.mrf.mxu0
      %v404 = vadd.f32 0.0, %v403
      %v405 = vpop.f32.mrf.mxu0
      %406 = vmatprep.mubr.bf16.mxu0 0
      %407 = vmatmul.mubr.bf16.gmra.mxu0 %v262
      %v408 = vpop.f32.mrf.mxu0
      %v409 = vadd.f32 0.0, %v408
      %v410 = vpop.f32.mrf.mxu0
      %v411 = vpop.f32.mrf.mxu0
      %v412 = vadd.f32 0.0, %v411
      %v413 = vpop.f32.mrf.mxu0
      %414 = vmatprep.mubr.bf16.mxu0 0
      %415 = vmatmul.mubr.bf16.gmra.mxu0 %v265
      %v416 = vpop.f32.mrf.mxu0
      %v417 = vadd.f32 0.0, %v416
      %v418 = vpop.f32.mrf.mxu0
      %v419 = vpop.f32.mrf.mxu0
      %v420 = vadd.f32 0.0, %v419
      %v421 = vpop.f32.mrf.mxu0
      %422 = vmatprep.mubr.bf16.mxu0 0
      %423 = vmatmul.mubr.bf16.gmra.mxu0 %v268
      %v424 = vpop.f32.mrf.mxu0
      %v425 = vadd.f32 0.0, %v424
      %v426 = vpop.f32.mrf.mxu0
      %v427 = vpop.f32.mrf.mxu0
      %v428 = vadd.f32 0.0, %v427
      %v429 = vpop.f32.mrf.mxu0
      %430 = vmatprep.mubr.bf16.mxu0 0
      %431 = vmatmul.mubr.bf16.gmra.mxu0 %v271
      %v432 = vpop.f32.mrf.mxu0
      %v433 = vadd.f32 0.0, %v432
      %v434 = vpop.f32.mrf.mxu0
      %v435 = vpop.f32.mrf.mxu0
      %v436 = vadd.f32 0.0, %v435
      %v437 = vpop.f32.mrf.mxu0
      %438 = vmatprep.mubr.bf16.mxu0 0
      %439 = vmatmul.mubr.bf16.gmra.mxu0 %v274
      %v440 = vpop.f32.mrf.mxu0
      %v441 = vadd.f32 0.0, %v440
      %v442 = vpop.f32.mrf.mxu0
      %v443 = vpop.f32.mrf.mxu0
      %v444 = vadd.f32 0.0, %v443
      %v445 = vpop.f32.mrf.mxu0
      %446 = vmatprep.mubr.bf16.mxu0 0
      %447 = vmatmul.mubr.bf16.gmra.mxu0 %v277
      %v448 = vpop.f32.mrf.mxu0
      %v449 = vadd.f32 0.0, %v448
      %v450 = vpop.f32.mrf.mxu0
      %v451 = vpop.f32.mrf.mxu0
      %v452 = vadd.f32 0.0, %v451
      %v453 = vpop.f32.mrf.mxu0
      %454 = vmatprep.mubr.bf16.mxu0 0
      %455 = vmatmul.mubr.bf16.gmra.mxu0 %v280
      %v456 = vpop.f32.mrf.mxu0
      %v457 = vadd.f32 0.0, %v456
      %v458 = vpop.f32.mrf.mxu0
      %v459 = vpop.f32.mrf.mxu0
      %v460 = vadd.f32 0.0, %v459
      %v461 = vpop.f32.mrf.mxu0
      %462 = vdwg.mxu0
      %463 = vst [vmem:[#allocation2] sm:$0xff] %v321
      %464 = vst [vmem:[#allocation2 + $0x8] sm:$0xff] %v324
      %465 = vst [vmem:[#allocation2 + $0x10] sm:$0xff] %v329
      %466 = vst [vmem:[#allocation2 + $0x18] sm:$0xff] %v332
      %467 = vst [vmem:[#allocation2 + $0x20] sm:$0xff] %v337
      %468 = vst [vmem:[#allocation2 + $0x28] sm:$0xff] %v340
      %469 = vst [vmem:[#allocation2 + $0x30] sm:$0xff] %v345
      %470 = vst [vmem:[#allocation2 + $0x38] sm:$0xff] %v348
      %471 = vst [vmem:[#allocation2 + $0x40] sm:$0xff] %v353
      %472 = vst [vmem:[#allocation2 + $0x48] sm:$0xff] %v356
      %473 = vst [vmem:[#allocation2 + $0x50] sm:$0xff] %v361
      %474 = vst [vmem:[#allocation2 + $0x58] sm:$0xff] %v364
      %475 = vst [vmem:[#allocation2 + $0x60] sm:$0xff] %v369
      %476 = vst [vmem:[#allocation2 + $0x68] sm:$0xff] %v372
      %477 = vst [vmem:[#allocation2 + $0x70] sm:$0xff] %v377
      %478 = vst [vmem:[#allocation2 + $0x78] sm:$0xff] %v380
      %479 = vst [vmem:[#allocation2 + $0x80] sm:$0xff] %v385
      %480 = vst [vmem:[#allocation2 + $0x88] sm:$0xff] %v388
      %481 = vst [vmem:[#allocation2 + $0x90] sm:$0xff] %v393
      %482 = vst [vmem:[#allocation2 + $0x98] sm:$0xff] %v396
      %483 = vst [vmem:[#allocation2 + $0xa0] sm:$0xff] %v401
      %484 = vst [vmem:[#allocation2 + $0xa8] sm:$0xff] %v404
      %485 = vst [vmem:[#allocation2 + $0xb0] sm:$0xff] %v409
      %486 = vst [vmem:[#allocation2 + $0xb8] sm:$0xff] %v412
      %487 = vst [vmem:[#allocation2 + $0xc0] sm:$0xff] %v417
      %488 = vst [vmem:[#allocation2 + $0xc8] sm:$0xff] %v420
      %489 = vst [vmem:[#allocation2 + $0xd0] sm:$0xff] %v425
      %490 = vst [vmem:[#allocation2 + $0xd8] sm:$0xff] %v428
      %491 = vst [vmem:[#allocation2 + $0xe0] sm:$0xff] %v433
      %492 = vst [vmem:[#allocation2 + $0xe8] sm:$0xff] %v436
      %493 = vst [vmem:[#allocation2 + $0xf0] sm:$0xff] %v441
      %494 = vst [vmem:[#allocation2 + $0xf8] sm:$0xff] %v444
      %495 = vst [vmem:[#allocation2 + $0x100] sm:$0xff] %v449
      %496 = vst [vmem:[#allocation2 + $0x108] sm:$0xff] %v452
      %497 = vst [vmem:[#allocation2 + $0x110] sm:$0xff] %v457
      %498 = vst [vmem:[#allocation2 + $0x118] sm:$0xff] %v460
      %v499 = vld [vmem:[%s165 + $0x1] sm:$0xff]
      %v500 = vld [vmem:[%s165 + $0x9] sm:$0xff]
      %v501 = vld [vmem:[%s165 + $0x11] sm:$0xff]
      %v502 = vld [vmem:[%s165 + $0x19] sm:$0xff]
      %v503 = vld [vmem:[%s165 + $0x21] sm:$0xff]
      %v504 = vld [vmem:[%s165 + $0x29] sm:$0xff]
      %v505 = vld [vmem:[%s165 + $0x31] sm:$0xff]
      %v506 = vld [vmem:[%s165 + $0x39] sm:$0xff]
      %v507 = vld [vmem:[%s165 + $0x41] sm:$0xff]
      %v508 = vld [vmem:[%s165 + $0x49] sm:$0xff]
      %v509 = vld [vmem:[%s165 + $0x51] sm:$0xff]
      %v510 = vld [vmem:[%s165 + $0x59] sm:$0xff]
      %v511 = vld [vmem:[%s165 + $0x61] sm:$0xff]
      %v512 = vld [vmem:[%s165 + $0x69] sm:$0xff]
      %v513 = vld [vmem:[%s165 + $0x71] sm:$0xff]
      %v514 = vld [vmem:[%s165 + $0x79] sm:$0xff]
      %v515 = vld [vmem:[%s165 + $0x81] sm:$0xff]
      %v516 = vld [vmem:[%s165 + $0x89] sm:$0xff]
      %v517 = vld [vmem:[%s165 + $0x91] sm:$0xff]
      %v518 = vld [vmem:[%s165 + $0x99] sm:$0xff]
      %v519 = vld [vmem:[%s165 + $0xa1] sm:$0xff]
      %v520 = vld [vmem:[%s165 + $0xa9] sm:$0xff]
      %v521 = vld [vmem:[%s165 + $0xb1] sm:$0xff]
      %v522 = vld [vmem:[%s165 + $0xb9] sm:$0xff]
      %v523 = vld [vmem:[%s165 + $0xc1] sm:$0xff]
      %v524 = vld [vmem:[%s165 + $0xc9] sm:$0xff]
      %v525 = vld [vmem:[%s165 + $0xd1] sm:$0xff]
      %v526 = vld [vmem:[%s165 + $0xd9] sm:$0xff]
      %v527 = vld [vmem:[%s165 + $0xe1] sm:$0xff]
      %v528 = vld [vmem:[%s165 + $0xe9] sm:$0xff]
      %v529 = vld [vmem:[%s165 + $0xf1] sm:$0xff]
      %v530 = vld [vmem:[%s165 + $0xf9] sm:$0xff]
      %v531 = vld [vmem:[%s165 + $0x101] sm:$0xff]
      %v532 = vld [vmem:[%s165 + $0x109] sm:$0xff]
      %v533 = vld [vmem:[%s165 + $0x111] sm:$0xff]
      %v534 = vld [vmem:[%s165 + $0x119] sm:$0xff]
      %v535 = vpack.c.bf16 %v500, %v499
      %v536 = vpack.c.bf16 %v502, %v501
      %v537 = vpack.c.bf16 %v504, %v503
      %v538 = vpack.c.bf16 %v506, %v505
      %v539 = vpack.c.bf16 %v508, %v507
      %v540 = vpack.c.bf16 %v510, %v509
      %v541 = vpack.c.bf16 %v512, %v511
      %v542 = vpack.c.bf16 %v514, %v513
      %v543 = vpack.c.bf16 %v516, %v515
      %v544 = vpack.c.bf16 %v518, %v517
      %v545 = vpack.c.bf16 %v520, %v519
      %v546 = vpack.c.bf16 %v522, %v521
      %v547 = vpack.c.bf16 %v524, %v523
      %v548 = vpack.c.bf16 %v526, %v525
      %v549 = vpack.c.bf16 %v528, %v527
      %v550 = vpack.c.bf16 %v530, %v529
      %v551 = vpack.c.bf16 %v532, %v531
      %v552 = vpack.c.bf16 %v534, %v533
      %s553 = scalar_lea.vmem %s1, 2
      %v554 = vld [vmem:[%s553] sm:$0x3]
      %v556 = vsel %vm227, %v535, 0
      %v559 = vsel %vm227, %v536, 0
      %v562 = vsel %vm227, %v537, 0
      %v565 = vsel %vm227, %v538, 0
      %v568 = vsel %vm227, %v539, 0
      %v571 = vsel %vm227, %v540, 0
      %v574 = vsel %vm227, %v541, 0
      %v577 = vsel %vm227, %v542, 0
      %v580 = vsel %vm227, %v543, 0
      %v583 = vsel %vm227, %v544, 0
      %v586 = vsel %vm227, %v545, 0
      %v589 = vsel %vm227, %v546, 0
      %v592 = vsel %vm227, %v547, 0
      %v595 = vsel %vm227, %v548, 0
      %v598 = vsel %vm227, %v549, 0
      %v601 = vsel %vm227, %v550, 0
      %v604 = vsel %vm227, %v551, 0
      %v607 = vsel %vm227, %v552, 0
      %v610 = vsel %vm282, %v554, 0
      %612 = vmatprep.subr.bf16.mxu0 0
      %613 = vmatpush1.bf16.msra.mxu0 0
      %614 = vmatprep.subr.bf16.mxu0 0
      %615 = vmatpush1.bf16.msra.mxu0 0
      %616 = vmatprep.subr.bf16.mxu0 0
      %617 = vmatpush1.bf16.msra.mxu0 0
      %618 = vmatprep.subr.bf16.mxu0 0
      %619 = vmatpush1.bf16.msra.mxu0 0
      %620 = vmatprep.subr.bf16.mxu0 0
      %621 = vmatpush1.bf16.msra.mxu0 0
      %622 = vmatprep.subr.bf16.mxu0 0
      %623 = vmatpush1.bf16.msra.mxu0 0
      %624 = vmatprep.subr.bf16.mxu0 0
      %625 = vmatpush1.bf16.msra.mxu0 0
      %626 = vmatprep.subr.bf16.mxu0 0
      %627 = vmatpush1.bf16.msra.mxu0 %v610
      %628 = vmatprep.subr.bf16.mxu0 0
      %629 = vmatpush2.bf16.msra.mxu0 0
      %630 = vmatprep.subr.bf16.mxu0 0
      %631 = vmatpush2.bf16.msra.mxu0 0
      %632 = vmatprep.subr.bf16.mxu0 0
      %633 = vmatpush2.bf16.msra.mxu0 0
      %634 = vmatprep.subr.bf16.mxu0 0
      %635 = vmatpush2.bf16.msra.mxu0 0
      %636 = vmatprep.subr.bf16.mxu0 0
      %637 = vmatpush2.bf16.msra.mxu0 0
      %638 = vmatprep.subr.bf16.mxu0 0
      %639 = vmatpush2.bf16.msra.mxu0 0
      %640 = vmatprep.subr.bf16.mxu0 0
      %641 = vmatpush2.bf16.msra.mxu0 0
      %642 = vmatprep.subr.bf16.mxu0 0
      %643 = vmatpush2.bf16.msra.mxu0 0
      %644 = vmatprep.mubr.bf16.mxu0 0
      %645 = vmatmul.mubr.bf16.gmra.mxu0 %v556
      %v646 = vpop.f32.mrf.mxu0
      %v647 = vadd.f32 0.0, %v646
      %v648 = vpop.f32.mrf.mxu0
      %v649 = vpop.f32.mrf.mxu0
      %v650 = vadd.f32 0.0, %v649
      %v651 = vpop.f32.mrf.mxu0
      %652 = vmatprep.mubr.bf16.mxu0 0
      %653 = vmatmul.mubr.bf16.gmra.mxu0 %v559
      %v654 = vpop.f32.mrf.mxu0
      %v655 = vadd.f32 0.0, %v654
      %v656 = vpop.f32.mrf.mxu0
      %v657 = vpop.f32.mrf.mxu0
      %v658 = vadd.f32 0.0, %v657
      %v659 = vpop.f32.mrf.mxu0
      %660 = vmatprep.mubr.bf16.mxu0 0
      %661 = vmatmul.mubr.bf16.gmra.mxu0 %v562
      %v662 = vpop.f32.mrf.mxu0
      %v663 = vadd.f32 0.0, %v662
      %v664 = vpop.f32.mrf.mxu0
      %v665 = vpop.f32.mrf.mxu0
      %v666 = vadd.f32 0.0, %v665
      %v667 = vpop.f32.mrf.mxu0
      %668 = vmatprep.mubr.bf16.mxu0 0
      %669 = vmatmul.mubr.bf16.gmra.mxu0 %v565
      %v670 = vpop.f32.mrf.mxu0
      %v671 = vadd.f32 0.0, %v670
      %v672 = vpop.f32.mrf.mxu0
      %v673 = vpop.f32.mrf.mxu0
      %v674 = vadd.f32 0.0, %v673
      %v675 = vpop.f32.mrf.mxu0
      %676 = vmatprep.mubr.bf16.mxu0 0
      %677 = vmatmul.mubr.bf16.gmra.mxu0 %v568
      %v678 = vpop.f32.mrf.mxu0
      %v679 = vadd.f32 0.0, %v678
      %v680 = vpop.f32.mrf.mxu0
      %v681 = vpop.f32.mrf.mxu0
      %v682 = vadd.f32 0.0, %v681
      %v683 = vpop.f32.mrf.mxu0
      %684 = vmatprep.mubr.bf16.mxu0 0
      %685 = vmatmul.mubr.bf16.gmra.mxu0 %v571
      %v686 = vpop.f32.mrf.mxu0
      %v687 = vadd.f32 0.0, %v686
      %v688 = vpop.f32.mrf.mxu0
      %v689 = vpop.f32.mrf.mxu0
      %v690 = vadd.f32 0.0, %v689
      %v691 = vpop.f32.mrf.mxu0
      %692 = vmatprep.mubr.bf16.mxu0 0
      %693 = vmatmul.mubr.bf16.gmra.mxu0 %v574
      %v694 = vpop.f32.mrf.mxu0
      %v695 = vadd.f32 0.0, %v694
      %v696 = vpop.f32.mrf.mxu0
      %v697 = vpop.f32.mrf.mxu0
      %v698 = vadd.f32 0.0, %v697
      %v699 = vpop.f32.mrf.mxu0
      %700 = vmatprep.mubr.bf16.mxu0 0
      %701 = vmatmul.mubr.bf16.gmra.mxu0 %v577
      %v702 = vpop.f32.mrf.mxu0
      %v703 = vadd.f32 0.0, %v702
      %v704 = vpop.f32.mrf.mxu0
      %v705 = vpop.f32.mrf.mxu0
      %v706 = vadd.f32 0.0, %v705
      %v707 = vpop.f32.mrf.mxu0
      %708 = vmatprep.mubr.bf16.mxu0 0
      %709 = vmatmul.mubr.bf16.gmra.mxu0 %v580
      %v710 = vpop.f32.mrf.mxu0
      %v711 = vadd.f32 0.0, %v710
      %v712 = vpop.f32.mrf.mxu0
      %v713 = vpop.f32.mrf.mxu0
      %v714 = vadd.f32 0.0, %v713
      %v715 = vpop.f32.mrf.mxu0
      %716 = vmatprep.mubr.bf16.mxu0 0
      %717 = vmatmul.mubr.bf16.gmra.mxu0 %v583
      %v718 = vpop.f32.mrf.mxu0
      %v719 = vadd.f32 0.0, %v718
      %v720 = vpop.f32.mrf.mxu0
      %v721 = vpop.f32.mrf.mxu0
      %v722 = vadd.f32 0.0, %v721
      %v723 = vpop.f32.mrf.mxu0
      %724 = vmatprep.mubr.bf16.mxu0 0
      %725 = vmatmul.mubr.bf16.gmra.mxu0 %v586
      %v726 = vpop.f32.mrf.mxu0
      %v727 = vadd.f32 0.0, %v726
      %v728 = vpop.f32.mrf.mxu0
      %v729 = vpop.f32.mrf.mxu0
      %v730 = vadd.f32 0.0, %v729
      %v731 = vpop.f32.mrf.mxu0
      %732 = vmatprep.mubr.bf16.mxu0 0
      %733 = vmatmul.mubr.bf16.gmra.mxu0 %v589
      %v734 = vpop.f32.mrf.mxu0
      %v735 = vadd.f32 0.0, %v734
      %v736 = vpop.f32.mrf.mxu0
      %v737 = vpop.f32.mrf.mxu0
      %v738 = vadd.f32 0.0, %v737
      %v739 = vpop.f32.mrf.mxu0
      %740 = vmatprep.mubr.bf16.mxu0 0
      %741 = vmatmul.mubr.bf16.gmra.mxu0 %v592
      %v742 = vpop.f32.mrf.mxu0
      %v743 = vadd.f32 0.0, %v742
      %v744 = vpop.f32.mrf.mxu0
      %v745 = vpop.f32.mrf.mxu0
      %v746 = vadd.f32 0.0, %v745
      %v747 = vpop.f32.mrf.mxu0
      %748 = vmatprep.mubr.bf16.mxu0 0
      %749 = vmatmul.mubr.bf16.gmra.mxu0 %v595
      %v750 = vpop.f32.mrf.mxu0
      %v751 = vadd.f32 0.0, %v750
      %v752 = vpop.f32.mrf.mxu0
      %v753 = vpop.f32.mrf.mxu0
      %v754 = vadd.f32 0.0, %v753
      %v755 = vpop.f32.mrf.mxu0
      %756 = vmatprep.mubr.bf16.mxu0 0
      %757 = vmatmul.mubr.bf16.gmra.mxu0 %v598
      %v758 = vpop.f32.mrf.mxu0
      %v759 = vadd.f32 0.0, %v758
      %v760 = vpop.f32.mrf.mxu0
      %v761 = vpop.f32.mrf.mxu0
      %v762 = vadd.f32 0.0, %v761
      %v763 = vpop.f32.mrf.mxu0
      %764 = vmatprep.mubr.bf16.mxu0 0
      %765 = vmatmul.mubr.bf16.gmra.mxu0 %v601
      %v766 = vpop.f32.mrf.mxu0
      %v767 = vadd.f32 0.0, %v766
      %v768 = vpop.f32.mrf.mxu0
      %v769 = vpop.f32.mrf.mxu0
      %v770 = vadd.f32 0.0, %v769
      %v771 = vpop.f32.mrf.mxu0
      %772 = vmatprep.mubr.bf16.mxu0 0
      %773 = vmatmul.mubr.bf16.gmra.mxu0 %v604
      %v774 = vpop.f32.mrf.mxu0
      %v775 = vadd.f32 0.0, %v774
      %v776 = vpop.f32.mrf.mxu0
      %v777 = vpop.f32.mrf.mxu0
      %v778 = vadd.f32 0.0, %v777
      %v779 = vpop.f32.mrf.mxu0
      %780 = vmatprep.mubr.bf16.mxu0 0
      %781 = vmatmul.mubr.bf16.gmra.mxu0 %v607
      %v782 = vpop.f32.mrf.mxu0
      %v783 = vadd.f32 0.0, %v782
      %v784 = vpop.f32.mrf.mxu0
      %v785 = vpop.f32.mrf.mxu0
      %v786 = vadd.f32 0.0, %v785
      %v787 = vpop.f32.mrf.mxu0
      %788 = vdwg.mxu0
      %v789 = vld [vmem:[#allocation2] sm:$0xff]
      %v790 = vld [vmem:[#allocation2 + $0x8] sm:$0xff]
      %v791 = vld [vmem:[#allocation2 + $0x10] sm:$0xff]
      %v792 = vld [vmem:[#allocation2 + $0x18] sm:$0xff]
      %v793 = vld [vmem:[#allocation2 + $0x20] sm:$0xff]
      %v794 = vld [vmem:[#allocation2 + $0x28] sm:$0xff]
      %v795 = vld [vmem:[#allocation2 + $0x30] sm:$0xff]
      %v796 = vld [vmem:[#allocation2 + $0x38] sm:$0xff]
      %v797 = vld [vmem:[#allocation2 + $0x40] sm:$0xff]
      %v798 = vld [vmem:[#allocation2 + $0x48] sm:$0xff]
      %v799 = vld [vmem:[#allocation2 + $0x50] sm:$0xff]
      %v800 = vld [vmem:[#allocation2 + $0x58] sm:$0xff]
      %v801 = vld [vmem:[#allocation2 + $0x60] sm:$0xff]
      %v802 = vld [vmem:[#allocation2 + $0x68] sm:$0xff]
      %v803 = vld [vmem:[#allocation2 + $0x70] sm:$0xff]
      %v804 = vld [vmem:[#allocation2 + $0x78] sm:$0xff]
      %v805 = vld [vmem:[#allocation2 + $0x80] sm:$0xff]
      %v806 = vld [vmem:[#allocation2 + $0x88] sm:$0xff]
      %v807 = vld [vmem:[#allocation2 + $0x90] sm:$0xff]
      %v808 = vld [vmem:[#allocation2 + $0x98] sm:$0xff]
      %v809 = vld [vmem:[#allocation2 + $0xa0] sm:$0xff]
      %v810 = vld [vmem:[#allocation2 + $0xa8] sm:$0xff]
      %v811 = vld [vmem:[#allocation2 + $0xb0] sm:$0xff]
      %v812 = vld [vmem:[#allocation2 + $0xb8] sm:$0xff]
      %v813 = vld [vmem:[#allocation2 + $0xc0] sm:$0xff]
      %v814 = vld [vmem:[#allocation2 + $0xc8] sm:$0xff]
      %v815 = vld [vmem:[#allocation2 + $0xd0] sm:$0xff]
      %v816 = vld [vmem:[#allocation2 + $0xd8] sm:$0xff]
      %v817 = vld [vmem:[#allocation2 + $0xe0] sm:$0xff]
      %v818 = vld [vmem:[#allocation2 + $0xe8] sm:$0xff]
      %v819 = vld [vmem:[#allocation2 + $0xf0] sm:$0xff]
      %v820 = vld [vmem:[#allocation2 + $0xf8] sm:$0xff]
      %v821 = vld [vmem:[#allocation2 + $0x100] sm:$0xff]
      %v822 = vld [vmem:[#allocation2 + $0x108] sm:$0xff]
      %v823 = vld [vmem:[#allocation2 + $0x110] sm:$0xff]
      %v824 = vld [vmem:[#allocation2 + $0x118] sm:$0xff]
      %v825 = vadd.f32 %v789, %v647
      %v826 = vadd.f32 %v790, %v650
      %v827 = vadd.f32 %v791, %v655
      %v828 = vadd.f32 %v792, %v658
      %v829 = vadd.f32 %v793, %v663
      %v830 = vadd.f32 %v794, %v666
      %v831 = vadd.f32 %v795, %v671
      %v832 = vadd.f32 %v796, %v674
      %v833 = vadd.f32 %v797, %v679
      %v834 = vadd.f32 %v798, %v682
      %v835 = vadd.f32 %v799, %v687
      %v836 = vadd.f32 %v800, %v690
      %v837 = vadd.f32 %v801, %v695
      %v838 = vadd.f32 %v802, %v698
      %v839 = vadd.f32 %v803, %v703
      %v840 = vadd.f32 %v804, %v706
      %v841 = vadd.f32 %v805, %v711
      %v842 = vadd.f32 %v806, %v714
      %v843 = vadd.f32 %v807, %v719
      %v844 = vadd.f32 %v808, %v722
      %v845 = vadd.f32 %v809, %v727
      %v846 = vadd.f32 %v810, %v730
      %v847 = vadd.f32 %v811, %v735
      %v848 = vadd.f32 %v812, %v738
      %v849 = vadd.f32 %v813, %v743
      %v850 = vadd.f32 %v814, %v746
      %v851 = vadd.f32 %v815, %v751
      %v852 = vadd.f32 %v816, %v754
      %v853 = vadd.f32 %v817, %v759
      %v854 = vadd.f32 %v818, %v762
      %v855 = vadd.f32 %v819, %v767
      %v856 = vadd.f32 %v820, %v770
      %v857 = vadd.f32 %v821, %v775
      %v858 = vadd.f32 %v822, %v778
      %v859 = vadd.f32 %v823, %v783
      %v860 = vadd.f32 %v824, %v786
      %861 = vst [vmem:[#allocation2] sm:$0xff] %v825
      %862 = vst [vmem:[#allocation2 + $0x8] sm:$0xff] %v826
      %863 = vst [vmem:[#allocation2 + $0x10] sm:$0xff] %v827
      %864 = vst [vmem:[#allocation2 + $0x18] sm:$0xff] %v828
      %865 = vst [vmem:[#allocation2 + $0x20] sm:$0xff] %v829
      %866 = vst [vmem:[#allocation2 + $0x28] sm:$0xff] %v830
      %867 = vst [vmem:[#allocation2 + $0x30] sm:$0xff] %v831
      %868 = vst [vmem:[#allocation2 + $0x38] sm:$0xff] %v832
      %869 = vst [vmem:[#allocation2 + $0x40] sm:$0xff] %v833
      %870 = vst [vmem:[#allocation2 + $0x48] sm:$0xff] %v834
      %871 = vst [vmem:[#allocation2 + $0x50] sm:$0xff] %v835
      %872 = vst [vmem:[#allocation2 + $0x58] sm:$0xff] %v836
      %873 = vst [vmem:[#allocation2 + $0x60] sm:$0xff] %v837
      %874 = vst [vmem:[#allocation2 + $0x68] sm:$0xff] %v838
      %875 = vst [vmem:[#allocation2 + $0x70] sm:$0xff] %v839
      %876 = vst [vmem:[#allocation2 + $0x78] sm:$0xff] %v840
      %877 = vst [vmem:[#allocation2 + $0x80] sm:$0xff] %v841
      %878 = vst [vmem:[#allocation2 + $0x88] sm:$0xff] %v842
      %879 = vst [vmem:[#allocation2 + $0x90] sm:$0xff] %v843
      %880 = vst [vmem:[#allocation2 + $0x98] sm:$0xff] %v844
      %881 = vst [vmem:[#allocation2 + $0xa0] sm:$0xff] %v845
      %882 = vst [vmem:[#allocation2 + $0xa8] sm:$0xff] %v846
      %883 = vst [vmem:[#allocation2 + $0xb0] sm:$0xff] %v847
      %884 = vst [vmem:[#allocation2 + $0xb8] sm:$0xff] %v848
      %885 = vst [vmem:[#allocation2 + $0xc0] sm:$0xff] %v849
      %886 = vst [vmem:[#allocation2 + $0xc8] sm:$0xff] %v850
      %887 = vst [vmem:[#allocation2 + $0xd0] sm:$0xff] %v851
      %888 = vst [vmem:[#allocation2 + $0xd8] sm:$0xff] %v852
      %889 = vst [vmem:[#allocation2 + $0xe0] sm:$0xff] %v853
      %890 = vst [vmem:[#allocation2 + $0xe8] sm:$0xff] %v854
      %891 = vst [vmem:[#allocation2 + $0xf0] sm:$0xff] %v855
      %892 = vst [vmem:[#allocation2 + $0xf8] sm:$0xff] %v856
      %893 = vst [vmem:[#allocation2 + $0x100] sm:$0xff] %v857
      %894 = vst [vmem:[#allocation2 + $0x108] sm:$0xff] %v858
      %895 = vst [vmem:[#allocation2 + $0x110] sm:$0xff] %v859
      %896 = vst [vmem:[#allocation2 + $0x118] sm:$0xff] %v860
      %v897 = vld [vmem:[%s165 + $0x2] sm:$0xff]
      %v898 = vld [vmem:[%s165 + $0xa] sm:$0xff]
      %v899 = vld [vmem:[%s165 + $0x12] sm:$0xff]
      %v900 = vld [vmem:[%s165 + $0x1a] sm:$0xff]
      %v901 = vld [vmem:[%s165 + $0x22] sm:$0xff]
      %v902 = vld [vmem:[%s165 + $0x2a] sm:$0xff]
      %v903 = vld [vmem:[%s165 + $0x32] sm:$0xff]
      %v904 = vld [vmem:[%s165 + $0x3a] sm:$0xff]
      %v905 = vld [vmem:[%s165 + $0x42] sm:$0xff]
      %v906 = vld [vmem:[%s165 + $0x4a] sm:$0xff]
      %v907 = vld [vmem:[%s165 + $0x52] sm:$0xff]
      %v908 = vld [vmem:[%s165 + $0x5a] sm:$0xff]
      %v909 = vld [vmem:[%s165 + $0x62] sm:$0xff]
      %v910 = vld [vmem:[%s165 + $0x6a] sm:$0xff]
      %v911 = vld [vmem:[%s165 + $0x72] sm:$0xff]
      %v912 = vld [vmem:[%s165 + $0x7a] sm:$0xff]
      %v913 = vld [vmem:[%s165 + $0x82] sm:$0xff]
      %v914 = vld [vmem:[%s165 + $0x8a] sm:$0xff]
      %v915 = vld [vmem:[%s165 + $0x92] sm:$0xff]
      %v916 = vld [vmem:[%s165 + $0x9a] sm:$0xff]
      %v917 = vld [vmem:[%s165 + $0xa2] sm:$0xff]
      %v918 = vld [vmem:[%s165 + $0xaa] sm:$0xff]
      %v919 = vld [vmem:[%s165 + $0xb2] sm:$0xff]
      %v920 = vld [vmem:[%s165 + $0xba] sm:$0xff]
      %v921 = vld [vmem:[%s165 + $0xc2] sm:$0xff]
      %v922 = vld [vmem:[%s165 + $0xca] sm:$0xff]
      %v923 = vld [vmem:[%s165 + $0xd2] sm:$0xff]
      %v924 = vld [vmem:[%s165 + $0xda] sm:$0xff]
      %v925 = vld [vmem:[%s165 + $0xe2] sm:$0xff]
      %v926 = vld [vmem:[%s165 + $0xea] sm:$0xff]
      %v927 = vld [vmem:[%s165 + $0xf2] sm:$0xff]
      %v928 = vld [vmem:[%s165 + $0xfa] sm:$0xff]
      %v929 = vld [vmem:[%s165 + $0x102] sm:$0xff]
      %v930 = vld [vmem:[%s165 + $0x10a] sm:$0xff]
      %v931 = vld [vmem:[%s165 + $0x112] sm:$0xff]
      %v932 = vld [vmem:[%s165 + $0x11a] sm:$0xff]
      %v933 = vpack.c.bf16 %v898, %v897
      %v934 = vpack.c.bf16 %v900, %v899
      %v935 = vpack.c.bf16 %v902, %v901
      %v936 = vpack.c.bf16 %v904, %v903
      %v937 = vpack.c.bf16 %v906, %v905
      %v938 = vpack.c.bf16 %v908, %v907
      %v939 = vpack.c.bf16 %v910, %v909
      %v940 = vpack.c.bf16 %v912, %v911
      %v941 = vpack.c.bf16 %v914, %v913
      %v942 = vpack.c.bf16 %v916, %v915
      %v943 = vpack.c.bf16 %v918, %v917
      %v944 = vpack.c.bf16 %v920, %v919
      %v945 = vpack.c.bf16 %v922, %v921
      %v946 = vpack.c.bf16 %v924, %v923
      %v947 = vpack.c.bf16 %v926, %v925
      %v948 = vpack.c.bf16 %v928, %v927
      %v949 = vpack.c.bf16 %v930, %v929
      %v950 = vpack.c.bf16 %v932, %v931
      %s951 = scalar_lea.vmem %s1, 4
      %v952 = vld [vmem:[%s951] sm:$0x3]
      %v954 = vsel %vm227, %v933, 0
      %v957 = vsel %vm227, %v934, 0
      %v960 = vsel %vm227, %v935, 0
      %v963 = vsel %vm227, %v936, 0
      %v966 = vsel %vm227, %v937, 0
      %v969 = vsel %vm227, %v938, 0
      %v972 = vsel %vm227, %v939, 0
      %v975 = vsel %vm227, %v940, 0
      %v978 = vsel %vm227, %v941, 0
      %v981 = vsel %vm227, %v942, 0
      %v984 = vsel %vm227, %v943, 0
      %v987 = vsel %vm227, %v944, 0
      %v990 = vsel %vm227, %v945, 0
      %v993 = vsel %vm227, %v946, 0
      %v996 = vsel %vm227, %v947, 0
      %v999 = vsel %vm227, %v948, 0
      %v1002 = vsel %vm227, %v949, 0
      %v1005 = vsel %vm227, %v950, 0
      %v1008 = vsel %vm282, %v952, 0
      %1010 = vmatprep.subr.bf16.mxu0 0
      %1011 = vmatpush1.bf16.msra.mxu0 0
      %1012 = vmatprep.subr.bf16.mxu0 0
      %1013 = vmatpush1.bf16.msra.mxu0 0
      %1014 = vmatprep.subr.bf16.mxu0 0
      %1015 = vmatpush1.bf16.msra.mxu0 0
      %1016 = vmatprep.subr.bf16.mxu0 0
      %1017 = vmatpush1.bf16.msra.mxu0 0
      %1018 = vmatprep.subr.bf16.mxu0 0
      %1019 = vmatpush1.bf16.msra.mxu0 0
      %1020 = vmatprep.subr.bf16.mxu0 0
      %1021 = vmatpush1.bf16.msra.mxu0 0
      %1022 = vmatprep.subr.bf16.mxu0 0
      %1023 = vmatpush1.bf16.msra.mxu0 0
      %1024 = vmatprep.subr.bf16.mxu0 0
      %1025 = vmatpush1.bf16.msra.mxu0 %v1008
      %1026 = vmatprep.subr.bf16.mxu0 0
      %1027 = vmatpush2.bf16.msra.mxu0 0
      %1028 = vmatprep.subr.bf16.mxu0 0
      %1029 = vmatpush2.bf16.msra.mxu0 0
      %1030 = vmatprep.subr.bf16.mxu0 0
      %1031 = vmatpush2.bf16.msra.mxu0 0
      %1032 = vmatprep.subr.bf16.mxu0 0
      %1033 = vmatpush2.bf16.msra.mxu0 0
      %1034 = vmatprep.subr.bf16.mxu0 0
      %1035 = vmatpush2.bf16.msra.mxu0 0
      %1036 = vmatprep.subr.bf16.mxu0 0
      %1037 = vmatpush2.bf16.msra.mxu0 0
      %1038 = vmatprep.subr.bf16.mxu0 0
      %1039 = vmatpush2.bf16.msra.mxu0 0
      %1040 = vmatprep.subr.bf16.mxu0 0
      %1041 = vmatpush2.bf16.msra.mxu0 0
      %1042 = vmatprep.mubr.bf16.mxu0 0
      %1043 = vmatmul.mubr.bf16.gmra.mxu0 %v954
      %v1044 = vpop.f32.mrf.mxu0
      %v1045 = vadd.f32 0.0, %v1044
      %v1046 = vpop.f32.mrf.mxu0
      %v1047 = vpop.f32.mrf.mxu0
      %v1048 = vadd.f32 0.0, %v1047
      %v1049 = vpop.f32.mrf.mxu0
      %1050 = vmatprep.mubr.bf16.mxu0 0
      %1051 = vmatmul.mubr.bf16.gmra.mxu0 %v957
      %v1052 = vpop.f32.mrf.mxu0
      %v1053 = vadd.f32 0.0, %v1052
      %v1054 = vpop.f32.mrf.mxu0
      %v1055 = vpop.f32.mrf.mxu0
      %v1056 = vadd.f32 0.0, %v1055
      %v1057 = vpop.f32.mrf.mxu0
      %1058 = vmatprep.mubr.bf16.mxu0 0
      %1059 = vmatmul.mubr.bf16.gmra.mxu0 %v960
      %v1060 = vpop.f32.mrf.mxu0
      %v1061 = vadd.f32 0.0, %v1060
      %v1062 = vpop.f32.mrf.mxu0
      %v1063 = vpop.f32.mrf.mxu0
      %v1064 = vadd.f32 0.0, %v1063
      %v1065 = vpop.f32.mrf.mxu0
      %1066 = vmatprep.mubr.bf16.mxu0 0
      %1067 = vmatmul.mubr.bf16.gmra.mxu0 %v963
      %v1068 = vpop.f32.mrf.mxu0
      %v1069 = vadd.f32 0.0, %v1068
      %v1070 = vpop.f32.mrf.mxu0
      %v1071 = vpop.f32.mrf.mxu0
      %v1072 = vadd.f32 0.0, %v1071
      %v1073 = vpop.f32.mrf.mxu0
      %1074 = vmatprep.mubr.bf16.mxu0 0
      %1075 = vmatmul.mubr.bf16.gmra.mxu0 %v966
      %v1076 = vpop.f32.mrf.mxu0
      %v1077 = vadd.f32 0.0, %v1076
      %v1078 = vpop.f32.mrf.mxu0
      %v1079 = vpop.f32.mrf.mxu0
      %v1080 = vadd.f32 0.0, %v1079
      %v1081 = vpop.f32.mrf.mxu0
      %1082 = vmatprep.mubr.bf16.mxu0 0
      %1083 = vmatmul.mubr.bf16.gmra.mxu0 %v969
      %v1084 = vpop.f32.mrf.mxu0
      %v1085 = vadd.f32 0.0, %v1084
      %v1086 = vpop.f32.mrf.mxu0
      %v1087 = vpop.f32.mrf.mxu0
      %v1088 = vadd.f32 0.0, %v1087
      %v1089 = vpop.f32.mrf.mxu0
      %1090 = vmatprep.mubr.bf16.mxu0 0
      %1091 = vmatmul.mubr.bf16.gmra.mxu0 %v972
      %v1092 = vpop.f32.mrf.mxu0
      %v1093 = vadd.f32 0.0, %v1092
      %v1094 = vpop.f32.mrf.mxu0
      %v1095 = vpop.f32.mrf.mxu0
      %v1096 = vadd.f32 0.0, %v1095
      %v1097 = vpop.f32.mrf.mxu0
      %1098 = vmatprep.mubr.bf16.mxu0 0
      %1099 = vmatmul.mubr.bf16.gmra.mxu0 %v975
      %v1100 = vpop.f32.mrf.mxu0
      %v1101 = vadd.f32 0.0, %v1100
      %v1102 = vpop.f32.mrf.mxu0
      %v1103 = vpop.f32.mrf.mxu0
      %v1104 = vadd.f32 0.0, %v1103
      %v1105 = vpop.f32.mrf.mxu0
      %1106 = vmatprep.mubr.bf16.mxu0 0
      %1107 = vmatmul.mubr.bf16.gmra.mxu0 %v978
      %v1108 = vpop.f32.mrf.mxu0
      %v1109 = vadd.f32 0.0, %v1108
      %v1110 = vpop.f32.mrf.mxu0
      %v1111 = vpop.f32.mrf.mxu0
      %v1112 = vadd.f32 0.0, %v1111
      %v1113 = vpop.f32.mrf.mxu0
      %1114 = vmatprep.mubr.bf16.mxu0 0
      %1115 = vmatmul.mubr.bf16.gmra.mxu0 %v981
      %v1116 = vpop.f32.mrf.mxu0
      %v1117 = vadd.f32 0.0, %v1116
      %v1118 = vpop.f32.mrf.mxu0
      %v1119 = vpop.f32.mrf.mxu0
      %v1120 = vadd.f32 0.0, %v1119
      %v1121 = vpop.f32.mrf.mxu0
      %1122 = vmatprep.mubr.bf16.mxu0 0
      %1123 = vmatmul.mubr.bf16.gmra.mxu0 %v984
      %v1124 = vpop.f32.mrf.mxu0
      %v1125 = vadd.f32 0.0, %v1124
      %v1126 = vpop.f32.mrf.mxu0
      %v1127 = vpop.f32.mrf.mxu0
      %v1128 = vadd.f32 0.0, %v1127
      %v1129 = vpop.f32.mrf.mxu0
      %1130 = vmatprep.mubr.bf16.mxu0 0
      %1131 = vmatmul.mubr.bf16.gmra.mxu0 %v987
      %v1132 = vpop.f32.mrf.mxu0
      %v1133 = vadd.f32 0.0, %v1132
      %v1134 = vpop.f32.mrf.mxu0
      %v1135 = vpop.f32.mrf.mxu0
      %v1136 = vadd.f32 0.0, %v1135
      %v1137 = vpop.f32.mrf.mxu0
      %1138 = vmatprep.mubr.bf16.mxu0 0
      %1139 = vmatmul.mubr.bf16.gmra.mxu0 %v990
      %v1140 = vpop.f32.mrf.mxu0
      %v1141 = vadd.f32 0.0, %v1140
      %v1142 = vpop.f32.mrf.mxu0
      %v1143 = vpop.f32.mrf.mxu0
      %v1144 = vadd.f32 0.0, %v1143
      %v1145 = vpop.f32.mrf.mxu0
      %1146 = vmatprep.mubr.bf16.mxu0 0
      %1147 = vmatmul.mubr.bf16.gmra.mxu0 %v993
      %v1148 = vpop.f32.mrf.mxu0
      %v1149 = vadd.f32 0.0, %v1148
      %v1150 = vpop.f32.mrf.mxu0
      %v1151 = vpop.f32.mrf.mxu0
      %v1152 = vadd.f32 0.0, %v1151
      %v1153 = vpop.f32.mrf.mxu0
      %1154 = vmatprep.mubr.bf16.mxu0 0
      %1155 = vmatmul.mubr.bf16.gmra.mxu0 %v996
      %v1156 = vpop.f32.mrf.mxu0
      %v1157 = vadd.f32 0.0, %v1156
      %v1158 = vpop.f32.mrf.mxu0
      %v1159 = vpop.f32.mrf.mxu0
      %v1160 = vadd.f32 0.0, %v1159
      %v1161 = vpop.f32.mrf.mxu0
      %1162 = vmatprep.mubr.bf16.mxu0 0
      %1163 = vmatmul.mubr.bf16.gmra.mxu0 %v999
      %v1164 = vpop.f32.mrf.mxu0
      %v1165 = vadd.f32 0.0, %v1164
      %v1166 = vpop.f32.mrf.mxu0
      %v1167 = vpop.f32.mrf.mxu0
      %v1168 = vadd.f32 0.0, %v1167
      %v1169 = vpop.f32.mrf.mxu0
      %1170 = vmatprep.mubr.bf16.mxu0 0
      %1171 = vmatmul.mubr.bf16.gmra.mxu0 %v1002
      %v1172 = vpop.f32.mrf.mxu0
      %v1173 = vadd.f32 0.0, %v1172
      %v1174 = vpop.f32.mrf.mxu0
      %v1175 = vpop.f32.mrf.mxu0
      %v1176 = vadd.f32 0.0, %v1175
      %v1177 = vpop.f32.mrf.mxu0
      %1178 = vmatprep.mubr.bf16.mxu0 0
      %1179 = vmatmul.mubr.bf16.gmra.mxu0 %v1005
      %v1180 = vpop.f32.mrf.mxu0
      %v1181 = vadd.f32 0.0, %v1180
      %v1182 = vpop.f32.mrf.mxu0
      %v1183 = vpop.f32.mrf.mxu0
      %v1184 = vadd.f32 0.0, %v1183
      %v1185 = vpop.f32.mrf.mxu0
      %1186 = vdwg.mxu0
      %v1187 = vld [vmem:[#allocation2] sm:$0xff]
      %v1188 = vld [vmem:[#allocation2 + $0x8] sm:$0xff]
      %v1189 = vld [vmem:[#allocation2 + $0x10] sm:$0xff]
      %v1190 = vld [vmem:[#allocation2 + $0x18] sm:$0xff]
      %v1191 = vld [vmem:[#allocation2 + $0x20] sm:$0xff]
      %v1192 = vld [vmem:[#allocation2 + $0x28] sm:$0xff]
      %v1193 = vld [vmem:[#allocation2 + $0x30] sm:$0xff]
      %v1194 = vld [vmem:[#allocation2 + $0x38] sm:$0xff]
      %v1195 = vld [vmem:[#allocation2 + $0x40] sm:$0xff]
      %v1196 = vld [vmem:[#allocation2 + $0x48] sm:$0xff]
      %v1197 = vld [vmem:[#allocation2 + $0x50] sm:$0xff]
      %v1198 = vld [vmem:[#allocation2 + $0x58] sm:$0xff]
      %v1199 = vld [vmem:[#allocation2 + $0x60] sm:$0xff]
      %v1200 = vld [vmem:[#allocation2 + $0x68] sm:$0xff]
      %v1201 = vld [vmem:[#allocation2 + $0x70] sm:$0xff]
      %v1202 = vld [vmem:[#allocation2 + $0x78] sm:$0xff]
      %v1203 = vld [vmem:[#allocation2 + $0x80] sm:$0xff]
      %v1204 = vld [vmem:[#allocation2 + $0x88] sm:$0xff]
      %v1205 = vld [vmem:[#allocation2 + $0x90] sm:$0xff]
      %v1206 = vld [vmem:[#allocation2 + $0x98] sm:$0xff]
      %v1207 = vld [vmem:[#allocation2 + $0xa0] sm:$0xff]
      %v1208 = vld [vmem:[#allocation2 + $0xa8] sm:$0xff]
      %v1209 = vld [vmem:[#allocation2 + $0xb0] sm:$0xff]
      %v1210 = vld [vmem:[#allocation2 + $0xb8] sm:$0xff]
      %v1211 = vld [vmem:[#allocation2 + $0xc0] sm:$0xff]
      %v1212 = vld [vmem:[#allocation2 + $0xc8] sm:$0xff]
      %v1213 = vld [vmem:[#allocation2 + $0xd0] sm:$0xff]
      %v1214 = vld [vmem:[#allocation2 + $0xd8] sm:$0xff]
      %v1215 = vld [vmem:[#allocation2 + $0xe0] sm:$0xff]
      %v1216 = vld [vmem:[#allocation2 + $0xe8] sm:$0xff]
      %v1217 = vld [vmem:[#allocation2 + $0xf0] sm:$0xff]
      %v1218 = vld [vmem:[#allocation2 + $0xf8] sm:$0xff]
      %v1219 = vld [vmem:[#allocation2 + $0x100] sm:$0xff]
      %v1220 = vld [vmem:[#allocation2 + $0x108] sm:$0xff]
      %v1221 = vld [vmem:[#allocation2 + $0x110] sm:$0xff]
      %v1222 = vld [vmem:[#allocation2 + $0x118] sm:$0xff]
      %v1223 = vadd.f32 %v1187, %v1045
      %v1224 = vadd.f32 %v1188, %v1048
      %v1225 = vadd.f32 %v1189, %v1053
      %v1226 = vadd.f32 %v1190, %v1056
      %v1227 = vadd.f32 %v1191, %v1061
      %v1228 = vadd.f32 %v1192, %v1064
      %v1229 = vadd.f32 %v1193, %v1069
      %v1230 = vadd.f32 %v1194, %v1072
      %v1231 = vadd.f32 %v1195, %v1077
      %v1232 = vadd.f32 %v1196, %v1080
      %v1233 = vadd.f32 %v1197, %v1085
      %v1234 = vadd.f32 %v1198, %v1088
      %v1235 = vadd.f32 %v1199, %v1093
      %v1236 = vadd.f32 %v1200, %v1096
      %v1237 = vadd.f32 %v1201, %v1101
      %v1238 = vadd.f32 %v1202, %v1104
      %v1239 = vadd.f32 %v1203, %v1109
      %v1240 = vadd.f32 %v1204, %v1112
      %v1241 = vadd.f32 %v1205, %v1117
      %v1242 = vadd.f32 %v1206, %v1120
      %v1243 = vadd.f32 %v1207, %v1125
      %v1244 = vadd.f32 %v1208, %v1128
      %v1245 = vadd.f32 %v1209, %v1133
      %v1246 = vadd.f32 %v1210, %v1136
      %v1247 = vadd.f32 %v1211, %v1141
      %v1248 = vadd.f32 %v1212, %v1144
      %v1249 = vadd.f32 %v1213, %v1149
      %v1250 = vadd.f32 %v1214, %v1152
      %v1251 = vadd.f32 %v1215, %v1157
      %v1252 = vadd.f32 %v1216, %v1160
      %v1253 = vadd.f32 %v1217, %v1165
      %v1254 = vadd.f32 %v1218, %v1168
      %v1255 = vadd.f32 %v1219, %v1173
      %v1256 = vadd.f32 %v1220, %v1176
      %v1257 = vadd.f32 %v1221, %v1181
      %v1258 = vadd.f32 %v1222, %v1184
      %1259 = vst [vmem:[#allocation2] sm:$0xff] %v1223
      %1260 = vst [vmem:[#allocation2 + $0x8] sm:$0xff] %v1224
      %1261 = vst [vmem:[#allocation2 + $0x10] sm:$0xff] %v1225
      %1262 = vst [vmem:[#allocation2 + $0x18] sm:$0xff] %v1226
      %1263 = vst [vmem:[#allocation2 + $0x20] sm:$0xff] %v1227
      %1264 = vst [vmem:[#allocation2 + $0x28] sm:$0xff] %v1228
      %1265 = vst [vmem:[#allocation2 + $0x30] sm:$0xff] %v1229
      %1266 = vst [vmem:[#allocation2 + $0x38] sm:$0xff] %v1230
      %1267 = vst [vmem:[#allocation2 + $0x40] sm:$0xff] %v1231
      %1268 = vst [vmem:[#allocation2 + $0x48] sm:$0xff] %v1232
      %1269 = vst [vmem:[#allocation2 + $0x50] sm:$0xff] %v1233
      %1270 = vst [vmem:[#allocation2 + $0x58] sm:$0xff] %v1234
      %1271 = vst [vmem:[#allocation2 + $0x60] sm:$0xff] %v1235
      %1272 = vst [vmem:[#allocation2 + $0x68] sm:$0xff] %v1236
      %1273 = vst [vmem:[#allocation2 + $0x70] sm:$0xff] %v1237
      %1274 = vst [vmem:[#allocation2 + $0x78] sm:$0xff] %v1238
      %1275 = vst [vmem:[#allocation2 + $0x80] sm:$0xff] %v1239
      %1276 = vst [vmem:[#allocation2 + $0x88] sm:$0xff] %v1240
      %1277 = vst [vmem:[#allocation2 + $0x90] sm:$0xff] %v1241
      %1278 = vst [vmem:[#allocation2 + $0x98] sm:$0xff] %v1242
      %1279 = vst [vmem:[#allocation2 + $0xa0] sm:$0xff] %v1243
      %1280 = vst [vmem:[#allocation2 + $0xa8] sm:$0xff] %v1244
      %1281 = vst [vmem:[#allocation2 + $0xb0] sm:$0xff] %v1245
      %1282 = vst [vmem:[#allocation2 + $0xb8] sm:$0xff] %v1246
      %1283 = vst [vmem:[#allocation2 + $0xc0] sm:$0xff] %v1247
      %1284 = vst [vmem:[#allocation2 + $0xc8] sm:$0xff] %v1248
      %1285 = vst [vmem:[#allocation2 + $0xd0] sm:$0xff] %v1249
      %1286 = vst [vmem:[#allocation2 + $0xd8] sm:$0xff] %v1250
      %1287 = vst [vmem:[#allocation2 + $0xe0] sm:$0xff] %v1251
      %1288 = vst [vmem:[#allocation2 + $0xe8] sm:$0xff] %v1252
      %1289 = vst [vmem:[#allocation2 + $0xf0] sm:$0xff] %v1253
      %1290 = vst [vmem:[#allocation2 + $0xf8] sm:$0xff] %v1254
      %1291 = vst [vmem:[#allocation2 + $0x100] sm:$0xff] %v1255
      %1292 = vst [vmem:[#allocation2 + $0x108] sm:$0xff] %v1256
      %1293 = vst [vmem:[#allocation2 + $0x110] sm:$0xff] %v1257
      %1294 = vst [vmem:[#allocation2 + $0x118] sm:$0xff] %v1258
      %v1295 = vld [vmem:[%s165 + $0x12] sm:$0xff]
      %v1296 = vld [vmem:[%s165 + $0x1a] sm:$0xff]
      %v1297 = vld [vmem:[%s165 + $0x22] sm:$0xff]
      %v1298 = vld [vmem:[%s165 + $0x2a] sm:$0xff]
      %v1299 = vld [vmem:[%s165 + $0x32] sm:$0xff]
      %v1300 = vld [vmem:[%s165 + $0x3a] sm:$0xff]
      %v1301 = vld [vmem:[%s165 + $0x42] sm:$0xff]
      %v1302 = vld [vmem:[%s165 + $0x4a] sm:$0xff]
      %v1303 = vld [vmem:[%s165 + $0x52] sm:$0xff]
      %v1304 = vld [vmem:[%s165 + $0x5a] sm:$0xff]
      %v1305 = vld [vmem:[%s165 + $0x62] sm:$0xff]
      %v1306 = vld [vmem:[%s165 + $0x6a] sm:$0xff]
      %v1307 = vld [vmem:[%s165 + $0x72] sm:$0xff]
      %v1308 = vld [vmem:[%s165 + $0x7a] sm:$0xff]
      %v1309 = vld [vmem:[%s165 + $0x82] sm:$0xff]
      %v1310 = vld [vmem:[%s165 + $0x8a] sm:$0xff]
      %v1311 = vld [vmem:[%s165 + $0x92] sm:$0xff]
      %v1312 = vld [vmem:[%s165 + $0x9a] sm:$0xff]
      %v1313 = vld [vmem:[%s165 + $0xa2] sm:$0xff]
      %v1314 = vld [vmem:[%s165 + $0xaa] sm:$0xff]
      %v1315 = vld [vmem:[%s165 + $0xb2] sm:$0xff]
      %v1316 = vld [vmem:[%s165 + $0xba] sm:$0xff]
      %v1317 = vld [vmem:[%s165 + $0xc2] sm:$0xff]
      %v1318 = vld [vmem:[%s165 + $0xca] sm:$0xff]
      %v1319 = vld [vmem:[%s165 + $0xd2] sm:$0xff]
      %v1320 = vld [vmem:[%s165 + $0xda] sm:$0xff]
      %v1321 = vld [vmem:[%s165 + $0xe2] sm:$0xff]
      %v1322 = vld [vmem:[%s165 + $0xea] sm:$0xff]
      %v1323 = vld [vmem:[%s165 + $0xf2] sm:$0xff]
      %v1324 = vld [vmem:[%s165 + $0xfa] sm:$0xff]
      %v1325 = vld [vmem:[%s165 + $0x102] sm:$0xff]
      %v1326 = vld [vmem:[%s165 + $0x10a] sm:$0xff]
      %v1327 = vld [vmem:[%s165 + $0x112] sm:$0xff]
      %v1328 = vld [vmem:[%s165 + $0x11a] sm:$0xff]
      %v1329 = vld [vmem:[%s165 + $0x122] sm:$0xff]
      %v1330 = vld [vmem:[%s165 + $0x12a] sm:$0xff]
      %v1331 = vpack.c.bf16 %v1296, %v1295
      %v1332 = vpack.c.bf16 %v1298, %v1297
      %v1333 = vpack.c.bf16 %v1300, %v1299
      %v1334 = vpack.c.bf16 %v1302, %v1301
      %v1335 = vpack.c.bf16 %v1304, %v1303
      %v1336 = vpack.c.bf16 %v1306, %v1305
      %v1337 = vpack.c.bf16 %v1308, %v1307
      %v1338 = vpack.c.bf16 %v1310, %v1309
      %v1339 = vpack.c.bf16 %v1312, %v1311
      %v1340 = vpack.c.bf16 %v1314, %v1313
      %v1341 = vpack.c.bf16 %v1316, %v1315
      %v1342 = vpack.c.bf16 %v1318, %v1317
      %v1343 = vpack.c.bf16 %v1320, %v1319
      %v1344 = vpack.c.bf16 %v1322, %v1321
      %v1345 = vpack.c.bf16 %v1324, %v1323
      %v1346 = vpack.c.bf16 %v1326, %v1325
      %v1347 = vpack.c.bf16 %v1328, %v1327
      %v1348 = vpack.c.bf16 %v1330, %v1329
      %s1349 = scalar_lea.vmem %s1, 6
      %v1350 = vld [vmem:[%s1349] sm:$0x3]
      %v1352 = vsel %vm227, %v1331, 0
      %v1355 = vsel %vm227, %v1332, 0
      %v1358 = vsel %vm227, %v1333, 0
      %v1361 = vsel %vm227, %v1334, 0
      %v1364 = vsel %vm227, %v1335, 0
      %v1367 = vsel %vm227, %v1336, 0
      %v1370 = vsel %vm227, %v1337, 0
      %v1373 = vsel %vm227, %v1338, 0
      %v1376 = vsel %vm227, %v1339, 0
      %v1379 = vsel %vm227, %v1340, 0
      %v1382 = vsel %vm227, %v1341, 0
      %v1385 = vsel %vm227, %v1342, 0
      %v1388 = vsel %vm227, %v1343, 0
      %v1391 = vsel %vm227, %v1344, 0
      %v1394 = vsel %vm227, %v1345, 0
      %v1397 = vsel %vm227, %v1346, 0
      %v1400 = vsel %vm227, %v1347, 0
      %v1403 = vsel %vm227, %v1348, 0
      %v1406 = vsel %vm282, %v1350, 0
      %1408 = vmatprep.subr.bf16.mxu0 0
      %1409 = vmatpush1.bf16.msra.mxu0 0
      %1410 = vmatprep.subr.bf16.mxu0 0
      %1411 = vmatpush1.bf16.msra.mxu0 0
      %1412 = vmatprep.subr.bf16.mxu0 0
      %1413 = vmatpush1.bf16.msra.mxu0 0
      %1414 = vmatprep.subr.bf16.mxu0 0
      %1415 = vmatpush1.bf16.msra.mxu0 0
      %1416 = vmatprep.subr.bf16.mxu0 0
      %1417 = vmatpush1.bf16.msra.mxu0 0
      %1418 = vmatprep.subr.bf16.mxu0 0
      %1419 = vmatpush1.bf16.msra.mxu0 0
      %1420 = vmatprep.subr.bf16.mxu0 0
      %1421 = vmatpush1.bf16.msra.mxu0 0
      %1422 = vmatprep.subr.bf16.mxu0 0
      %1423 = vmatpush1.bf16.msra.mxu0 %v1406
      %1424 = vmatprep.subr.bf16.mxu0 0
      %1425 = vmatpush2.bf16.msra.mxu0 0
      %1426 = vmatprep.subr.bf16.mxu0 0
      %1427 = vmatpush2.bf16.msra.mxu0 0
      %1428 = vmatprep.subr.bf16.mxu0 0
      %1429 = vmatpush2.bf16.msra.mxu0 0
      %1430 = vmatprep.subr.bf16.mxu0 0
      %1431 = vmatpush2.bf16.msra.mxu0 0
      %1432 = vmatprep.subr.bf16.mxu0 0
      %1433 = vmatpush2.bf16.msra.mxu0 0
      %1434 = vmatprep.subr.bf16.mxu0 0
      %1435 = vmatpush2.bf16.msra.mxu0 0
      %1436 = vmatprep.subr.bf16.mxu0 0
      %1437 = vmatpush2.bf16.msra.mxu0 0
      %1438 = vmatprep.subr.bf16.mxu0 0
      %1439 = vmatpush2.bf16.msra.mxu0 0
      %1440 = vmatprep.mubr.bf16.mxu0 0
      %1441 = vmatmul.mubr.bf16.gmra.mxu0 %v1352
      %v1442 = vpop.f32.mrf.mxu0
      %v1443 = vadd.f32 0.0, %v1442
      %v1444 = vpop.f32.mrf.mxu0
      %v1445 = vpop.f32.mrf.mxu0
      %v1446 = vadd.f32 0.0, %v1445
      %v1447 = vpop.f32.mrf.mxu0
      %1448 = vmatprep.mubr.bf16.mxu0 0
      %1449 = vmatmul.mubr.bf16.gmra.mxu0 %v1355
      %v1450 = vpop.f32.mrf.mxu0
      %v1451 = vadd.f32 0.0, %v1450
      %v1452 = vpop.f32.mrf.mxu0
      %v1453 = vpop.f32.mrf.mxu0
      %v1454 = vadd.f32 0.0, %v1453
      %v1455 = vpop.f32.mrf.mxu0
      %1456 = vmatprep.mubr.bf16.mxu0 0
      %1457 = vmatmul.mubr.bf16.gmra.mxu0 %v1358
      %v1458 = vpop.f32.mrf.mxu0
      %v1459 = vadd.f32 0.0, %v1458
      %v1460 = vpop.f32.mrf.mxu0
      %v1461 = vpop.f32.mrf.mxu0
      %v1462 = vadd.f32 0.0, %v1461
      %v1463 = vpop.f32.mrf.mxu0
      %1464 = vmatprep.mubr.bf16.mxu0 0
      %1465 = vmatmul.mubr.bf16.gmra.mxu0 %v1361
      %v1466 = vpop.f32.mrf.mxu0
      %v1467 = vadd.f32 0.0, %v1466
      %v1468 = vpop.f32.mrf.mxu0
      %v1469 = vpop.f32.mrf.mxu0
      %v1470 = vadd.f32 0.0, %v1469
      %v1471 = vpop.f32.mrf.mxu0
      %1472 = vmatprep.mubr.bf16.mxu0 0
      %1473 = vmatmul.mubr.bf16.gmra.mxu0 %v1364
      %v1474 = vpop.f32.mrf.mxu0
      %v1475 = vadd.f32 0.0, %v1474
      %v1476 = vpop.f32.mrf.mxu0
      %v1477 = vpop.f32.mrf.mxu0
      %v1478 = vadd.f32 0.0, %v1477
      %v1479 = vpop.f32.mrf.mxu0
      %1480 = vmatprep.mubr.bf16.mxu0 0
      %1481 = vmatmul.mubr.bf16.gmra.mxu0 %v1367
      %v1482 = vpop.f32.mrf.mxu0
      %v1483 = vadd.f32 0.0, %v1482
      %v1484 = vpop.f32.mrf.mxu0
      %v1485 = vpop.f32.mrf.mxu0
      %v1486 = vadd.f32 0.0, %v1485
      %v1487 = vpop.f32.mrf.mxu0
      %1488 = vmatprep.mubr.bf16.mxu0 0
      %1489 = vmatmul.mubr.bf16.gmra.mxu0 %v1370
      %v1490 = vpop.f32.mrf.mxu0
      %v1491 = vadd.f32 0.0, %v1490
      %v1492 = vpop.f32.mrf.mxu0
      %v1493 = vpop.f32.mrf.mxu0
      %v1494 = vadd.f32 0.0, %v1493
      %v1495 = vpop.f32.mrf.mxu0
      %1496 = vmatprep.mubr.bf16.mxu0 0
      %1497 = vmatmul.mubr.bf16.gmra.mxu0 %v1373
      %v1498 = vpop.f32.mrf.mxu0
      %v1499 = vadd.f32 0.0, %v1498
      %v1500 = vpop.f32.mrf.mxu0
      %v1501 = vpop.f32.mrf.mxu0
      %v1502 = vadd.f32 0.0, %v1501
      %v1503 = vpop.f32.mrf.mxu0
      %1504 = vmatprep.mubr.bf16.mxu0 0
      %1505 = vmatmul.mubr.bf16.gmra.mxu0 %v1376
      %v1506 = vpop.f32.mrf.mxu0
      %v1507 = vadd.f32 0.0, %v1506
      %v1508 = vpop.f32.mrf.mxu0
      %v1509 = vpop.f32.mrf.mxu0
      %v1510 = vadd.f32 0.0, %v1509
      %v1511 = vpop.f32.mrf.mxu0
      %1512 = vmatprep.mubr.bf16.mxu0 0
      %1513 = vmatmul.mubr.bf16.gmra.mxu0 %v1379
      %v1514 = vpop.f32.mrf.mxu0
      %v1515 = vadd.f32 0.0, %v1514
      %v1516 = vpop.f32.mrf.mxu0
      %v1517 = vpop.f32.mrf.mxu0
      %v1518 = vadd.f32 0.0, %v1517
      %v1519 = vpop.f32.mrf.mxu0
      %1520 = vmatprep.mubr.bf16.mxu0 0
      %1521 = vmatmul.mubr.bf16.gmra.mxu0 %v1382
      %v1522 = vpop.f32.mrf.mxu0
      %v1523 = vadd.f32 0.0, %v1522
      %v1524 = vpop.f32.mrf.mxu0
      %v1525 = vpop.f32.mrf.mxu0
      %v1526 = vadd.f32 0.0, %v1525
      %v1527 = vpop.f32.mrf.mxu0
      %1528 = vmatprep.mubr.bf16.mxu0 0
      %1529 = vmatmul.mubr.bf16.gmra.mxu0 %v1385
      %v1530 = vpop.f32.mrf.mxu0
      %v1531 = vadd.f32 0.0, %v1530
      %v1532 = vpop.f32.mrf.mxu0
      %v1533 = vpop.f32.mrf.mxu0
      %v1534 = vadd.f32 0.0, %v1533
      %v1535 = vpop.f32.mrf.mxu0
      %1536 = vmatprep.mubr.bf16.mxu0 0
      %1537 = vmatmul.mubr.bf16.gmra.mxu0 %v1388
      %v1538 = vpop.f32.mrf.mxu0
      %v1539 = vadd.f32 0.0, %v1538
      %v1540 = vpop.f32.mrf.mxu0
      %v1541 = vpop.f32.mrf.mxu0
      %v1542 = vadd.f32 0.0, %v1541
      %v1543 = vpop.f32.mrf.mxu0
      %1544 = vmatprep.mubr.bf16.mxu0 0
      %1545 = vmatmul.mubr.bf16.gmra.mxu0 %v1391
      %v1546 = vpop.f32.mrf.mxu0
      %v1547 = vadd.f32 0.0, %v1546
      %v1548 = vpop.f32.mrf.mxu0
      %v1549 = vpop.f32.mrf.mxu0
      %v1550 = vadd.f32 0.0, %v1549
      %v1551 = vpop.f32.mrf.mxu0
      %1552 = vmatprep.mubr.bf16.mxu0 0
      %1553 = vmatmul.mubr.bf16.gmra.mxu0 %v1394
      %v1554 = vpop.f32.mrf.mxu0
      %v1555 = vadd.f32 0.0, %v1554
      %v1556 = vpop.f32.mrf.mxu0
      %v1557 = vpop.f32.mrf.mxu0
      %v1558 = vadd.f32 0.0, %v1557
      %v1559 = vpop.f32.mrf.mxu0
      %1560 = vmatprep.mubr.bf16.mxu0 0
      %1561 = vmatmul.mubr.bf16.gmra.mxu0 %v1397
      %v1562 = vpop.f32.mrf.mxu0
      %v1563 = vadd.f32 0.0, %v1562
      %v1564 = vpop.f32.mrf.mxu0
      %v1565 = vpop.f32.mrf.mxu0
      %v1566 = vadd.f32 0.0, %v1565
      %v1567 = vpop.f32.mrf.mxu0
      %1568 = vmatprep.mubr.bf16.mxu0 0
      %1569 = vmatmul.mubr.bf16.gmra.mxu0 %v1400
      %v1570 = vpop.f32.mrf.mxu0
      %v1571 = vadd.f32 0.0, %v1570
      %v1572 = vpop.f32.mrf.mxu0
      %v1573 = vpop.f32.mrf.mxu0
      %v1574 = vadd.f32 0.0, %v1573
      %v1575 = vpop.f32.mrf.mxu0
      %1576 = vmatprep.mubr.bf16.mxu0 0
      %1577 = vmatmul.mubr.bf16.gmra.mxu0 %v1403
      %v1578 = vpop.f32.mrf.mxu0
      %v1579 = vadd.f32 0.0, %v1578
      %v1580 = vpop.f32.mrf.mxu0
      %v1581 = vpop.f32.mrf.mxu0
      %v1582 = vadd.f32 0.0, %v1581
      %v1583 = vpop.f32.mrf.mxu0
      %1584 = vdwg.mxu0
      %v1585 = vld [vmem:[#allocation2] sm:$0xff]
      %v1586 = vld [vmem:[#allocation2 + $0x8] sm:$0xff]
      %v1587 = vld [vmem:[#allocation2 + $0x10] sm:$0xff]
      %v1588 = vld [vmem:[#allocation2 + $0x18] sm:$0xff]
      %v1589 = vld [vmem:[#allocation2 + $0x20] sm:$0xff]
      %v1590 = vld [vmem:[#allocation2 + $0x28] sm:$0xff]
      %v1591 = vld [vmem:[#allocation2 + $0x30] sm:$0xff]
      %v1592 = vld [vmem:[#allocation2 + $0x38] sm:$0xff]
      %v1593 = vld [vmem:[#allocation2 + $0x40] sm:$0xff]
      %v1594 = vld [vmem:[#allocation2 + $0x48] sm:$0xff]
      %v1595 = vld [vmem:[#allocation2 + $0x50] sm:$0xff]
      %v1596 = vld [vmem:[#allocation2 + $0x58] sm:$0xff]
      %v1597 = vld [vmem:[#allocation2 + $0x60] sm:$0xff]
      %v1598 = vld [vmem:[#allocation2 + $0x68] sm:$0xff]
      %v1599 = vld [vmem:[#allocation2 + $0x70] sm:$0xff]
      %v1600 = vld [vmem:[#allocation2 + $0x78] sm:$0xff]
      %v1601 = vld [vmem:[#allocation2 + $0x80] sm:$0xff]
      %v1602 = vld [vmem:[#allocation2 + $0x88] sm:$0xff]
      %v1603 = vld [vmem:[#allocation2 + $0x90] sm:$0xff]
      %v1604 = vld [vmem:[#allocation2 + $0x98] sm:$0xff]
      %v1605 = vld [vmem:[#allocation2 + $0xa0] sm:$0xff]
      %v1606 = vld [vmem:[#allocation2 + $0xa8] sm:$0xff]
      %v1607 = vld [vmem:[#allocation2 + $0xb0] sm:$0xff]
      %v1608 = vld [vmem:[#allocation2 + $0xb8] sm:$0xff]
      %v1609 = vld [vmem:[#allocation2 + $0xc0] sm:$0xff]
      %v1610 = vld [vmem:[#allocation2 + $0xc8] sm:$0xff]
      %v1611 = vld [vmem:[#allocation2 + $0xd0] sm:$0xff]
      %v1612 = vld [vmem:[#allocation2 + $0xd8] sm:$0xff]
      %v1613 = vld [vmem:[#allocation2 + $0xe0] sm:$0xff]
      %v1614 = vld [vmem:[#allocation2 + $0xe8] sm:$0xff]
      %v1615 = vld [vmem:[#allocation2 + $0xf0] sm:$0xff]
      %v1616 = vld [vmem:[#allocation2 + $0xf8] sm:$0xff]
      %v1617 = vld [vmem:[#allocation2 + $0x100] sm:$0xff]
      %v1618 = vld [vmem:[#allocation2 + $0x108] sm:$0xff]
      %v1619 = vld [vmem:[#allocation2 + $0x110] sm:$0xff]
      %v1620 = vld [vmem:[#allocation2 + $0x118] sm:$0xff]
      %v1621 = vadd.f32 %v1585, %v1443
      %v1622 = vadd.f32 %v1586, %v1446
      %v1623 = vadd.f32 %v1587, %v1451
      %v1624 = vadd.f32 %v1588, %v1454
      %v1625 = vadd.f32 %v1589, %v1459
      %v1626 = vadd.f32 %v1590, %v1462
      %v1627 = vadd.f32 %v1591, %v1467
      %v1628 = vadd.f32 %v1592, %v1470
      %v1629 = vadd.f32 %v1593, %v1475
      %v1630 = vadd.f32 %v1594, %v1478
      %v1631 = vadd.f32 %v1595, %v1483
      %v1632 = vadd.f32 %v1596, %v1486
      %v1633 = vadd.f32 %v1597, %v1491
      %v1634 = vadd.f32 %v1598, %v1494
      %v1635 = vadd.f32 %v1599, %v1499
      %v1636 = vadd.f32 %v1600, %v1502
      %v1637 = vadd.f32 %v1601, %v1507
      %v1638 = vadd.f32 %v1602, %v1510
      %v1639 = vadd.f32 %v1603, %v1515
      %v1640 = vadd.f32 %v1604, %v1518
      %v1641 = vadd.f32 %v1605, %v1523
      %v1642 = vadd.f32 %v1606, %v1526
      %v1643 = vadd.f32 %v1607, %v1531
      %v1644 = vadd.f32 %v1608, %v1534
      %v1645 = vadd.f32 %v1609, %v1539
      %v1646 = vadd.f32 %v1610, %v1542
      %v1647 = vadd.f32 %v1611, %v1547
      %v1648 = vadd.f32 %v1612, %v1550
      %v1649 = vadd.f32 %v1613, %v1555
      %v1650 = vadd.f32 %v1614, %v1558
      %v1651 = vadd.f32 %v1615, %v1563
      %v1652 = vadd.f32 %v1616, %v1566
      %v1653 = vadd.f32 %v1617, %v1571
      %v1654 = vadd.f32 %v1618, %v1574
      %v1655 = vadd.f32 %v1619, %v1579
      %v1656 = vadd.f32 %v1620, %v1582
      %1657 = vst [vmem:[#allocation2] sm:$0xff] %v1621
      %1658 = vst [vmem:[#allocation2 + $0x8] sm:$0xff] %v1622
      %1659 = vst [vmem:[#allocation2 + $0x10] sm:$0xff] %v1623
      %1660 = vst [vmem:[#allocation2 + $0x18] sm:$0xff] %v1624
      %1661 = vst [vmem:[#allocation2 + $0x20] sm:$0xff] %v1625
      %1662 = vst [vmem:[#allocation2 + $0x28] sm:$0xff] %v1626
      %1663 = vst [vmem:[#allocation2 + $0x30] sm:$0xff] %v1627
      %1664 = vst [vmem:[#allocation2 + $0x38] sm:$0xff] %v1628
      %1665 = vst [vmem:[#allocation2 + $0x40] sm:$0xff] %v1629
      %1666 = vst [vmem:[#allocation2 + $0x48] sm:$0xff] %v1630
      %1667 = vst [vmem:[#allocation2 + $0x50] sm:$0xff] %v1631
      %1668 = vst [vmem:[#allocation2 + $0x58] sm:$0xff] %v1632
      %1669 = vst [vmem:[#allocation2 + $0x60] sm:$0xff] %v1633
      %1670 = vst [vmem:[#allocation2 + $0x68] sm:$0xff] %v1634
      %1671 = vst [vmem:[#allocation2 + $0x70] sm:$0xff] %v1635
      %1672 = vst [vmem:[#allocation2 + $0x78] sm:$0xff] %v1636
      %1673 = vst [vmem:[#allocation2 + $0x80] sm:$0xff] %v1637
      %1674 = vst [vmem:[#allocation2 + $0x88] sm:$0xff] %v1638
      %1675 = vst [vmem:[#allocation2 + $0x90] sm:$0xff] %v1639
      %1676 = vst [vmem:[#allocation2 + $0x98] sm:$0xff] %v1640
      %1677 = vst [vmem:[#allocation2 + $0xa0] sm:$0xff] %v1641
      %1678 = vst [vmem:[#allocation2 + $0xa8] sm:$0xff] %v1642
      %1679 = vst [vmem:[#allocation2 + $0xb0] sm:$0xff] %v1643
      %1680 = vst [vmem:[#allocation2 + $0xb8] sm:$0xff] %v1644
      %1681 = vst [vmem:[#allocation2 + $0xc0] sm:$0xff] %v1645
      %1682 = vst [vmem:[#allocation2 + $0xc8] sm:$0xff] %v1646
      %1683 = vst [vmem:[#allocation2 + $0xd0] sm:$0xff] %v1647
      %1684 = vst [vmem:[#allocation2 + $0xd8] sm:$0xff] %v1648
      %1685 = vst [vmem:[#allocation2 + $0xe0] sm:$0xff] %v1649
      %1686 = vst [vmem:[#allocation2 + $0xe8] sm:$0xff] %v1650
      %1687 = vst [vmem:[#allocation2 + $0xf0] sm:$0xff] %v1651
      %1688 = vst [vmem:[#allocation2 + $0xf8] sm:$0xff] %v1652
      %1689 = vst [vmem:[#allocation2 + $0x100] sm:$0xff] %v1653
      %1690 = vst [vmem:[#allocation2 + $0x108] sm:$0xff] %v1654
      %1691 = vst [vmem:[#allocation2 + $0x110] sm:$0xff] %v1655
      %1692 = vst [vmem:[#allocation2 + $0x118] sm:$0xff] %v1656
      %v1693 = vld [vmem:[%s165 + $0x13] sm:$0xff]
      %v1694 = vld [vmem:[%s165 + $0x1b] sm:$0xff]
      %v1695 = vld [vmem:[%s165 + $0x23] sm:$0xff]
      %v1696 = vld [vmem:[%s165 + $0x2b] sm:$0xff]
      %v1697 = vld [vmem:[%s165 + $0x33] sm:$0xff]
      %v1698 = vld [vmem:[%s165 + $0x3b] sm:$0xff]
      %v1699 = vld [vmem:[%s165 + $0x43] sm:$0xff]
      %v1700 = vld [vmem:[%s165 + $0x4b] sm:$0xff]
      %v1701 = vld [vmem:[%s165 + $0x53] sm:$0xff]
      %v1702 = vld [vmem:[%s165 + $0x5b] sm:$0xff]
      %v1703 = vld [vmem:[%s165 + $0x63] sm:$0xff]
      %v1704 = vld [vmem:[%s165 + $0x6b] sm:$0xff]
      %v1705 = vld [vmem:[%s165 + $0x73] sm:$0xff]
      %v1706 = vld [vmem:[%s165 + $0x7b] sm:$0xff]
      %v1707 = vld [vmem:[%s165 + $0x83] sm:$0xff]
      %v1708 = vld [vmem:[%s165 + $0x8b] sm:$0xff]
      %v1709 = vld [vmem:[%s165 + $0x93] sm:$0xff]
      %v1710 = vld [vmem:[%s165 + $0x9b] sm:$0xff]
      %v1711 = vld [vmem:[%s165 + $0xa3] sm:$0xff]
      %v1712 = vld [vmem:[%s165 + $0xab] sm:$0xff]
      %v1713 = vld [vmem:[%s165 + $0xb3] sm:$0xff]
      %v1714 = vld [vmem:[%s165 + $0xbb] sm:$0xff]
      %v1715 = vld [vmem:[%s165 + $0xc3] sm:$0xff]
      %v1716 = vld [vmem:[%s165 + $0xcb] sm:$0xff]
      %v1717 = vld [vmem:[%s165 + $0xd3] sm:$0xff]
      %v1718 = vld [vmem:[%s165 + $0xdb] sm:$0xff]
      %v1719 = vld [vmem:[%s165 + $0xe3] sm:$0xff]
      %v1720 = vld [vmem:[%s165 + $0xeb] sm:$0xff]
      %v1721 = vld [vmem:[%s165 + $0xf3] sm:$0xff]
      %v1722 = vld [vmem:[%s165 + $0xfb] sm:$0xff]
      %v1723 = vld [vmem:[%s165 + $0x103] sm:$0xff]
      %v1724 = vld [vmem:[%s165 + $0x10b] sm:$0xff]
      %v1725 = vld [vmem:[%s165 + $0x113] sm:$0xff]
      %v1726 = vld [vmem:[%s165 + $0x11b] sm:$0xff]
      %v1727 = vld [vmem:[%s165 + $0x123] sm:$0xff]
      %v1728 = vld [vmem:[%s165 + $0x12b] sm:$0xff]
      %v1729 = vpack.c.bf16 %v1694, %v1693
      %v1730 = vpack.c.bf16 %v1696, %v1695
      %v1731 = vpack.c.bf16 %v1698, %v1697
      %v1732 = vpack.c.bf16 %v1700, %v1699
      %v1733 = vpack.c.bf16 %v1702, %v1701
      %v1734 = vpack.c.bf16 %v1704, %v1703
      %v1735 = vpack.c.bf16 %v1706, %v1705
      %v1736 = vpack.c.bf16 %v1708, %v1707
      %v1737 = vpack.c.bf16 %v1710, %v1709
      %v1738 = vpack.c.bf16 %v1712, %v1711
      %v1739 = vpack.c.bf16 %v1714, %v1713
      %v1740 = vpack.c.bf16 %v1716, %v1715
      %v1741 = vpack.c.bf16 %v1718, %v1717
      %v1742 = vpack.c.bf16 %v1720, %v1719
      %v1743 = vpack.c.bf16 %v1722, %v1721
      %v1744 = vpack.c.bf16 %v1724, %v1723
      %v1745 = vpack.c.bf16 %v1726, %v1725
      %v1746 = vpack.c.bf16 %v1728, %v1727
      %s1747 = scalar_lea.vmem %s1, 8
      %v1748 = vld [vmem:[%s1747] sm:$0x3]
      %v1750 = vsel %vm227, %v1729, 0
      %v1753 = vsel %vm227, %v1730, 0
      %v1756 = vsel %vm227, %v1731, 0
      %v1759 = vsel %vm227, %v1732, 0
      %v1762 = vsel %vm227, %v1733, 0
      %v1765 = vsel %vm227, %v1734, 0
      %v1768 = vsel %vm227, %v1735, 0
      %v1771 = vsel %vm227, %v1736, 0
      %v1774 = vsel %vm227, %v1737, 0
      %v1777 = vsel %vm227, %v1738, 0
      %v1780 = vsel %vm227, %v1739, 0
      %v1783 = vsel %vm227, %v1740, 0
      %v1786 = vsel %vm227, %v1741, 0
      %v1789 = vsel %vm227, %v1742, 0
      %v1792 = vsel %vm227, %v1743, 0
      %v1795 = vsel %vm227, %v1744, 0
      %v1798 = vsel %vm227, %v1745, 0
      %v1801 = vsel %vm227, %v1746, 0
      %v1804 = vsel %vm282, %v1748, 0
      %1806 = vmatprep.subr.bf16.mxu0 0
      %1807 = vmatpush1.bf16.msra.mxu0 0
      %1808 = vmatprep.subr.bf16.mxu0 0
      %1809 = vmatpush1.bf16.msra.mxu0 0
      %1810 = vmatprep.subr.bf16.mxu0 0
      %1811 = vmatpush1.bf16.msra.mxu0 0
      %1812 = vmatprep.subr.bf16.mxu0 0
      %1813 = vmatpush1.bf16.msra.mxu0 0
      %1814 = vmatprep.subr.bf16.mxu0 0
      %1815 = vmatpush1.bf16.msra.mxu0 0
      %1816 = vmatprep.subr.bf16.mxu0 0
      %1817 = vmatpush1.bf16.msra.mxu0 0
      %1818 = vmatprep.subr.bf16.mxu0 0
      %1819 = vmatpush1.bf16.msra.mxu0 0
      %1820 = vmatprep.subr.bf16.mxu0 0
      %1821 = vmatpush1.bf16.msra.mxu0 %v1804
      %1822 = vmatprep.subr.bf16.mxu0 0
      %1823 = vmatpush2.bf16.msra.mxu0 0
      %1824 = vmatprep.subr.bf16.mxu0 0
      %1825 = vmatpush2.bf16.msra.mxu0 0
      %1826 = vmatprep.subr.bf16.mxu0 0
      %1827 = vmatpush2.bf16.msra.mxu0 0
      %1828 = vmatprep.subr.bf16.mxu0 0
      %1829 = vmatpush2.bf16.msra.mxu0 0
      %1830 = vmatprep.subr.bf16.mxu0 0
      %1831 = vmatpush2.bf16.msra.mxu0 0
      %1832 = vmatprep.subr.bf16.mxu0 0
      %1833 = vmatpush2.bf16.msra.mxu0 0
      %1834 = vmatprep.subr.bf16.mxu0 0
      %1835 = vmatpush2.bf16.msra.mxu0 0
      %1836 = vmatprep.subr.bf16.mxu0 0
      %1837 = vmatpush2.bf16.msra.mxu0 0
      %1838 = vmatprep.mubr.bf16.mxu0 0
      %1839 = vmatmul.mubr.bf16.gmra.mxu0 %v1750
      %v1840 = vpop.f32.mrf.mxu0
      %v1841 = vadd.f32 0.0, %v1840
      %v1842 = vpop.f32.mrf.mxu0
      %v1843 = vpop.f32.mrf.mxu0
      %v1844 = vadd.f32 0.0, %v1843
      %v1845 = vpop.f32.mrf.mxu0
      %1846 = vmatprep.mubr.bf16.mxu0 0
      %1847 = vmatmul.mubr.bf16.gmra.mxu0 %v1753
      %v1848 = vpop.f32.mrf.mxu0
      %v1849 = vadd.f32 0.0, %v1848
      %v1850 = vpop.f32.mrf.mxu0
      %v1851 = vpop.f32.mrf.mxu0
      %v1852 = vadd.f32 0.0, %v1851
      %v1853 = vpop.f32.mrf.mxu0
      %1854 = vmatprep.mubr.bf16.mxu0 0
      %1855 = vmatmul.mubr.bf16.gmra.mxu0 %v1756
      %v1856 = vpop.f32.mrf.mxu0
      %v1857 = vadd.f32 0.0, %v1856
      %v1858 = vpop.f32.mrf.mxu0
      %v1859 = vpop.f32.mrf.mxu0
      %v1860 = vadd.f32 0.0, %v1859
      %v1861 = vpop.f32.mrf.mxu0
      %1862 = vmatprep.mubr.bf16.mxu0 0
      %1863 = vmatmul.mubr.bf16.gmra.mxu0 %v1759
      %v1864 = vpop.f32.mrf.mxu0
      %v1865 = vadd.f32 0.0, %v1864
      %v1866 = vpop.f32.mrf.mxu0
      %v1867 = vpop.f32.mrf.mxu0
      %v1868 = vadd.f32 0.0, %v1867
      %v1869 = vpop.f32.mrf.mxu0
      %1870 = vmatprep.mubr.bf16.mxu0 0
      %1871 = vmatmul.mubr.bf16.gmra.mxu0 %v1762
      %v1872 = vpop.f32.mrf.mxu0
      %v1873 = vadd.f32 0.0, %v1872
      %v1874 = vpop.f32.mrf.mxu0
      %v1875 = vpop.f32.mrf.mxu0
      %v1876 = vadd.f32 0.0, %v1875
      %v1877 = vpop.f32.mrf.mxu0
      %1878 = vmatprep.mubr.bf16.mxu0 0
      %1879 = vmatmul.mubr.bf16.gmra.mxu0 %v1765
      %v1880 = vpop.f32.mrf.mxu0
      %v1881 = vadd.f32 0.0, %v1880
      %v1882 = vpop.f32.mrf.mxu0
      %v1883 = vpop.f32.mrf.mxu0
      %v1884 = vadd.f32 0.0, %v1883
      %v1885 = vpop.f32.mrf.mxu0
      %1886 = vmatprep.mubr.bf16.mxu0 0
      %1887 = vmatmul.mubr.bf16.gmra.mxu0 %v1768
      %v1888 = vpop.f32.mrf.mxu0
      %v1889 = vadd.f32 0.0, %v1888
      %v1890 = vpop.f32.mrf.mxu0
      %v1891 = vpop.f32.mrf.mxu0
      %v1892 = vadd.f32 0.0, %v1891
      %v1893 = vpop.f32.mrf.mxu0
      %1894 = vmatprep.mubr.bf16.mxu0 0
      %1895 = vmatmul.mubr.bf16.gmra.mxu0 %v1771
      %v1896 = vpop.f32.mrf.mxu0
      %v1897 = vadd.f32 0.0, %v1896
      %v1898 = vpop.f32.mrf.mxu0
      %v1899 = vpop.f32.mrf.mxu0
      %v1900 = vadd.f32 0.0, %v1899
      %v1901 = vpop.f32.mrf.mxu0
      %1902 = vmatprep.mubr.bf16.mxu0 0
      %1903 = vmatmul.mubr.bf16.gmra.mxu0 %v1774
      %v1904 = vpop.f32.mrf.mxu0
      %v1905 = vadd.f32 0.0, %v1904
      %v1906 = vpop.f32.mrf.mxu0
      %v1907 = vpop.f32.mrf.mxu0
      %v1908 = vadd.f32 0.0, %v1907
      %v1909 = vpop.f32.mrf.mxu0
      %1910 = vmatprep.mubr.bf16.mxu0 0
      %1911 = vmatmul.mubr.bf16.gmra.mxu0 %v1777
      %v1912 = vpop.f32.mrf.mxu0
      %v1913 = vadd.f32 0.0, %v1912
      %v1914 = vpop.f32.mrf.mxu0
      %v1915 = vpop.f32.mrf.mxu0
      %v1916 = vadd.f32 0.0, %v1915
      %v1917 = vpop.f32.mrf.mxu0
      %1918 = vmatprep.mubr.bf16.mxu0 0
      %1919 = vmatmul.mubr.bf16.gmra.mxu0 %v1780
      %v1920 = vpop.f32.mrf.mxu0
      %v1921 = vadd.f32 0.0, %v1920
      %v1922 = vpop.f32.mrf.mxu0
      %v1923 = vpop.f32.mrf.mxu0
      %v1924 = vadd.f32 0.0, %v1923
      %v1925 = vpop.f32.mrf.mxu0
      %1926 = vmatprep.mubr.bf16.mxu0 0
      %1927 = vmatmul.mubr.bf16.gmra.mxu0 %v1783
      %v1928 = vpop.f32.mrf.mxu0
      %v1929 = vadd.f32 0.0, %v1928
      %v1930 = vpop.f32.mrf.mxu0
      %v1931 = vpop.f32.mrf.mxu0
      %v1932 = vadd.f32 0.0, %v1931
      %v1933 = vpop.f32.mrf.mxu0
      %1934 = vmatprep.mubr.bf16.mxu0 0
      %1935 = vmatmul.mubr.bf16.gmra.mxu0 %v1786
      %v1936 = vpop.f32.mrf.mxu0
      %v1937 = vadd.f32 0.0, %v1936
      %v1938 = vpop.f32.mrf.mxu0
      %v1939 = vpop.f32.mrf.mxu0
      %v1940 = vadd.f32 0.0, %v1939
      %v1941 = vpop.f32.mrf.mxu0
      %1942 = vmatprep.mubr.bf16.mxu0 0
      %1943 = vmatmul.mubr.bf16.gmra.mxu0 %v1789
      %v1944 = vpop.f32.mrf.mxu0
      %v1945 = vadd.f32 0.0, %v1944
      %v1946 = vpop.f32.mrf.mxu0
      %v1947 = vpop.f32.mrf.mxu0
      %v1948 = vadd.f32 0.0, %v1947
      %v1949 = vpop.f32.mrf.mxu0
      %1950 = vmatprep.mubr.bf16.mxu0 0
      %1951 = vmatmul.mubr.bf16.gmra.mxu0 %v1792
      %v1952 = vpop.f32.mrf.mxu0
      %v1953 = vadd.f32 0.0, %v1952
      %v1954 = vpop.f32.mrf.mxu0
      %v1955 = vpop.f32.mrf.mxu0
      %v1956 = vadd.f32 0.0, %v1955
      %v1957 = vpop.f32.mrf.mxu0
      %1958 = vmatprep.mubr.bf16.mxu0 0
      %1959 = vmatmul.mubr.bf16.gmra.mxu0 %v1795
      %v1960 = vpop.f32.mrf.mxu0
      %v1961 = vadd.f32 0.0, %v1960
      %v1962 = vpop.f32.mrf.mxu0
      %v1963 = vpop.f32.mrf.mxu0
      %v1964 = vadd.f32 0.0, %v1963
      %v1965 = vpop.f32.mrf.mxu0
      %1966 = vmatprep.mubr.bf16.mxu0 0
      %1967 = vmatmul.mubr.bf16.gmra.mxu0 %v1798
      %v1968 = vpop.f32.mrf.mxu0
      %v1969 = vadd.f32 0.0, %v1968
      %v1970 = vpop.f32.mrf.mxu0
      %v1971 = vpop.f32.mrf.mxu0
      %v1972 = vadd.f32 0.0, %v1971
      %v1973 = vpop.f32.mrf.mxu0
      %1974 = vmatprep.mubr.bf16.mxu0 0
      %1975 = vmatmul.mubr.bf16.gmra.mxu0 %v1801
      %v1976 = vpop.f32.mrf.mxu0
      %v1977 = vadd.f32 0.0, %v1976
      %v1978 = vpop.f32.mrf.mxu0
      %v1979 = vpop.f32.mrf.mxu0
      %v1980 = vadd.f32 0.0, %v1979
      %v1981 = vpop.f32.mrf.mxu0
      %1982 = vdwg.mxu0
      %v1983 = vld [vmem:[#allocation2] sm:$0xff]
      %v1984 = vld [vmem:[#allocation2 + $0x8] sm:$0xff]
      %v1985 = vld [vmem:[#allocation2 + $0x10] sm:$0xff]
      %v1986 = vld [vmem:[#allocation2 + $0x18] sm:$0xff]
      %v1987 = vld [vmem:[#allocation2 + $0x20] sm:$0xff]
      %v1988 = vld [vmem:[#allocation2 + $0x28] sm:$0xff]
      %v1989 = vld [vmem:[#allocation2 + $0x30] sm:$0xff]
      %v1990 = vld [vmem:[#allocation2 + $0x38] sm:$0xff]
      %v1991 = vld [vmem:[#allocation2 + $0x40] sm:$0xff]
      %v1992 = vld [vmem:[#allocation2 + $0x48] sm:$0xff]
      %v1993 = vld [vmem:[#allocation2 + $0x50] sm:$0xff]
      %v1994 = vld [vmem:[#allocation2 + $0x58] sm:$0xff]
      %v1995 = vld [vmem:[#allocation2 + $0x60] sm:$0xff]
      %v1996 = vld [vmem:[#allocation2 + $0x68] sm:$0xff]
      %v1997 = vld [vmem:[#allocation2 + $0x70] sm:$0xff]
      %v1998 = vld [vmem:[#allocation2 + $0x78] sm:$0xff]
      %v1999 = vld [vmem:[#allocation2 + $0x80] sm:$0xff]
      %v2000 = vld [vmem:[#allocation2 + $0x88] sm:$0xff]
      %v2001 = vld [vmem:[#allocation2 + $0x90] sm:$0xff]
      %v2002 = vld [vmem:[#allocation2 + $0x98] sm:$0xff]
      %v2003 = vld [vmem:[#allocation2 + $0xa0] sm:$0xff]
      %v2004 = vld [vmem:[#allocation2 + $0xa8] sm:$0xff]
      %v2005 = vld [vmem:[#allocation2 + $0xb0] sm:$0xff]
      %v2006 = vld [vmem:[#allocation2 + $0xb8] sm:$0xff]
      %v2007 = vld [vmem:[#allocation2 + $0xc0] sm:$0xff]
      %v2008 = vld [vmem:[#allocation2 + $0xc8] sm:$0xff]
      %v2009 = vld [vmem:[#allocation2 + $0xd0] sm:$0xff]
      %v2010 = vld [vmem:[#allocation2 + $0xd8] sm:$0xff]
      %v2011 = vld [vmem:[#allocation2 + $0xe0] sm:$0xff]
      %v2012 = vld [vmem:[#allocation2 + $0xe8] sm:$0xff]
      %v2013 = vld [vmem:[#allocation2 + $0xf0] sm:$0xff]
      %v2014 = vld [vmem:[#allocation2 + $0xf8] sm:$0xff]
      %v2015 = vld [vmem:[#allocation2 + $0x100] sm:$0xff]
      %v2016 = vld [vmem:[#allocation2 + $0x108] sm:$0xff]
      %v2017 = vld [vmem:[#allocation2 + $0x110] sm:$0xff]
      %v2018 = vld [vmem:[#allocation2 + $0x118] sm:$0xff]
      %v2019 = vadd.f32 %v1983, %v1841
      %v2020 = vadd.f32 %v1984, %v1844
      %v2021 = vadd.f32 %v1985, %v1849
      %v2022 = vadd.f32 %v1986, %v1852
      %v2023 = vadd.f32 %v1987, %v1857
      %v2024 = vadd.f32 %v1988, %v1860
      %v2025 = vadd.f32 %v1989, %v1865
      %v2026 = vadd.f32 %v1990, %v1868
      %v2027 = vadd.f32 %v1991, %v1873
      %v2028 = vadd.f32 %v1992, %v1876
      %v2029 = vadd.f32 %v1993, %v1881
      %v2030 = vadd.f32 %v1994, %v1884
      %v2031 = vadd.f32 %v1995, %v1889
      %v2032 = vadd.f32 %v1996, %v1892
      %v2033 = vadd.f32 %v1997, %v1897
      %v2034 = vadd.f32 %v1998, %v1900
      %v2035 = vadd.f32 %v1999, %v1905
      %v2036 = vadd.f32 %v2000, %v1908
      %v2037 = vadd.f32 %v2001, %v1913
      %v2038 = vadd.f32 %v2002, %v1916
      %v2039 = vadd.f32 %v2003, %v1921
      %v2040 = vadd.f32 %v2004, %v1924
      %v2041 = vadd.f32 %v2005, %v1929
      %v2042 = vadd.f32 %v2006, %v1932
      %v2043 = vadd.f32 %v2007, %v1937
      %v2044 = vadd.f32 %v2008, %v1940
      %v2045 = vadd.f32 %v2009, %v1945
      %v2046 = vadd.f32 %v2010, %v1948
      %v2047 = vadd.f32 %v2011, %v1953
      %v2048 = vadd.f32 %v2012, %v1956
      %v2049 = vadd.f32 %v2013, %v1961
      %v2050 = vadd.f32 %v2014, %v1964
      %v2051 = vadd.f32 %v2015, %v1969
      %v2052 = vadd.f32 %v2016, %v1972
      %v2053 = vadd.f32 %v2017, %v1977
      %v2054 = vadd.f32 %v2018, %v1980
      %2055 = vst [vmem:[#allocation2] sm:$0xff] %v2019
      %2056 = vst [vmem:[#allocation2 + $0x8] sm:$0xff] %v2020
      %2057 = vst [vmem:[#allocation2 + $0x10] sm:$0xff] %v2021
      %2058 = vst [vmem:[#allocation2 + $0x18] sm:$0xff] %v2022
      %2059 = vst [vmem:[#allocation2 + $0x20] sm:$0xff] %v2023
      %2060 = vst [vmem:[#allocation2 + $0x28] sm:$0xff] %v2024
      %2061 = vst [vmem:[#allocation2 + $0x30] sm:$0xff] %v2025
      %2062 = vst [vmem:[#allocation2 + $0x38] sm:$0xff] %v2026
      %2063 = vst [vmem:[#allocation2 + $0x40] sm:$0xff] %v2027
      %2064 = vst [vmem:[#allocation2 + $0x48] sm:$0xff] %v2028
      %2065 = vst [vmem:[#allocation2 + $0x50] sm:$0xff] %v2029
      %2066 = vst [vmem:[#allocation2 + $0x58] sm:$0xff] %v2030
      %2067 = vst [vmem:[#allocation2 + $0x60] sm:$0xff] %v2031
      %2068 = vst [vmem:[#allocation2 + $0x68] sm:$0xff] %v2032
      %2069 = vst [vmem:[#allocation2 + $0x70] sm:$0xff] %v2033
      %2070 = vst [vmem:[#allocation2 + $0x78] sm:$0xff] %v2034
      %2071 = vst [vmem:[#allocation2 + $0x80] sm:$0xff] %v2035
      %2072 = vst [vmem:[#allocation2 + $0x88] sm:$0xff] %v2036
      %2073 = vst [vmem:[#allocation2 + $0x90] sm:$0xff] %v2037
      %2074 = vst [vmem:[#allocation2 + $0x98] sm:$0xff] %v2038
      %2075 = vst [vmem:[#allocation2 + $0xa0] sm:$0xff] %v2039
      %2076 = vst [vmem:[#allocation2 + $0xa8] sm:$0xff] %v2040
      %2077 = vst [vmem:[#allocation2 + $0xb0] sm:$0xff] %v2041
      %2078 = vst [vmem:[#allocation2 + $0xb8] sm:$0xff] %v2042
      %2079 = vst [vmem:[#allocation2 + $0xc0] sm:$0xff] %v2043
      %2080 = vst [vmem:[#allocation2 + $0xc8] sm:$0xff] %v2044
      %2081 = vst [vmem:[#allocation2 + $0xd0] sm:$0xff] %v2045
      %2082 = vst [vmem:[#allocation2 + $0xd8] sm:$0xff] %v2046
      %2083 = vst [vmem:[#allocation2 + $0xe0] sm:$0xff] %v2047
      %2084 = vst [vmem:[#allocation2 + $0xe8] sm:$0xff] %v2048
      %2085 = vst [vmem:[#allocation2 + $0xf0] sm:$0xff] %v2049
      %2086 = vst [vmem:[#allocation2 + $0xf8] sm:$0xff] %v2050
      %2087 = vst [vmem:[#allocation2 + $0x100] sm:$0xff] %v2051
      %2088 = vst [vmem:[#allocation2 + $0x108] sm:$0xff] %v2052
      %2089 = vst [vmem:[#allocation2 + $0x110] sm:$0xff] %v2053
      %2090 = vst [vmem:[#allocation2 + $0x118] sm:$0xff] %v2054
      %v2091 = vld [vmem:[%s165 + $0x14] sm:$0xff]
      %v2092 = vld [vmem:[%s165 + $0x1c] sm:$0xff]
      %v2093 = vld [vmem:[%s165 + $0x24] sm:$0xff]
      %v2094 = vld [vmem:[%s165 + $0x2c] sm:$0xff]
      %v2095 = vld [vmem:[%s165 + $0x34] sm:$0xff]
      %v2096 = vld [vmem:[%s165 + $0x3c] sm:$0xff]
      %v2097 = vld [vmem:[%s165 + $0x44] sm:$0xff]
      %v2098 = vld [vmem:[%s165 + $0x4c] sm:$0xff]
      %v2099 = vld [vmem:[%s165 + $0x54] sm:$0xff]
      %v2100 = vld [vmem:[%s165 + $0x5c] sm:$0xff]
      %v2101 = vld [vmem:[%s165 + $0x64] sm:$0xff]
      %v2102 = vld [vmem:[%s165 + $0x6c] sm:$0xff]
      %v2103 = vld [vmem:[%s165 + $0x74] sm:$0xff]
      %v2104 = vld [vmem:[%s165 + $0x7c] sm:$0xff]
      %v2105 = vld [vmem:[%s165 + $0x84] sm:$0xff]
      %v2106 = vld [vmem:[%s165 + $0x8c] sm:$0xff]
      %v2107 = vld [vmem:[%s165 + $0x94] sm:$0xff]
      %v2108 = vld [vmem:[%s165 + $0x9c] sm:$0xff]
      %v2109 = vld [vmem:[%s165 + $0xa4] sm:$0xff]
      %v2110 = vld [vmem:[%s165 + $0xac] sm:$0xff]
      %v2111 = vld [vmem:[%s165 + $0xb4] sm:$0xff]
      %v2112 = vld [vmem:[%s165 + $0xbc] sm:$0xff]
      %v2113 = vld [vmem:[%s165 + $0xc4] sm:$0xff]
      %v2114 = vld [vmem:[%s165 + $0xcc] sm:$0xff]
      %v2115 = vld [vmem:[%s165 + $0xd4] sm:$0xff]
      %v2116 = vld [vmem:[%s165 + $0xdc] sm:$0xff]
      %v2117 = vld [vmem:[%s165 + $0xe4] sm:$0xff]
      %v2118 = vld [vmem:[%s165 + $0xec] sm:$0xff]
      %v2119 = vld [vmem:[%s165 + $0xf4] sm:$0xff]
      %v2120 = vld [vmem:[%s165 + $0xfc] sm:$0xff]
      %v2121 = vld [vmem:[%s165 + $0x104] sm:$0xff]
      %v2122 = vld [vmem:[%s165 + $0x10c] sm:$0xff]
      %v2123 = vld [vmem:[%s165 + $0x114] sm:$0xff]
      %v2124 = vld [vmem:[%s165 + $0x11c] sm:$0xff]
      %v2125 = vld [vmem:[%s165 + $0x124] sm:$0xff]
      %v2126 = vld [vmem:[%s165 + $0x12c] sm:$0xff]
      %v2127 = vpack.c.bf16 %v2092, %v2091
      %v2128 = vpack.c.bf16 %v2094, %v2093
      %v2129 = vpack.c.bf16 %v2096, %v2095
      %v2130 = vpack.c.bf16 %v2098, %v2097
      %v2131 = vpack.c.bf16 %v2100, %v2099
      %v2132 = vpack.c.bf16 %v2102, %v2101
      %v2133 = vpack.c.bf16 %v2104, %v2103
      %v2134 = vpack.c.bf16 %v2106, %v2105
      %v2135 = vpack.c.bf16 %v2108, %v2107
      %v2136 = vpack.c.bf16 %v2110, %v2109
      %v2137 = vpack.c.bf16 %v2112, %v2111
      %v2138 = vpack.c.bf16 %v2114, %v2113
      %v2139 = vpack.c.bf16 %v2116, %v2115
      %v2140 = vpack.c.bf16 %v2118, %v2117
      %v2141 = vpack.c.bf16 %v2120, %v2119
      %v2142 = vpack.c.bf16 %v2122, %v2121
      %v2143 = vpack.c.bf16 %v2124, %v2123
      %v2144 = vpack.c.bf16 %v2126, %v2125
      %s2145 = scalar_lea.vmem %s1, 10
      %v2146 = vld [vmem:[%s2145] sm:$0x3]
      %v2148 = vsel %vm227, %v2127, 0
      %v2151 = vsel %vm227, %v2128, 0
      %v2154 = vsel %vm227, %v2129, 0
      %v2157 = vsel %vm227, %v2130, 0
      %v2160 = vsel %vm227, %v2131, 0
      %v2163 = vsel %vm227, %v2132, 0
      %v2166 = vsel %vm227, %v2133, 0
      %v2169 = vsel %vm227, %v2134, 0
      %v2172 = vsel %vm227, %v2135, 0
      %v2175 = vsel %vm227, %v2136, 0
      %v2178 = vsel %vm227, %v2137, 0
      %v2181 = vsel %vm227, %v2138, 0
      %v2184 = vsel %vm227, %v2139, 0
      %v2187 = vsel %vm227, %v2140, 0
      %v2190 = vsel %vm227, %v2141, 0
      %v2193 = vsel %vm227, %v2142, 0
      %v2196 = vsel %vm227, %v2143, 0
      %v2199 = vsel %vm227, %v2144, 0
      %v2202 = vsel %vm282, %v2146, 0
      %2204 = vmatprep.subr.bf16.mxu0 0
      %2205 = vmatpush1.bf16.msra.mxu0 0
      %2206 = vmatprep.subr.bf16.mxu0 0
      %2207 = vmatpush1.bf16.msra.mxu0 0
      %2208 = vmatprep.subr.bf16.mxu0 0
      %2209 = vmatpush1.bf16.msra.mxu0 0
      %2210 = vmatprep.subr.bf16.mxu0 0
      %2211 = vmatpush1.bf16.msra.mxu0 0
      %2212 = vmatprep.subr.bf16.mxu0 0
      %2213 = vmatpush1.bf16.msra.mxu0 0
      %2214 = vmatprep.subr.bf16.mxu0 0
      %2215 = vmatpush1.bf16.msra.mxu0 0
      %2216 = vmatprep.subr.bf16.mxu0 0
      %2217 = vmatpush1.bf16.msra.mxu0 0
      %2218 = vmatprep.subr.bf16.mxu0 0
      %2219 = vmatpush1.bf16.msra.mxu0 %v2202
      %2220 = vmatprep.subr.bf16.mxu0 0
      %2221 = vmatpush2.bf16.msra.mxu0 0
      %2222 = vmatprep.subr.bf16.mxu0 0
      %2223 = vmatpush2.bf16.msra.mxu0 0
      %2224 = vmatprep.subr.bf16.mxu0 0
      %2225 = vmatpush2.bf16.msra.mxu0 0
      %2226 = vmatprep.subr.bf16.mxu0 0
      %2227 = vmatpush2.bf16.msra.mxu0 0
      %2228 = vmatprep.subr.bf16.mxu0 0
      %2229 = vmatpush2.bf16.msra.mxu0 0
      %2230 = vmatprep.subr.bf16.mxu0 0
      %2231 = vmatpush2.bf16.msra.mxu0 0
      %2232 = vmatprep.subr.bf16.mxu0 0
      %2233 = vmatpush2.bf16.msra.mxu0 0
      %2234 = vmatprep.subr.bf16.mxu0 0
      %2235 = vmatpush2.bf16.msra.mxu0 0
      %2236 = vmatprep.mubr.bf16.mxu0 0
      %2237 = vmatmul.mubr.bf16.gmra.mxu0 %v2148
      %v2238 = vpop.f32.mrf.mxu0
      %v2239 = vadd.f32 0.0, %v2238
      %v2240 = vpop.f32.mrf.mxu0
      %v2241 = vpop.f32.mrf.mxu0
      %v2242 = vadd.f32 0.0, %v2241
      %v2243 = vpop.f32.mrf.mxu0
      %2244 = vmatprep.mubr.bf16.mxu0 0
      %2245 = vmatmul.mubr.bf16.gmra.mxu0 %v2151
      %v2246 = vpop.f32.mrf.mxu0
      %v2247 = vadd.f32 0.0, %v2246
      %v2248 = vpop.f32.mrf.mxu0
      %v2249 = vpop.f32.mrf.mxu0
      %v2250 = vadd.f32 0.0, %v2249
      %v2251 = vpop.f32.mrf.mxu0
      %2252 = vmatprep.mubr.bf16.mxu0 0
      %2253 = vmatmul.mubr.bf16.gmra.mxu0 %v2154
      %v2254 = vpop.f32.mrf.mxu0
      %v2255 = vadd.f32 0.0, %v2254
      %v2256 = vpop.f32.mrf.mxu0
      %v2257 = vpop.f32.mrf.mxu0
      %v2258 = vadd.f32 0.0, %v2257
      %v2259 = vpop.f32.mrf.mxu0
      %2260 = vmatprep.mubr.bf16.mxu0 0
      %2261 = vmatmul.mubr.bf16.gmra.mxu0 %v2157
      %v2262 = vpop.f32.mrf.mxu0
      %v2263 = vadd.f32 0.0, %v2262
      %v2264 = vpop.f32.mrf.mxu0
      %v2265 = vpop.f32.mrf.mxu0
      %v2266 = vadd.f32 0.0, %v2265
      %v2267 = vpop.f32.mrf.mxu0
      %2268 = vmatprep.mubr.bf16.mxu0 0
      %2269 = vmatmul.mubr.bf16.gmra.mxu0 %v2160
      %v2270 = vpop.f32.mrf.mxu0
      %v2271 = vadd.f32 0.0, %v2270
      %v2272 = vpop.f32.mrf.mxu0
      %v2273 = vpop.f32.mrf.mxu0
      %v2274 = vadd.f32 0.0, %v2273
      %v2275 = vpop.f32.mrf.mxu0
      %2276 = vmatprep.mubr.bf16.mxu0 0
      %2277 = vmatmul.mubr.bf16.gmra.mxu0 %v2163
      %v2278 = vpop.f32.mrf.mxu0
      %v2279 = vadd.f32 0.0, %v2278
      %v2280 = vpop.f32.mrf.mxu0
      %v2281 = vpop.f32.mrf.mxu0
      %v2282 = vadd.f32 0.0, %v2281
      %v2283 = vpop.f32.mrf.mxu0
      %2284 = vmatprep.mubr.bf16.mxu0 0
      %2285 = vmatmul.mubr.bf16.gmra.mxu0 %v2166
      %v2286 = vpop.f32.mrf.mxu0
      %v2287 = vadd.f32 0.0, %v2286
      %v2288 = vpop.f32.mrf.mxu0
      %v2289 = vpop.f32.mrf.mxu0
      %v2290 = vadd.f32 0.0, %v2289
      %v2291 = vpop.f32.mrf.mxu0
      %2292 = vmatprep.mubr.bf16.mxu0 0
      %2293 = vmatmul.mubr.bf16.gmra.mxu0 %v2169
      %v2294 = vpop.f32.mrf.mxu0
      %v2295 = vadd.f32 0.0, %v2294
      %v2296 = vpop.f32.mrf.mxu0
      %v2297 = vpop.f32.mrf.mxu0
      %v2298 = vadd.f32 0.0, %v2297
      %v2299 = vpop.f32.mrf.mxu0
      %2300 = vmatprep.mubr.bf16.mxu0 0
      %2301 = vmatmul.mubr.bf16.gmra.mxu0 %v2172
      %v2302 = vpop.f32.mrf.mxu0
      %v2303 = vadd.f32 0.0, %v2302
      %v2304 = vpop.f32.mrf.mxu0
      %v2305 = vpop.f32.mrf.mxu0
      %v2306 = vadd.f32 0.0, %v2305
      %v2307 = vpop.f32.mrf.mxu0
      %2308 = vmatprep.mubr.bf16.mxu0 0
      %2309 = vmatmul.mubr.bf16.gmra.mxu0 %v2175
      %v2310 = vpop.f32.mrf.mxu0
      %v2311 = vadd.f32 0.0, %v2310
      %v2312 = vpop.f32.mrf.mxu0
      %v2313 = vpop.f32.mrf.mxu0
      %v2314 = vadd.f32 0.0, %v2313
      %v2315 = vpop.f32.mrf.mxu0
      %2316 = vmatprep.mubr.bf16.mxu0 0
      %2317 = vmatmul.mubr.bf16.gmra.mxu0 %v2178
      %v2318 = vpop.f32.mrf.mxu0
      %v2319 = vadd.f32 0.0, %v2318
      %v2320 = vpop.f32.mrf.mxu0
      %v2321 = vpop.f32.mrf.mxu0
      %v2322 = vadd.f32 0.0, %v2321
      %v2323 = vpop.f32.mrf.mxu0
      %2324 = vmatprep.mubr.bf16.mxu0 0
      %2325 = vmatmul.mubr.bf16.gmra.mxu0 %v2181
      %v2326 = vpop.f32.mrf.mxu0
      %v2327 = vadd.f32 0.0, %v2326
      %v2328 = vpop.f32.mrf.mxu0
      %v2329 = vpop.f32.mrf.mxu0
      %v2330 = vadd.f32 0.0, %v2329
      %v2331 = vpop.f32.mrf.mxu0
      %2332 = vmatprep.mubr.bf16.mxu0 0
      %2333 = vmatmul.mubr.bf16.gmra.mxu0 %v2184
      %v2334 = vpop.f32.mrf.mxu0
      %v2335 = vadd.f32 0.0, %v2334
      %v2336 = vpop.f32.mrf.mxu0
      %v2337 = vpop.f32.mrf.mxu0
      %v2338 = vadd.f32 0.0, %v2337
      %v2339 = vpop.f32.mrf.mxu0
      %2340 = vmatprep.mubr.bf16.mxu0 0
      %2341 = vmatmul.mubr.bf16.gmra.mxu0 %v2187
      %v2342 = vpop.f32.mrf.mxu0
      %v2343 = vadd.f32 0.0, %v2342
      %v2344 = vpop.f32.mrf.mxu0
      %v2345 = vpop.f32.mrf.mxu0
      %v2346 = vadd.f32 0.0, %v2345
      %v2347 = vpop.f32.mrf.mxu0
      %2348 = vmatprep.mubr.bf16.mxu0 0
      %2349 = vmatmul.mubr.bf16.gmra.mxu0 %v2190
      %v2350 = vpop.f32.mrf.mxu0
      %v2351 = vadd.f32 0.0, %v2350
      %v2352 = vpop.f32.mrf.mxu0
      %v2353 = vpop.f32.mrf.mxu0
      %v2354 = vadd.f32 0.0, %v2353
      %v2355 = vpop.f32.mrf.mxu0
      %2356 = vmatprep.mubr.bf16.mxu0 0
      %2357 = vmatmul.mubr.bf16.gmra.mxu0 %v2193
      %v2358 = vpop.f32.mrf.mxu0
      %v2359 = vadd.f32 0.0, %v2358
      %v2360 = vpop.f32.mrf.mxu0
      %v2361 = vpop.f32.mrf.mxu0
      %v2362 = vadd.f32 0.0, %v2361
      %v2363 = vpop.f32.mrf.mxu0
      %2364 = vmatprep.mubr.bf16.mxu0 0
      %2365 = vmatmul.mubr.bf16.gmra.mxu0 %v2196
      %v2366 = vpop.f32.mrf.mxu0
      %v2367 = vadd.f32 0.0, %v2366
      %v2368 = vpop.f32.mrf.mxu0
      %v2369 = vpop.f32.mrf.mxu0
      %v2370 = vadd.f32 0.0, %v2369
      %v2371 = vpop.f32.mrf.mxu0
      %2372 = vmatprep.mubr.bf16.mxu0 0
      %2373 = vmatmul.mubr.bf16.gmra.mxu0 %v2199
      %v2374 = vpop.f32.mrf.mxu0
      %v2375 = vadd.f32 0.0, %v2374
      %v2376 = vpop.f32.mrf.mxu0
      %v2377 = vpop.f32.mrf.mxu0
      %v2378 = vadd.f32 0.0, %v2377
      %v2379 = vpop.f32.mrf.mxu0
      %2380 = vdwg.mxu0
      %v2381 = vld [vmem:[#allocation2] sm:$0xff]
      %v2382 = vld [vmem:[#allocation2 + $0x8] sm:$0xff]
      %v2383 = vld [vmem:[#allocation2 + $0x10] sm:$0xff]
      %v2384 = vld [vmem:[#allocation2 + $0x18] sm:$0xff]
      %v2385 = vld [vmem:[#allocation2 + $0x20] sm:$0xff]
      %v2386 = vld [vmem:[#allocation2 + $0x28] sm:$0xff]
      %v2387 = vld [vmem:[#allocation2 + $0x30] sm:$0xff]
      %v2388 = vld [vmem:[#allocation2 + $0x38] sm:$0xff]
      %v2389 = vld [vmem:[#allocation2 + $0x40] sm:$0xff]
      %v2390 = vld [vmem:[#allocation2 + $0x48] sm:$0xff]
      %v2391 = vld [vmem:[#allocation2 + $0x50] sm:$0xff]
      %v2392 = vld [vmem:[#allocation2 + $0x58] sm:$0xff]
      %v2393 = vld [vmem:[#allocation2 + $0x60] sm:$0xff]
      %v2394 = vld [vmem:[#allocation2 + $0x68] sm:$0xff]
      %v2395 = vld [vmem:[#allocation2 + $0x70] sm:$0xff]
      %v2396 = vld [vmem:[#allocation2 + $0x78] sm:$0xff]
      %v2397 = vld [vmem:[#allocation2 + $0x80] sm:$0xff]
      %v2398 = vld [vmem:[#allocation2 + $0x88] sm:$0xff]
      %v2399 = vld [vmem:[#allocation2 + $0x90] sm:$0xff]
      %v2400 = vld [vmem:[#allocation2 + $0x98] sm:$0xff]
      %v2401 = vld [vmem:[#allocation2 + $0xa0] sm:$0xff]
      %v2402 = vld [vmem:[#allocation2 + $0xa8] sm:$0xff]
      %v2403 = vld [vmem:[#allocation2 + $0xb0] sm:$0xff]
      %v2404 = vld [vmem:[#allocation2 + $0xb8] sm:$0xff]
      %v2405 = vld [vmem:[#allocation2 + $0xc0] sm:$0xff]
      %v2406 = vld [vmem:[#allocation2 + $0xc8] sm:$0xff]
      %v2407 = vld [vmem:[#allocation2 + $0xd0] sm:$0xff]
      %v2408 = vld [vmem:[#allocation2 + $0xd8] sm:$0xff]
      %v2409 = vld [vmem:[#allocation2 + $0xe0] sm:$0xff]
      %v2410 = vld [vmem:[#allocation2 + $0xe8] sm:$0xff]
      %v2411 = vld [vmem:[#allocation2 + $0xf0] sm:$0xff]
      %v2412 = vld [vmem:[#allocation2 + $0xf8] sm:$0xff]
      %v2413 = vld [vmem:[#allocation2 + $0x100] sm:$0xff]
      %v2414 = vld [vmem:[#allocation2 + $0x108] sm:$0xff]
      %v2415 = vld [vmem:[#allocation2 + $0x110] sm:$0xff]
      %v2416 = vld [vmem:[#allocation2 + $0x118] sm:$0xff]
      %v2417 = vadd.f32 %v2381, %v2239
      %v2418 = vadd.f32 %v2382, %v2242
      %v2419 = vadd.f32 %v2383, %v2247
      %v2420 = vadd.f32 %v2384, %v2250
      %v2421 = vadd.f32 %v2385, %v2255
      %v2422 = vadd.f32 %v2386, %v2258
      %v2423 = vadd.f32 %v2387, %v2263
      %v2424 = vadd.f32 %v2388, %v2266
      %v2425 = vadd.f32 %v2389, %v2271
      %v2426 = vadd.f32 %v2390, %v2274
      %v2427 = vadd.f32 %v2391, %v2279
      %v2428 = vadd.f32 %v2392, %v2282
      %v2429 = vadd.f32 %v2393, %v2287
      %v2430 = vadd.f32 %v2394, %v2290
      %v2431 = vadd.f32 %v2395, %v2295
      %v2432 = vadd.f32 %v2396, %v2298
      %v2433 = vadd.f32 %v2397, %v2303
      %v2434 = vadd.f32 %v2398, %v2306
      %v2435 = vadd.f32 %v2399, %v2311
      %v2436 = vadd.f32 %v2400, %v2314
      %v2437 = vadd.f32 %v2401, %v2319
      %v2438 = vadd.f32 %v2402, %v2322
      %v2439 = vadd.f32 %v2403, %v2327
      %v2440 = vadd.f32 %v2404, %v2330
      %v2441 = vadd.f32 %v2405, %v2335
      %v2442 = vadd.f32 %v2406, %v2338
      %v2443 = vadd.f32 %v2407, %v2343
      %v2444 = vadd.f32 %v2408, %v2346
      %v2445 = vadd.f32 %v2409, %v2351
      %v2446 = vadd.f32 %v2410, %v2354
      %v2447 = vadd.f32 %v2411, %v2359
      %v2448 = vadd.f32 %v2412, %v2362
      %v2449 = vadd.f32 %v2413, %v2367
      %v2450 = vadd.f32 %v2414, %v2370
      %v2451 = vadd.f32 %v2415, %v2375
      %v2452 = vadd.f32 %v2416, %v2378
      %2453 = vst [vmem:[#allocation2] sm:$0xff] %v2417
      %2454 = vst [vmem:[#allocation2 + $0x8] sm:$0xff] %v2418
      %2455 = vst [vmem:[#allocation2 + $0x10] sm:$0xff] %v2419
      %2456 = vst [vmem:[#allocation2 + $0x18] sm:$0xff] %v2420
      %2457 = vst [vmem:[#allocation2 + $0x20] sm:$0xff] %v2421
      %2458 = vst [vmem:[#allocation2 + $0x28] sm:$0xff] %v2422
      %2459 = vst [vmem:[#allocation2 + $0x30] sm:$0xff] %v2423
      %2460 = vst [vmem:[#allocation2 + $0x38] sm:$0xff] %v2424
      %2461 = vst [vmem:[#allocation2 + $0x40] sm:$0xff] %v2425
      %2462 = vst [vmem:[#allocation2 + $0x48] sm:$0xff] %v2426
      %2463 = vst [vmem:[#allocation2 + $0x50] sm:$0xff] %v2427
      %2464 = vst [vmem:[#allocation2 + $0x58] sm:$0xff] %v2428
      %2465 = vst [vmem:[#allocation2 + $0x60] sm:$0xff] %v2429
      %2466 = vst [vmem:[#allocation2 + $0x68] sm:$0xff] %v2430
      %2467 = vst [vmem:[#allocation2 + $0x70] sm:$0xff] %v2431
      %2468 = vst [vmem:[#allocation2 + $0x78] sm:$0xff] %v2432
      %2469 = vst [vmem:[#allocation2 + $0x80] sm:$0xff] %v2433
      %2470 = vst [vmem:[#allocation2 + $0x88] sm:$0xff] %v2434
      %2471 = vst [vmem:[#allocation2 + $0x90] sm:$0xff] %v2435
      %2472 = vst [vmem:[#allocation2 + $0x98] sm:$0xff] %v2436
      %2473 = vst [vmem:[#allocation2 + $0xa0] sm:$0xff] %v2437
      %2474 = vst [vmem:[#allocation2 + $0xa8] sm:$0xff] %v2438
      %2475 = vst [vmem:[#allocation2 + $0xb0] sm:$0xff] %v2439
      %2476 = vst [vmem:[#allocation2 + $0xb8] sm:$0xff] %v2440
      %2477 = vst [vmem:[#allocation2 + $0xc0] sm:$0xff] %v2441
      %2478 = vst [vmem:[#allocation2 + $0xc8] sm:$0xff] %v2442
      %2479 = vst [vmem:[#allocation2 + $0xd0] sm:$0xff] %v2443
      %2480 = vst [vmem:[#allocation2 + $0xd8] sm:$0xff] %v2444
      %2481 = vst [vmem:[#allocation2 + $0xe0] sm:$0xff] %v2445
      %2482 = vst [vmem:[#allocation2 + $0xe8] sm:$0xff] %v2446
      %2483 = vst [vmem:[#allocation2 + $0xf0] sm:$0xff] %v2447
      %2484 = vst [vmem:[#allocation2 + $0xf8] sm:$0xff] %v2448
      %2485 = vst [vmem:[#allocation2 + $0x100] sm:$0xff] %v2449
      %2486 = vst [vmem:[#allocation2 + $0x108] sm:$0xff] %v2450
      %2487 = vst [vmem:[#allocation2 + $0x110] sm:$0xff] %v2451
      %2488 = vst [vmem:[#allocation2 + $0x118] sm:$0xff] %v2452
      %v2489 = vld [vmem:[%s165 + $0x24] sm:$0xff]
      %v2490 = vld [vmem:[%s165 + $0x2c] sm:$0xff]
      %v2491 = vld [vmem:[%s165 + $0x34] sm:$0xff]
      %v2492 = vld [vmem:[%s165 + $0x3c] sm:$0xff]
      %v2493 = vld [vmem:[%s165 + $0x44] sm:$0xff]
      %v2494 = vld [vmem:[%s165 + $0x4c] sm:$0xff]
      %v2495 = vld [vmem:[%s165 + $0x54] sm:$0xff]
      %v2496 = vld [vmem:[%s165 + $0x5c] sm:$0xff]
      %v2497 = vld [vmem:[%s165 + $0x64] sm:$0xff]
      %v2498 = vld [vmem:[%s165 + $0x6c] sm:$0xff]
      %v2499 = vld [vmem:[%s165 + $0x74] sm:$0xff]
      %v2500 = vld [vmem:[%s165 + $0x7c] sm:$0xff]
      %v2501 = vld [vmem:[%s165 + $0x84] sm:$0xff]
      %v2502 = vld [vmem:[%s165 + $0x8c] sm:$0xff]
      %v2503 = vld [vmem:[%s165 + $0x94] sm:$0xff]
      %v2504 = vld [vmem:[%s165 + $0x9c] sm:$0xff]
      %v2505 = vld [vmem:[%s165 + $0xa4] sm:$0xff]
      %v2506 = vld [vmem:[%s165 + $0xac] sm:$0xff]
      %v2507 = vld [vmem:[%s165 + $0xb4] sm:$0xff]
      %v2508 = vld [vmem:[%s165 + $0xbc] sm:$0xff]
      %v2509 = vld [vmem:[%s165 + $0xc4] sm:$0xff]
      %v2510 = vld [vmem:[%s165 + $0xcc] sm:$0xff]
      %v2511 = vld [vmem:[%s165 + $0xd4] sm:$0xff]
      %v2512 = vld [vmem:[%s165 + $0xdc] sm:$0xff]
      %v2513 = vld [vmem:[%s165 + $0xe4] sm:$0xff]
      %v2514 = vld [vmem:[%s165 + $0xec] sm:$0xff]
      %v2515 = vld [vmem:[%s165 + $0xf4] sm:$0xff]
      %v2516 = vld [vmem:[%s165 + $0xfc] sm:$0xff]
      %v2517 = vld [vmem:[%s165 + $0x104] sm:$0xff]
      %v2518 = vld [vmem:[%s165 + $0x10c] sm:$0xff]
      %v2519 = vld [vmem:[%s165 + $0x114] sm:$0xff]
      %v2520 = vld [vmem:[%s165 + $0x11c] sm:$0xff]
      %v2521 = vld [vmem:[%s165 + $0x124] sm:$0xff]
      %v2522 = vld [vmem:[%s165 + $0x12c] sm:$0xff]
      %v2523 = vld [vmem:[%s165 + $0x134] sm:$0xff]
      %v2524 = vld [vmem:[%s165 + $0x13c] sm:$0xff]
      %v2525 = vpack.c.bf16 %v2490, %v2489
      %v2526 = vpack.c.bf16 %v2492, %v2491
      %v2527 = vpack.c.bf16 %v2494, %v2493
      %v2528 = vpack.c.bf16 %v2496, %v2495
      %v2529 = vpack.c.bf16 %v2498, %v2497
      %v2530 = vpack.c.bf16 %v2500, %v2499
      %v2531 = vpack.c.bf16 %v2502, %v2501
      %v2532 = vpack.c.bf16 %v2504, %v2503
      %v2533 = vpack.c.bf16 %v2506, %v2505
      %v2534 = vpack.c.bf16 %v2508, %v2507
      %v2535 = vpack.c.bf16 %v2510, %v2509
      %v2536 = vpack.c.bf16 %v2512, %v2511
      %v2537 = vpack.c.bf16 %v2514, %v2513
      %v2538 = vpack.c.bf16 %v2516, %v2515
      %v2539 = vpack.c.bf16 %v2518, %v2517
      %v2540 = vpack.c.bf16 %v2520, %v2519
      %v2541 = vpack.c.bf16 %v2522, %v2521
      %v2542 = vpack.c.bf16 %v2524, %v2523
      %s2543 = scalar_lea.vmem %s1, 12
      %v2544 = vld [vmem:[%s2543] sm:$0x3]
      %v2546 = vsel %vm227, %v2525, 0
      %v2549 = vsel %vm227, %v2526, 0
      %v2552 = vsel %vm227, %v2527, 0
      %v2555 = vsel %vm227, %v2528, 0
      %v2558 = vsel %vm227, %v2529, 0
      %v2561 = vsel %vm227, %v2530, 0
      %v2564 = vsel %vm227, %v2531, 0
      %v2567 = vsel %vm227, %v2532, 0
      %v2570 = vsel %vm227, %v2533, 0
      %v2573 = vsel %vm227, %v2534, 0
      %v2576 = vsel %vm227, %v2535, 0
      %v2579 = vsel %vm227, %v2536, 0
      %v2582 = vsel %vm227, %v2537, 0
      %v2585 = vsel %vm227, %v2538, 0
      %v2588 = vsel %vm227, %v2539, 0
      %v2591 = vsel %vm227, %v2540, 0
      %v2594 = vsel %vm227, %v2541, 0
      %v2597 = vsel %vm227, %v2542, 0
      %v2600 = vsel %vm282, %v2544, 0
      %2602 = vmatprep.subr.bf16.mxu0 0
      %2603 = vmatpush1.bf16.msra.mxu0 0
      %2604 = vmatprep.subr.bf16.mxu0 0
      %2605 = vmatpush1.bf16.msra.mxu0 0
      %2606 = vmatprep.subr.bf16.mxu0 0
      %2607 = vmatpush1.bf16.msra.mxu0 0
      %2608 = vmatprep.subr.bf16.mxu0 0
      %2609 = vmatpush1.bf16.msra.mxu0 0
      %2610 = vmatprep.subr.bf16.mxu0 0
      %2611 = vmatpush1.bf16.msra.mxu0 0
      %2612 = vmatprep.subr.bf16.mxu0 0
      %2613 = vmatpush1.bf16.msra.mxu0 0
      %2614 = vmatprep.subr.bf16.mxu0 0
      %2615 = vmatpush1.bf16.msra.mxu0 0
      %2616 = vmatprep.subr.bf16.mxu0 0
      %2617 = vmatpush1.bf16.msra.mxu0 %v2600
      %2618 = vmatprep.subr.bf16.mxu0 0
      %2619 = vmatpush2.bf16.msra.mxu0 0
      %2620 = vmatprep.subr.bf16.mxu0 0
      %2621 = vmatpush2.bf16.msra.mxu0 0
      %2622 = vmatprep.subr.bf16.mxu0 0
      %2623 = vmatpush2.bf16.msra.mxu0 0
      %2624 = vmatprep.subr.bf16.mxu0 0
      %2625 = vmatpush2.bf16.msra.mxu0 0
      %2626 = vmatprep.subr.bf16.mxu0 0
      %2627 = vmatpush2.bf16.msra.mxu0 0
      %2628 = vmatprep.subr.bf16.mxu0 0
      %2629 = vmatpush2.bf16.msra.mxu0 0
      %2630 = vmatprep.subr.bf16.mxu0 0
      %2631 = vmatpush2.bf16.msra.mxu0 0
      %2632 = vmatprep.subr.bf16.mxu0 0
      %2633 = vmatpush2.bf16.msra.mxu0 0
      %2634 = vmatprep.mubr.bf16.mxu0 0
      %2635 = vmatmul.mubr.bf16.gmra.mxu0 %v2546
      %v2636 = vpop.f32.mrf.mxu0
      %v2637 = vadd.f32 0.0, %v2636
      %v2638 = vpop.f32.mrf.mxu0
      %v2639 = vpop.f32.mrf.mxu0
      %v2640 = vadd.f32 0.0, %v2639
      %v2641 = vpop.f32.mrf.mxu0
      %2642 = vmatprep.mubr.bf16.mxu0 0
      %2643 = vmatmul.mubr.bf16.gmra.mxu0 %v2549
      %v2644 = vpop.f32.mrf.mxu0
      %v2645 = vadd.f32 0.0, %v2644
      %v2646 = vpop.f32.mrf.mxu0
      %v2647 = vpop.f32.mrf.mxu0
      %v2648 = vadd.f32 0.0, %v2647
      %v2649 = vpop.f32.mrf.mxu0
      %2650 = vmatprep.mubr.bf16.mxu0 0
      %2651 = vmatmul.mubr.bf16.gmra.mxu0 %v2552
      %v2652 = vpop.f32.mrf.mxu0
      %v2653 = vadd.f32 0.0, %v2652
      %v2654 = vpop.f32.mrf.mxu0
      %v2655 = vpop.f32.mrf.mxu0
      %v2656 = vadd.f32 0.0, %v2655
      %v2657 = vpop.f32.mrf.mxu0
      %2658 = vmatprep.mubr.bf16.mxu0 0
      %2659 = vmatmul.mubr.bf16.gmra.mxu0 %v2555
      %v2660 = vpop.f32.mrf.mxu0
      %v2661 = vadd.f32 0.0, %v2660
      %v2662 = vpop.f32.mrf.mxu0
      %v2663 = vpop.f32.mrf.mxu0
      %v2664 = vadd.f32 0.0, %v2663
      %v2665 = vpop.f32.mrf.mxu0
      %2666 = vmatprep.mubr.bf16.mxu0 0
      %2667 = vmatmul.mubr.bf16.gmra.mxu0 %v2558
      %v2668 = vpop.f32.mrf.mxu0
      %v2669 = vadd.f32 0.0, %v2668
      %v2670 = vpop.f32.mrf.mxu0
      %v2671 = vpop.f32.mrf.mxu0
      %v2672 = vadd.f32 0.0, %v2671
      %v2673 = vpop.f32.mrf.mxu0
      %2674 = vmatprep.mubr.bf16.mxu0 0
      %2675 = vmatmul.mubr.bf16.gmra.mxu0 %v2561
      %v2676 = vpop.f32.mrf.mxu0
      %v2677 = vadd.f32 0.0, %v2676
      %v2678 = vpop.f32.mrf.mxu0
      %v2679 = vpop.f32.mrf.mxu0
      %v2680 = vadd.f32 0.0, %v2679
      %v2681 = vpop.f32.mrf.mxu0
      %2682 = vmatprep.mubr.bf16.mxu0 0
      %2683 = vmatmul.mubr.bf16.gmra.mxu0 %v2564
      %v2684 = vpop.f32.mrf.mxu0
      %v2685 = vadd.f32 0.0, %v2684
      %v2686 = vpop.f32.mrf.mxu0
      %v2687 = vpop.f32.mrf.mxu0
      %v2688 = vadd.f32 0.0, %v2687
      %v2689 = vpop.f32.mrf.mxu0
      %2690 = vmatprep.mubr.bf16.mxu0 0
      %2691 = vmatmul.mubr.bf16.gmra.mxu0 %v2567
      %v2692 = vpop.f32.mrf.mxu0
      %v2693 = vadd.f32 0.0, %v2692
      %v2694 = vpop.f32.mrf.mxu0
      %v2695 = vpop.f32.mrf.mxu0
      %v2696 = vadd.f32 0.0, %v2695
      %v2697 = vpop.f32.mrf.mxu0
      %2698 = vmatprep.mubr.bf16.mxu0 0
      %2699 = vmatmul.mubr.bf16.gmra.mxu0 %v2570
      %v2700 = vpop.f32.mrf.mxu0
      %v2701 = vadd.f32 0.0, %v2700
      %v2702 = vpop.f32.mrf.mxu0
      %v2703 = vpop.f32.mrf.mxu0
      %v2704 = vadd.f32 0.0, %v2703
      %v2705 = vpop.f32.mrf.mxu0
      %2706 = vmatprep.mubr.bf16.mxu0 0
      %2707 = vmatmul.mubr.bf16.gmra.mxu0 %v2573
      %v2708 = vpop.f32.mrf.mxu0
      %v2709 = vadd.f32 0.0, %v2708
      %v2710 = vpop.f32.mrf.mxu0
      %v2711 = vpop.f32.mrf.mxu0
      %v2712 = vadd.f32 0.0, %v2711
      %v2713 = vpop.f32.mrf.mxu0
      %2714 = vmatprep.mubr.bf16.mxu0 0
      %2715 = vmatmul.mubr.bf16.gmra.mxu0 %v2576
      %v2716 = vpop.f32.mrf.mxu0
      %v2717 = vadd.f32 0.0, %v2716
      %v2718 = vpop.f32.mrf.mxu0
      %v2719 = vpop.f32.mrf.mxu0
      %v2720 = vadd.f32 0.0, %v2719
      %v2721 = vpop.f32.mrf.mxu0
      %2722 = vmatprep.mubr.bf16.mxu0 0
      %2723 = vmatmul.mubr.bf16.gmra.mxu0 %v2579
      %v2724 = vpop.f32.mrf.mxu0
      %v2725 = vadd.f32 0.0, %v2724
      %v2726 = vpop.f32.mrf.mxu0
      %v2727 = vpop.f32.mrf.mxu0
      %v2728 = vadd.f32 0.0, %v2727
      %v2729 = vpop.f32.mrf.mxu0
      %2730 = vmatprep.mubr.bf16.mxu0 0
      %2731 = vmatmul.mubr.bf16.gmra.mxu0 %v2582
      %v2732 = vpop.f32.mrf.mxu0
      %v2733 = vadd.f32 0.0, %v2732
      %v2734 = vpop.f32.mrf.mxu0
      %v2735 = vpop.f32.mrf.mxu0
      %v2736 = vadd.f32 0.0, %v2735
      %v2737 = vpop.f32.mrf.mxu0
      %2738 = vmatprep.mubr.bf16.mxu0 0
      %2739 = vmatmul.mubr.bf16.gmra.mxu0 %v2585
      %v2740 = vpop.f32.mrf.mxu0
      %v2741 = vadd.f32 0.0, %v2740
      %v2742 = vpop.f32.mrf.mxu0
      %v2743 = vpop.f32.mrf.mxu0
      %v2744 = vadd.f32 0.0, %v2743
      %v2745 = vpop.f32.mrf.mxu0
      %2746 = vmatprep.mubr.bf16.mxu0 0
      %2747 = vmatmul.mubr.bf16.gmra.mxu0 %v2588
      %v2748 = vpop.f32.mrf.mxu0
      %v2749 = vadd.f32 0.0, %v2748
      %v2750 = vpop.f32.mrf.mxu0
      %v2751 = vpop.f32.mrf.mxu0
      %v2752 = vadd.f32 0.0, %v2751
      %v2753 = vpop.f32.mrf.mxu0
      %2754 = vmatprep.mubr.bf16.mxu0 0
      %2755 = vmatmul.mubr.bf16.gmra.mxu0 %v2591
      %v2756 = vpop.f32.mrf.mxu0
      %v2757 = vadd.f32 0.0, %v2756
      %v2758 = vpop.f32.mrf.mxu0
      %v2759 = vpop.f32.mrf.mxu0
      %v2760 = vadd.f32 0.0, %v2759
      %v2761 = vpop.f32.mrf.mxu0
      %2762 = vmatprep.mubr.bf16.mxu0 0
      %2763 = vmatmul.mubr.bf16.gmra.mxu0 %v2594
      %v2764 = vpop.f32.mrf.mxu0
      %v2765 = vadd.f32 0.0, %v2764
      %v2766 = vpop.f32.mrf.mxu0
      %v2767 = vpop.f32.mrf.mxu0
      %v2768 = vadd.f32 0.0, %v2767
      %v2769 = vpop.f32.mrf.mxu0
      %2770 = vmatprep.mubr.bf16.mxu0 0
      %2771 = vmatmul.mubr.bf16.gmra.mxu0 %v2597
      %v2772 = vpop.f32.mrf.mxu0
      %v2773 = vadd.f32 0.0, %v2772
      %v2774 = vpop.f32.mrf.mxu0
      %v2775 = vpop.f32.mrf.mxu0
      %v2776 = vadd.f32 0.0, %v2775
      %v2777 = vpop.f32.mrf.mxu0
      %2778 = vdwg.mxu0
      %v2779 = vld [vmem:[#allocation2] sm:$0xff]
      %v2780 = vld [vmem:[#allocation2 + $0x8] sm:$0xff]
      %v2781 = vld [vmem:[#allocation2 + $0x10] sm:$0xff]
      %v2782 = vld [vmem:[#allocation2 + $0x18] sm:$0xff]
      %v2783 = vld [vmem:[#allocation2 + $0x20] sm:$0xff]
      %v2784 = vld [vmem:[#allocation2 + $0x28] sm:$0xff]
      %v2785 = vld [vmem:[#allocation2 + $0x30] sm:$0xff]
      %v2786 = vld [vmem:[#allocation2 + $0x38] sm:$0xff]
      %v2787 = vld [vmem:[#allocation2 + $0x40] sm:$0xff]
      %v2788 = vld [vmem:[#allocation2 + $0x48] sm:$0xff]
      %v2789 = vld [vmem:[#allocation2 + $0x50] sm:$0xff]
      %v2790 = vld [vmem:[#allocation2 + $0x58] sm:$0xff]
      %v2791 = vld [vmem:[#allocation2 + $0x60] sm:$0xff]
      %v2792 = vld [vmem:[#allocation2 + $0x68] sm:$0xff]
      %v2793 = vld [vmem:[#allocation2 + $0x70] sm:$0xff]
      %v2794 = vld [vmem:[#allocation2 + $0x78] sm:$0xff]
      %v2795 = vld [vmem:[#allocation2 + $0x80] sm:$0xff]
      %v2796 = vld [vmem:[#allocation2 + $0x88] sm:$0xff]
      %v2797 = vld [vmem:[#allocation2 + $0x90] sm:$0xff]
      %v2798 = vld [vmem:[#allocation2 + $0x98] sm:$0xff]
      %v2799 = vld [vmem:[#allocation2 + $0xa0] sm:$0xff]
      %v2800 = vld [vmem:[#allocation2 + $0xa8] sm:$0xff]
      %v2801 = vld [vmem:[#allocation2 + $0xb0] sm:$0xff]
      %v2802 = vld [vmem:[#allocation2 + $0xb8] sm:$0xff]
      %v2803 = vld [vmem:[#allocation2 + $0xc0] sm:$0xff]
      %v2804 = vld [vmem:[#allocation2 + $0xc8] sm:$0xff]
      %v2805 = vld [vmem:[#allocation2 + $0xd0] sm:$0xff]
      %v2806 = vld [vmem:[#allocation2 + $0xd8] sm:$0xff]
      %v2807 = vld [vmem:[#allocation2 + $0xe0] sm:$0xff]
      %v2808 = vld [vmem:[#allocation2 + $0xe8] sm:$0xff]
      %v2809 = vld [vmem:[#allocation2 + $0xf0] sm:$0xff]
      %v2810 = vld [vmem:[#allocation2 + $0xf8] sm:$0xff]
      %v2811 = vld [vmem:[#allocation2 + $0x100] sm:$0xff]
      %v2812 = vld [vmem:[#allocation2 + $0x108] sm:$0xff]
      %v2813 = vld [vmem:[#allocation2 + $0x110] sm:$0xff]
      %v2814 = vld [vmem:[#allocation2 + $0x118] sm:$0xff]
      %v2815 = vadd.f32 %v2779, %v2637
      %v2816 = vadd.f32 %v2780, %v2640
      %v2817 = vadd.f32 %v2781, %v2645
      %v2818 = vadd.f32 %v2782, %v2648
      %v2819 = vadd.f32 %v2783, %v2653
      %v2820 = vadd.f32 %v2784, %v2656
      %v2821 = vadd.f32 %v2785, %v2661
      %v2822 = vadd.f32 %v2786, %v2664
      %v2823 = vadd.f32 %v2787, %v2669
      %v2824 = vadd.f32 %v2788, %v2672
      %v2825 = vadd.f32 %v2789, %v2677
      %v2826 = vadd.f32 %v2790, %v2680
      %v2827 = vadd.f32 %v2791, %v2685
      %v2828 = vadd.f32 %v2792, %v2688
      %v2829 = vadd.f32 %v2793, %v2693
      %v2830 = vadd.f32 %v2794, %v2696
      %v2831 = vadd.f32 %v2795, %v2701
      %v2832 = vadd.f32 %v2796, %v2704
      %v2833 = vadd.f32 %v2797, %v2709
      %v2834 = vadd.f32 %v2798, %v2712
      %v2835 = vadd.f32 %v2799, %v2717
      %v2836 = vadd.f32 %v2800, %v2720
      %v2837 = vadd.f32 %v2801, %v2725
      %v2838 = vadd.f32 %v2802, %v2728
      %v2839 = vadd.f32 %v2803, %v2733
      %v2840 = vadd.f32 %v2804, %v2736
      %v2841 = vadd.f32 %v2805, %v2741
      %v2842 = vadd.f32 %v2806, %v2744
      %v2843 = vadd.f32 %v2807, %v2749
      %v2844 = vadd.f32 %v2808, %v2752
      %v2845 = vadd.f32 %v2809, %v2757
      %v2846 = vadd.f32 %v2810, %v2760
      %v2847 = vadd.f32 %v2811, %v2765
      %v2848 = vadd.f32 %v2812, %v2768
      %v2849 = vadd.f32 %v2813, %v2773
      %v2850 = vadd.f32 %v2814, %v2776
      %2851 = vst [vmem:[#allocation2] sm:$0xff] %v2815
      %2852 = vst [vmem:[#allocation2 + $0x8] sm:$0xff] %v2816
      %2853 = vst [vmem:[#allocation2 + $0x10] sm:$0xff] %v2817
      %2854 = vst [vmem:[#allocation2 + $0x18] sm:$0xff] %v2818
      %2855 = vst [vmem:[#allocation2 + $0x20] sm:$0xff] %v2819
      %2856 = vst [vmem:[#allocation2 + $0x28] sm:$0xff] %v2820
      %2857 = vst [vmem:[#allocation2 + $0x30] sm:$0xff] %v2821
      %2858 = vst [vmem:[#allocation2 + $0x38] sm:$0xff] %v2822
      %2859 = vst [vmem:[#allocation2 + $0x40] sm:$0xff] %v2823
      %2860 = vst [vmem:[#allocation2 + $0x48] sm:$0xff] %v2824
      %2861 = vst [vmem:[#allocation2 + $0x50] sm:$0xff] %v2825
      %2862 = vst [vmem:[#allocation2 + $0x58] sm:$0xff] %v2826
      %2863 = vst [vmem:[#allocation2 + $0x60] sm:$0xff] %v2827
      %2864 = vst [vmem:[#allocation2 + $0x68] sm:$0xff] %v2828
      %2865 = vst [vmem:[#allocation2 + $0x70] sm:$0xff] %v2829
      %2866 = vst [vmem:[#allocation2 + $0x78] sm:$0xff] %v2830
      %2867 = vst [vmem:[#allocation2 + $0x80] sm:$0xff] %v2831
      %2868 = vst [vmem:[#allocation2 + $0x88] sm:$0xff] %v2832
      %2869 = vst [vmem:[#allocation2 + $0x90] sm:$0xff] %v2833
      %2870 = vst [vmem:[#allocation2 + $0x98] sm:$0xff] %v2834
      %2871 = vst [vmem:[#allocation2 + $0xa0] sm:$0xff] %v2835
      %2872 = vst [vmem:[#allocation2 + $0xa8] sm:$0xff] %v2836
      %2873 = vst [vmem:[#allocation2 + $0xb0] sm:$0xff] %v2837
      %2874 = vst [vmem:[#allocation2 + $0xb8] sm:$0xff] %v2838
      %2875 = vst [vmem:[#allocation2 + $0xc0] sm:$0xff] %v2839
      %2876 = vst [vmem:[#allocation2 + $0xc8] sm:$0xff] %v2840
      %2877 = vst [vmem:[#allocation2 + $0xd0] sm:$0xff] %v2841
      %2878 = vst [vmem:[#allocation2 + $0xd8] sm:$0xff] %v2842
      %2879 = vst [vmem:[#allocation2 + $0xe0] sm:$0xff] %v2843
      %2880 = vst [vmem:[#allocation2 + $0xe8] sm:$0xff] %v2844
      %2881 = vst [vmem:[#allocation2 + $0xf0] sm:$0xff] %v2845
      %2882 = vst [vmem:[#allocation2 + $0xf8] sm:$0xff] %v2846
      %2883 = vst [vmem:[#allocation2 + $0x100] sm:$0xff] %v2847
      %2884 = vst [vmem:[#allocation2 + $0x108] sm:$0xff] %v2848
      %2885 = vst [vmem:[#allocation2 + $0x110] sm:$0xff] %v2849
      %2886 = vst [vmem:[#allocation2 + $0x118] sm:$0xff] %v2850
      %v2887 = vld [vmem:[%s165 + $0x25] sm:$0xff]
      %v2888 = vld [vmem:[%s165 + $0x2d] sm:$0xff]
      %v2889 = vld [vmem:[%s165 + $0x35] sm:$0xff]
      %v2890 = vld [vmem:[%s165 + $0x3d] sm:$0xff]
      %v2891 = vld [vmem:[%s165 + $0x45] sm:$0xff]
      %v2892 = vld [vmem:[%s165 + $0x4d] sm:$0xff]
      %v2893 = vld [vmem:[%s165 + $0x55] sm:$0xff]
      %v2894 = vld [vmem:[%s165 + $0x5d] sm:$0xff]
      %v2895 = vld [vmem:[%s165 + $0x65] sm:$0xff]
      %v2896 = vld [vmem:[%s165 + $0x6d] sm:$0xff]
      %v2897 = vld [vmem:[%s165 + $0x75] sm:$0xff]
      %v2898 = vld [vmem:[%s165 + $0x7d] sm:$0xff]
      %v2899 = vld [vmem:[%s165 + $0x85] sm:$0xff]
      %v2900 = vld [vmem:[%s165 + $0x8d] sm:$0xff]
      %v2901 = vld [vmem:[%s165 + $0x95] sm:$0xff]
      %v2902 = vld [vmem:[%s165 + $0x9d] sm:$0xff]
      %v2903 = vld [vmem:[%s165 + $0xa5] sm:$0xff]
      %v2904 = vld [vmem:[%s165 + $0xad] sm:$0xff]
      %v2905 = vld [vmem:[%s165 + $0xb5] sm:$0xff]
      %v2906 = vld [vmem:[%s165 + $0xbd] sm:$0xff]
      %v2907 = vld [vmem:[%s165 + $0xc5] sm:$0xff]
      %v2908 = vld [vmem:[%s165 + $0xcd] sm:$0xff]
      %v2909 = vld [vmem:[%s165 + $0xd5] sm:$0xff]
      %v2910 = vld [vmem:[%s165 + $0xdd] sm:$0xff]
      %v2911 = vld [vmem:[%s165 + $0xe5] sm:$0xff]
      %v2912 = vld [vmem:[%s165 + $0xed] sm:$0xff]
      %v2913 = vld [vmem:[%s165 + $0xf5] sm:$0xff]
      %v2914 = vld [vmem:[%s165 + $0xfd] sm:$0xff]
      %v2915 = vld [vmem:[%s165 + $0x105] sm:$0xff]
      %v2916 = vld [vmem:[%s165 + $0x10d] sm:$0xff]
      %v2917 = vld [vmem:[%s165 + $0x115] sm:$0xff]
      %v2918 = vld [vmem:[%s165 + $0x11d] sm:$0xff]
      %v2919 = vld [vmem:[%s165 + $0x125] sm:$0xff]
      %v2920 = vld [vmem:[%s165 + $0x12d] sm:$0xff]
      %v2921 = vld [vmem:[%s165 + $0x135] sm:$0xff]
      %v2922 = vld [vmem:[%s165 + $0x13d] sm:$0xff]
      %v2923 = vpack.c.bf16 %v2888, %v2887
      %v2924 = vpack.c.bf16 %v2890, %v2889
      %v2925 = vpack.c.bf16 %v2892, %v2891
      %v2926 = vpack.c.bf16 %v2894, %v2893
      %v2927 = vpack.c.bf16 %v2896, %v2895
      %v2928 = vpack.c.bf16 %v2898, %v2897
      %v2929 = vpack.c.bf16 %v2900, %v2899
      %v2930 = vpack.c.bf16 %v2902, %v2901
      %v2931 = vpack.c.bf16 %v2904, %v2903
      %v2932 = vpack.c.bf16 %v2906, %v2905
      %v2933 = vpack.c.bf16 %v2908, %v2907
      %v2934 = vpack.c.bf16 %v2910, %v2909
      %v2935 = vpack.c.bf16 %v2912, %v2911
      %v2936 = vpack.c.bf16 %v2914, %v2913
      %v2937 = vpack.c.bf16 %v2916, %v2915
      %v2938 = vpack.c.bf16 %v2918, %v2917
      %v2939 = vpack.c.bf16 %v2920, %v2919
      %v2940 = vpack.c.bf16 %v2922, %v2921
      %s2941 = scalar_lea.vmem %s1, 14
      %v2942 = vld [vmem:[%s2941] sm:$0x3]
      %v2944 = vsel %vm227, %v2923, 0
      %v2947 = vsel %vm227, %v2924, 0
      %v2950 = vsel %vm227, %v2925, 0
      %v2953 = vsel %vm227, %v2926, 0
      %v2956 = vsel %vm227, %v2927, 0
      %v2959 = vsel %vm227, %v2928, 0
      %v2962 = vsel %vm227, %v2929, 0
      %v2965 = vsel %vm227, %v2930, 0
      %v2968 = vsel %vm227, %v2931, 0
      %v2971 = vsel %vm227, %v2932, 0
      %v2974 = vsel %vm227, %v2933, 0
      %v2977 = vsel %vm227, %v2934, 0
      %v2980 = vsel %vm227, %v2935, 0
      %v2983 = vsel %vm227, %v2936, 0
      %v2986 = vsel %vm227, %v2937, 0
      %v2989 = vsel %vm227, %v2938, 0
      %v2992 = vsel %vm227, %v2939, 0
      %v2995 = vsel %vm227, %v2940, 0
      %v2998 = vsel %vm282, %v2942, 0
      %3000 = vmatprep.subr.bf16.mxu0 0
      %3001 = vmatpush1.bf16.msra.mxu0 0
      %3002 = vmatprep.subr.bf16.mxu0 0
      %3003 = vmatpush1.bf16.msra.mxu0 0
      %3004 = vmatprep.subr.bf16.mxu0 0
      %3005 = vmatpush1.bf16.msra.mxu0 0
      %3006 = vmatprep.subr.bf16.mxu0 0
      %3007 = vmatpush1.bf16.msra.mxu0 0
      %3008 = vmatprep.subr.bf16.mxu0 0
      %3009 = vmatpush1.bf16.msra.mxu0 0
      %3010 = vmatprep.subr.bf16.mxu0 0
      %3011 = vmatpush1.bf16.msra.mxu0 0
      %3012 = vmatprep.subr.bf16.mxu0 0
      %3013 = vmatpush1.bf16.msra.mxu0 0
      %3014 = vmatprep.subr.bf16.mxu0 0
      %3015 = vmatpush1.bf16.msra.mxu0 %v2998
      %3016 = vmatprep.subr.bf16.mxu0 0
      %3017 = vmatpush2.bf16.msra.mxu0 0
      %3018 = vmatprep.subr.bf16.mxu0 0
      %3019 = vmatpush2.bf16.msra.mxu0 0
      %3020 = vmatprep.subr.bf16.mxu0 0
      %3021 = vmatpush2.bf16.msra.mxu0 0
      %3022 = vmatprep.subr.bf16.mxu0 0
      %3023 = vmatpush2.bf16.msra.mxu0 0
      %3024 = vmatprep.subr.bf16.mxu0 0
      %3025 = vmatpush2.bf16.msra.mxu0 0
      %3026 = vmatprep.subr.bf16.mxu0 0
      %3027 = vmatpush2.bf16.msra.mxu0 0
      %3028 = vmatprep.subr.bf16.mxu0 0
      %3029 = vmatpush2.bf16.msra.mxu0 0
      %3030 = vmatprep.subr.bf16.mxu0 0
      %3031 = vmatpush2.bf16.msra.mxu0 0
      %3032 = vmatprep.mubr.bf16.mxu0 0
      %3033 = vmatmul.mubr.bf16.gmra.mxu0 %v2944
      %v3034 = vpop.f32.mrf.mxu0
      %v3035 = vadd.f32 0.0, %v3034
      %v3036 = vpop.f32.mrf.mxu0
      %v3037 = vpop.f32.mrf.mxu0
      %v3038 = vadd.f32 0.0, %v3037
      %v3039 = vpop.f32.mrf.mxu0
      %3040 = vmatprep.mubr.bf16.mxu0 0
      %3041 = vmatmul.mubr.bf16.gmra.mxu0 %v2947
      %v3042 = vpop.f32.mrf.mxu0
      %v3043 = vadd.f32 0.0, %v3042
      %v3044 = vpop.f32.mrf.mxu0
      %v3045 = vpop.f32.mrf.mxu0
      %v3046 = vadd.f32 0.0, %v3045
      %v3047 = vpop.f32.mrf.mxu0
      %3048 = vmatprep.mubr.bf16.mxu0 0
      %3049 = vmatmul.mubr.bf16.gmra.mxu0 %v2950
      %v3050 = vpop.f32.mrf.mxu0
      %v3051 = vadd.f32 0.0, %v3050
      %v3052 = vpop.f32.mrf.mxu0
      %v3053 = vpop.f32.mrf.mxu0
      %v3054 = vadd.f32 0.0, %v3053
      %v3055 = vpop.f32.mrf.mxu0
      %3056 = vmatprep.mubr.bf16.mxu0 0
      %3057 = vmatmul.mubr.bf16.gmra.mxu0 %v2953
      %v3058 = vpop.f32.mrf.mxu0
      %v3059 = vadd.f32 0.0, %v3058
      %v3060 = vpop.f32.mrf.mxu0
      %v3061 = vpop.f32.mrf.mxu0
      %v3062 = vadd.f32 0.0, %v3061
      %v3063 = vpop.f32.mrf.mxu0
      %3064 = vmatprep.mubr.bf16.mxu0 0
      %3065 = vmatmul.mubr.bf16.gmra.mxu0 %v2956
      %v3066 = vpop.f32.mrf.mxu0
      %v3067 = vadd.f32 0.0, %v3066
      %v3068 = vpop.f32.mrf.mxu0
      %v3069 = vpop.f32.mrf.mxu0
      %v3070 = vadd.f32 0.0, %v3069
      %v3071 = vpop.f32.mrf.mxu0
      %3072 = vmatprep.mubr.bf16.mxu0 0
      %3073 = vmatmul.mubr.bf16.gmra.mxu0 %v2959
      %v3074 = vpop.f32.mrf.mxu0
      %v3075 = vadd.f32 0.0, %v3074
      %v3076 = vpop.f32.mrf.mxu0
      %v3077 = vpop.f32.mrf.mxu0
      %v3078 = vadd.f32 0.0, %v3077
      %v3079 = vpop.f32.mrf.mxu0
      %3080 = vmatprep.mubr.bf16.mxu0 0
      %3081 = vmatmul.mubr.bf16.gmra.mxu0 %v2962
      %v3082 = vpop.f32.mrf.mxu0
      %v3083 = vadd.f32 0.0, %v3082
      %v3084 = vpop.f32.mrf.mxu0
      %v3085 = vpop.f32.mrf.mxu0
      %v3086 = vadd.f32 0.0, %v3085
      %v3087 = vpop.f32.mrf.mxu0
      %3088 = vmatprep.mubr.bf16.mxu0 0
      %3089 = vmatmul.mubr.bf16.gmra.mxu0 %v2965
      %v3090 = vpop.f32.mrf.mxu0
      %v3091 = vadd.f32 0.0, %v3090
      %v3092 = vpop.f32.mrf.mxu0
      %v3093 = vpop.f32.mrf.mxu0
      %v3094 = vadd.f32 0.0, %v3093
      %v3095 = vpop.f32.mrf.mxu0
      %3096 = vmatprep.mubr.bf16.mxu0 0
      %3097 = vmatmul.mubr.bf16.gmra.mxu0 %v2968
      %v3098 = vpop.f32.mrf.mxu0
      %v3099 = vadd.f32 0.0, %v3098
      %v3100 = vpop.f32.mrf.mxu0
      %v3101 = vpop.f32.mrf.mxu0
      %v3102 = vadd.f32 0.0, %v3101
      %v3103 = vpop.f32.mrf.mxu0
      %3104 = vmatprep.mubr.bf16.mxu0 0
      %3105 = vmatmul.mubr.bf16.gmra.mxu0 %v2971
      %v3106 = vpop.f32.mrf.mxu0
      %v3107 = vadd.f32 0.0, %v3106
      %v3108 = vpop.f32.mrf.mxu0
      %v3109 = vpop.f32.mrf.mxu0
      %v3110 = vadd.f32 0.0, %v3109
      %v3111 = vpop.f32.mrf.mxu0
      %3112 = vmatprep.mubr.bf16.mxu0 0
      %3113 = vmatmul.mubr.bf16.gmra.mxu0 %v2974
      %v3114 = vpop.f32.mrf.mxu0
      %v3115 = vadd.f32 0.0, %v3114
      %v3116 = vpop.f32.mrf.mxu0
      %v3117 = vpop.f32.mrf.mxu0
      %v3118 = vadd.f32 0.0, %v3117
      %v3119 = vpop.f32.mrf.mxu0
      %3120 = vmatprep.mubr.bf16.mxu0 0
      %3121 = vmatmul.mubr.bf16.gmra.mxu0 %v2977
      %v3122 = vpop.f32.mrf.mxu0
      %v3123 = vadd.f32 0.0, %v3122
      %v3124 = vpop.f32.mrf.mxu0
      %v3125 = vpop.f32.mrf.mxu0
      %v3126 = vadd.f32 0.0, %v3125
      %v3127 = vpop.f32.mrf.mxu0
      %3128 = vmatprep.mubr.bf16.mxu0 0
      %3129 = vmatmul.mubr.bf16.gmra.mxu0 %v2980
      %v3130 = vpop.f32.mrf.mxu0
      %v3131 = vadd.f32 0.0, %v3130
      %v3132 = vpop.f32.mrf.mxu0
      %v3133 = vpop.f32.mrf.mxu0
      %v3134 = vadd.f32 0.0, %v3133
      %v3135 = vpop.f32.mrf.mxu0
      %3136 = vmatprep.mubr.bf16.mxu0 0
      %3137 = vmatmul.mubr.bf16.gmra.mxu0 %v2983
      %v3138 = vpop.f32.mrf.mxu0
      %v3139 = vadd.f32 0.0, %v3138
      %v3140 = vpop.f32.mrf.mxu0
      %v3141 = vpop.f32.mrf.mxu0
      %v3142 = vadd.f32 0.0, %v3141
      %v3143 = vpop.f32.mrf.mxu0
      %3144 = vmatprep.mubr.bf16.mxu0 0
      %3145 = vmatmul.mubr.bf16.gmra.mxu0 %v2986
      %v3146 = vpop.f32.mrf.mxu0
      %v3147 = vadd.f32 0.0, %v3146
      %v3148 = vpop.f32.mrf.mxu0
      %v3149 = vpop.f32.mrf.mxu0
      %v3150 = vadd.f32 0.0, %v3149
      %v3151 = vpop.f32.mrf.mxu0
      %3152 = vmatprep.mubr.bf16.mxu0 0
      %3153 = vmatmul.mubr.bf16.gmra.mxu0 %v2989
      %v3154 = vpop.f32.mrf.mxu0
      %v3155 = vadd.f32 0.0, %v3154
      %v3156 = vpop.f32.mrf.mxu0
      %v3157 = vpop.f32.mrf.mxu0
      %v3158 = vadd.f32 0.0, %v3157
      %v3159 = vpop.f32.mrf.mxu0
      %3160 = vmatprep.mubr.bf16.mxu0 0
      %3161 = vmatmul.mubr.bf16.gmra.mxu0 %v2992
      %v3162 = vpop.f32.mrf.mxu0
      %v3163 = vadd.f32 0.0, %v3162
      %v3164 = vpop.f32.mrf.mxu0
      %v3165 = vpop.f32.mrf.mxu0
      %v3166 = vadd.f32 0.0, %v3165
      %v3167 = vpop.f32.mrf.mxu0
      %3168 = vmatprep.mubr.bf16.mxu0 0
      %3169 = vmatmul.mubr.bf16.gmra.mxu0 %v2995
      %v3170 = vpop.f32.mrf.mxu0
      %v3171 = vadd.f32 0.0, %v3170
      %v3172 = vpop.f32.mrf.mxu0
      %v3173 = vpop.f32.mrf.mxu0
      %v3174 = vadd.f32 0.0, %v3173
      %v3175 = vpop.f32.mrf.mxu0
      %3176 = vdwg.mxu0
      %v3177 = vld [vmem:[#allocation2] sm:$0xff]
      %v3178 = vld [vmem:[#allocation2 + $0x8] sm:$0xff]
      %v3179 = vld [vmem:[#allocation2 + $0x10] sm:$0xff]
      %v3180 = vld [vmem:[#allocation2 + $0x18] sm:$0xff]
      %v3181 = vld [vmem:[#allocation2 + $0x20] sm:$0xff]
      %v3182 = vld [vmem:[#allocation2 + $0x28] sm:$0xff]
      %v3183 = vld [vmem:[#allocation2 + $0x30] sm:$0xff]
      %v3184 = vld [vmem:[#allocation2 + $0x38] sm:$0xff]
      %v3185 = vld [vmem:[#allocation2 + $0x40] sm:$0xff]
      %v3186 = vld [vmem:[#allocation2 + $0x48] sm:$0xff]
      %v3187 = vld [vmem:[#allocation2 + $0x50] sm:$0xff]
      %v3188 = vld [vmem:[#allocation2 + $0x58] sm:$0xff]
      %v3189 = vld [vmem:[#allocation2 + $0x60] sm:$0xff]
      %v3190 = vld [vmem:[#allocation2 + $0x68] sm:$0xff]
      %v3191 = vld [vmem:[#allocation2 + $0x70] sm:$0xff]
      %v3192 = vld [vmem:[#allocation2 + $0x78] sm:$0xff]
      %v3193 = vld [vmem:[#allocation2 + $0x80] sm:$0xff]
      %v3194 = vld [vmem:[#allocation2 + $0x88] sm:$0xff]
      %v3195 = vld [vmem:[#allocation2 + $0x90] sm:$0xff]
      %v3196 = vld [vmem:[#allocation2 + $0x98] sm:$0xff]
      %v3197 = vld [vmem:[#allocation2 + $0xa0] sm:$0xff]
      %v3198 = vld [vmem:[#allocation2 + $0xa8] sm:$0xff]
      %v3199 = vld [vmem:[#allocation2 + $0xb0] sm:$0xff]
      %v3200 = vld [vmem:[#allocation2 + $0xb8] sm:$0xff]
      %v3201 = vld [vmem:[#allocation2 + $0xc0] sm:$0xff]
      %v3202 = vld [vmem:[#allocation2 + $0xc8] sm:$0xff]
      %v3203 = vld [vmem:[#allocation2 + $0xd0] sm:$0xff]
      %v3204 = vld [vmem:[#allocation2 + $0xd8] sm:$0xff]
      %v3205 = vld [vmem:[#allocation2 + $0xe0] sm:$0xff]
      %v3206 = vld [vmem:[#allocation2 + $0xe8] sm:$0xff]
      %v3207 = vld [vmem:[#allocation2 + $0xf0] sm:$0xff]
      %v3208 = vld [vmem:[#allocation2 + $0xf8] sm:$0xff]
      %v3209 = vld [vmem:[#allocation2 + $0x100] sm:$0xff]
      %v3210 = vld [vmem:[#allocation2 + $0x108] sm:$0xff]
      %v3211 = vld [vmem:[#allocation2 + $0x110] sm:$0xff]
      %v3212 = vld [vmem:[#allocation2 + $0x118] sm:$0xff]
      %v3213 = vadd.f32 %v3177, %v3035
      %v3214 = vadd.f32 %v3178, %v3038
      %v3215 = vadd.f32 %v3179, %v3043
      %v3216 = vadd.f32 %v3180, %v3046
      %v3217 = vadd.f32 %v3181, %v3051
      %v3218 = vadd.f32 %v3182, %v3054
      %v3219 = vadd.f32 %v3183, %v3059
      %v3220 = vadd.f32 %v3184, %v3062
      %v3221 = vadd.f32 %v3185, %v3067
      %v3222 = vadd.f32 %v3186, %v3070
      %v3223 = vadd.f32 %v3187, %v3075
      %v3224 = vadd.f32 %v3188, %v3078
      %v3225 = vadd.f32 %v3189, %v3083
      %v3226 = vadd.f32 %v3190, %v3086
      %v3227 = vadd.f32 %v3191, %v3091
      %v3228 = vadd.f32 %v3192, %v3094
      %v3229 = vadd.f32 %v3193, %v3099
      %v3230 = vadd.f32 %v3194, %v3102
      %v3231 = vadd.f32 %v3195, %v3107
      %v3232 = vadd.f32 %v3196, %v3110
      %v3233 = vadd.f32 %v3197, %v3115
      %v3234 = vadd.f32 %v3198, %v3118
      %v3235 = vadd.f32 %v3199, %v3123
      %v3236 = vadd.f32 %v3200, %v3126
      %v3237 = vadd.f32 %v3201, %v3131
      %v3238 = vadd.f32 %v3202, %v3134
      %v3239 = vadd.f32 %v3203, %v3139
      %v3240 = vadd.f32 %v3204, %v3142
      %v3241 = vadd.f32 %v3205, %v3147
      %v3242 = vadd.f32 %v3206, %v3150
      %v3243 = vadd.f32 %v3207, %v3155
      %v3244 = vadd.f32 %v3208, %v3158
      %v3245 = vadd.f32 %v3209, %v3163
      %v3246 = vadd.f32 %v3210, %v3166
      %v3247 = vadd.f32 %v3211, %v3171
      %v3248 = vadd.f32 %v3212, %v3174
      %3249 = vst [vmem:[#allocation2] sm:$0xff] %v3213
      %3250 = vst [vmem:[#allocation2 + $0x8] sm:$0xff] %v3214
      %3251 = vst [vmem:[#allocation2 + $0x10] sm:$0xff] %v3215
      %3252 = vst [vmem:[#allocation2 + $0x18] sm:$0xff] %v3216
      %3253 = vst [vmem:[#allocation2 + $0x20] sm:$0xff] %v3217
      %3254 = vst [vmem:[#allocation2 + $0x28] sm:$0xff] %v3218
      %3255 = vst [vmem:[#allocation2 + $0x30] sm:$0xff] %v3219
      %3256 = vst [vmem:[#allocation2 + $0x38] sm:$0xff] %v3220
      %3257 = vst [vmem:[#allocation2 + $0x40] sm:$0xff] %v3221
      %3258 = vst [vmem:[#allocation2 + $0x48] sm:$0xff] %v3222
      %3259 = vst [vmem:[#allocation2 + $0x50] sm:$0xff] %v3223
      %3260 = vst [vmem:[#allocation2 + $0x58] sm:$0xff] %v3224
      %3261 = vst [vmem:[#allocation2 + $0x60] sm:$0xff] %v3225
      %3262 = vst [vmem:[#allocation2 + $0x68] sm:$0xff] %v3226
      %3263 = vst [vmem:[#allocation2 + $0x70] sm:$0xff] %v3227
      %3264 = vst [vmem:[#allocation2 + $0x78] sm:$0xff] %v3228
      %3265 = vst [vmem:[#allocation2 + $0x80] sm:$0xff] %v3229
      %3266 = vst [vmem:[#allocation2 + $0x88] sm:$0xff] %v3230
      %3267 = vst [vmem:[#allocation2 + $0x90] sm:$0xff] %v3231
      %3268 = vst [vmem:[#allocation2 + $0x98] sm:$0xff] %v3232
      %3269 = vst [vmem:[#allocation2 + $0xa0] sm:$0xff] %v3233
      %3270 = vst [vmem:[#allocation2 + $0xa8] sm:$0xff] %v3234
      %3271 = vst [vmem:[#allocation2 + $0xb0] sm:$0xff] %v3235
      %3272 = vst [vmem:[#allocation2 + $0xb8] sm:$0xff] %v3236
      %3273 = vst [vmem:[#allocation2 + $0xc0] sm:$0xff] %v3237
      %3274 = vst [vmem:[#allocation2 + $0xc8] sm:$0xff] %v3238
      %3275 = vst [vmem:[#allocation2 + $0xd0] sm:$0xff] %v3239
      %3276 = vst [vmem:[#allocation2 + $0xd8] sm:$0xff] %v3240
      %3277 = vst [vmem:[#allocation2 + $0xe0] sm:$0xff] %v3241
      %3278 = vst [vmem:[#allocation2 + $0xe8] sm:$0xff] %v3242
      %3279 = vst [vmem:[#allocation2 + $0xf0] sm:$0xff] %v3243
      %3280 = vst [vmem:[#allocation2 + $0xf8] sm:$0xff] %v3244
      %3281 = vst [vmem:[#allocation2 + $0x100] sm:$0xff] %v3245
      %3282 = vst [vmem:[#allocation2 + $0x108] sm:$0xff] %v3246
      %3283 = vst [vmem:[#allocation2 + $0x110] sm:$0xff] %v3247
      %3284 = vst [vmem:[#allocation2 + $0x118] sm:$0xff] %v3248
      %v3285 = vld [vmem:[%s165 + $0x26] sm:$0xff]
      %v3286 = vld [vmem:[%s165 + $0x2e] sm:$0xff]
      %v3287 = vld [vmem:[%s165 + $0x36] sm:$0xff]
      %v3288 = vld [vmem:[%s165 + $0x3e] sm:$0xff]
      %v3289 = vld [vmem:[%s165 + $0x46] sm:$0xff]
      %v3290 = vld [vmem:[%s165 + $0x4e] sm:$0xff]
      %v3291 = vld [vmem:[%s165 + $0x56] sm:$0xff]
      %v3292 = vld [vmem:[%s165 + $0x5e] sm:$0xff]
      %v3293 = vld [vmem:[%s165 + $0x66] sm:$0xff]
      %v3294 = vld [vmem:[%s165 + $0x6e] sm:$0xff]
      %v3295 = vld [vmem:[%s165 + $0x76] sm:$0xff]
      %v3296 = vld [vmem:[%s165 + $0x7e] sm:$0xff]
      %v3297 = vld [vmem:[%s165 + $0x86] sm:$0xff]
      %v3298 = vld [vmem:[%s165 + $0x8e] sm:$0xff]
      %v3299 = vld [vmem:[%s165 + $0x96] sm:$0xff]
      %v3300 = vld [vmem:[%s165 + $0x9e] sm:$0xff]
      %v3301 = vld [vmem:[%s165 + $0xa6] sm:$0xff]
      %v3302 = vld [vmem:[%s165 + $0xae] sm:$0xff]
      %v3303 = vld [vmem:[%s165 + $0xb6] sm:$0xff]
      %v3304 = vld [vmem:[%s165 + $0xbe] sm:$0xff]
      %v3305 = vld [vmem:[%s165 + $0xc6] sm:$0xff]
      %v3306 = vld [vmem:[%s165 + $0xce] sm:$0xff]
      %v3307 = vld [vmem:[%s165 + $0xd6] sm:$0xff]
      %v3308 = vld [vmem:[%s165 + $0xde] sm:$0xff]
      %v3309 = vld [vmem:[%s165 + $0xe6] sm:$0xff]
      %v3310 = vld [vmem:[%s165 + $0xee] sm:$0xff]
      %v3311 = vld [vmem:[%s165 + $0xf6] sm:$0xff]
      %v3312 = vld [vmem:[%s165 + $0xfe] sm:$0xff]
      %v3313 = vld [vmem:[%s165 + $0x106] sm:$0xff]
      %v3314 = vld [vmem:[%s165 + $0x10e] sm:$0xff]
      %v3315 = vld [vmem:[%s165 + $0x116] sm:$0xff]
      %v3316 = vld [vmem:[%s165 + $0x11e] sm:$0xff]
      %v3317 = vld [vmem:[%s165 + $0x126] sm:$0xff]
      %v3318 = vld [vmem:[%s165 + $0x12e] sm:$0xff]
      %v3319 = vld [vmem:[%s165 + $0x136] sm:$0xff]
      %v3320 = vld [vmem:[%s165 + $0x13e] sm:$0xff]
      %v3321 = vpack.c.bf16 %v3286, %v3285
      %v3322 = vpack.c.bf16 %v3288, %v3287
      %v3323 = vpack.c.bf16 %v3290, %v3289
      %v3324 = vpack.c.bf16 %v3292, %v3291
      %v3325 = vpack.c.bf16 %v3294, %v3293
      %v3326 = vpack.c.bf16 %v3296, %v3295
      %v3327 = vpack.c.bf16 %v3298, %v3297
      %v3328 = vpack.c.bf16 %v3300, %v3299
      %v3329 = vpack.c.bf16 %v3302, %v3301
      %v3330 = vpack.c.bf16 %v3304, %v3303
      %v3331 = vpack.c.bf16 %v3306, %v3305
      %v3332 = vpack.c.bf16 %v3308, %v3307
      %v3333 = vpack.c.bf16 %v3310, %v3309
      %v3334 = vpack.c.bf16 %v3312, %v3311
      %v3335 = vpack.c.bf16 %v3314, %v3313
      %v3336 = vpack.c.bf16 %v3316, %v3315
      %v3337 = vpack.c.bf16 %v3318, %v3317
      %v3338 = vpack.c.bf16 %v3320, %v3319
      %s3339 = scalar_lea.vmem %s1, 16
      %v3340 = vld [vmem:[%s3339] sm:$0x3]
      %v3342 = vsel %vm227, %v3321, 0
      %v3345 = vsel %vm227, %v3322, 0
      %v3348 = vsel %vm227, %v3323, 0
      %v3351 = vsel %vm227, %v3324, 0
      %v3354 = vsel %vm227, %v3325, 0
      %v3357 = vsel %vm227, %v3326, 0
      %v3360 = vsel %vm227, %v3327, 0
      %v3363 = vsel %vm227, %v3328, 0
      %v3366 = vsel %vm227, %v3329, 0
      %v3369 = vsel %vm227, %v3330, 0
      %v3372 = vsel %vm227, %v3331, 0
      %v3375 = vsel %vm227, %v3332, 0
      %v3378 = vsel %vm227, %v3333, 0
      %v3381 = vsel %vm227, %v3334, 0
      %v3384 = vsel %vm227, %v3335, 0
      %v3387 = vsel %vm227, %v3336, 0
      %v3390 = vsel %vm227, %v3337, 0
      %v3393 = vsel %vm227, %v3338, 0
      %v3396 = vsel %vm282, %v3340, 0
      %3398 = vmatprep.subr.bf16.mxu0 0
      %3399 = vmatpush1.bf16.msra.mxu0 0
      %3400 = vmatprep.subr.bf16.mxu0 0
      %3401 = vmatpush1.bf16.msra.mxu0 0
      %3402 = vmatprep.subr.bf16.mxu0 0
      %3403 = vmatpush1.bf16.msra.mxu0 0
      %3404 = vmatprep.subr.bf16.mxu0 0
      %3405 = vmatpush1.bf16.msra.mxu0 0
      %3406 = vmatprep.subr.bf16.mxu0 0
      %3407 = vmatpush1.bf16.msra.mxu0 0
      %3408 = vmatprep.subr.bf16.mxu0 0
      %3409 = vmatpush1.bf16.msra.mxu0 0
      %3410 = vmatprep.subr.bf16.mxu0 0
      %3411 = vmatpush1.bf16.msra.mxu0 0
      %3412 = vmatprep.subr.bf16.mxu0 0
      %3413 = vmatpush1.bf16.msra.mxu0 %v3396
      %3414 = vmatprep.subr.bf16.mxu0 0
      %3415 = vmatpush2.bf16.msra.mxu0 0
      %3416 = vmatprep.subr.bf16.mxu0 0
      %3417 = vmatpush2.bf16.msra.mxu0 0
      %3418 = vmatprep.subr.bf16.mxu0 0
      %3419 = vmatpush2.bf16.msra.mxu0 0
      %3420 = vmatprep.subr.bf16.mxu0 0
      %3421 = vmatpush2.bf16.msra.mxu0 0
      %3422 = vmatprep.subr.bf16.mxu0 0
      %3423 = vmatpush2.bf16.msra.mxu0 0
      %3424 = vmatprep.subr.bf16.mxu0 0
      %3425 = vmatpush2.bf16.msra.mxu0 0
      %3426 = vmatprep.subr.bf16.mxu0 0
      %3427 = vmatpush2.bf16.msra.mxu0 0
      %3428 = vmatprep.subr.bf16.mxu0 0
      %3429 = vmatpush2.bf16.msra.mxu0 0
      %3430 = vmatprep.mubr.bf16.mxu0 0
      %3431 = vmatmul.mubr.bf16.gmra.mxu0 %v3342
      %v3432 = vpop.f32.mrf.mxu0
      %v3433 = vadd.f32 0.0, %v3432
      %v3434 = vpop.f32.mrf.mxu0
      %v3435 = vpop.f32.mrf.mxu0
      %v3436 = vadd.f32 0.0, %v3435
      %v3437 = vpop.f32.mrf.mxu0
      %3438 = vmatprep.mubr.bf16.mxu0 0
      %3439 = vmatmul.mubr.bf16.gmra.mxu0 %v3345
      %v3440 = vpop.f32.mrf.mxu0
      %v3441 = vadd.f32 0.0, %v3440
      %v3442 = vpop.f32.mrf.mxu0
      %v3443 = vpop.f32.mrf.mxu0
      %v3444 = vadd.f32 0.0, %v3443
      %v3445 = vpop.f32.mrf.mxu0
      %3446 = vmatprep.mubr.bf16.mxu0 0
      %3447 = vmatmul.mubr.bf16.gmra.mxu0 %v3348
      %v3448 = vpop.f32.mrf.mxu0
      %v3449 = vadd.f32 0.0, %v3448
      %v3450 = vpop.f32.mrf.mxu0
      %v3451 = vpop.f32.mrf.mxu0
      %v3452 = vadd.f32 0.0, %v3451
      %v3453 = vpop.f32.mrf.mxu0
      %3454 = vmatprep.mubr.bf16.mxu0 0
      %3455 = vmatmul.mubr.bf16.gmra.mxu0 %v3351
      %v3456 = vpop.f32.mrf.mxu0
      %v3457 = vadd.f32 0.0, %v3456
      %v3458 = vpop.f32.mrf.mxu0
      %v3459 = vpop.f32.mrf.mxu0
      %v3460 = vadd.f32 0.0, %v3459
      %v3461 = vpop.f32.mrf.mxu0
      %3462 = vmatprep.mubr.bf16.mxu0 0
      %3463 = vmatmul.mubr.bf16.gmra.mxu0 %v3354
      %v3464 = vpop.f32.mrf.mxu0
      %v3465 = vadd.f32 0.0, %v3464
      %v3466 = vpop.f32.mrf.mxu0
      %v3467 = vpop.f32.mrf.mxu0
      %v3468 = vadd.f32 0.0, %v3467
      %v3469 = vpop.f32.mrf.mxu0
      %3470 = vmatprep.mubr.bf16.mxu0 0
      %3471 = vmatmul.mubr.bf16.gmra.mxu0 %v3357
      %v3472 = vpop.f32.mrf.mxu0
      %v3473 = vadd.f32 0.0, %v3472
      %v3474 = vpop.f32.mrf.mxu0
      %v3475 = vpop.f32.mrf.mxu0
      %v3476 = vadd.f32 0.0, %v3475
      %v3477 = vpop.f32.mrf.mxu0
      %3478 = vmatprep.mubr.bf16.mxu0 0
      %3479 = vmatmul.mubr.bf16.gmra.mxu0 %v3360
      %v3480 = vpop.f32.mrf.mxu0
      %v3481 = vadd.f32 0.0, %v3480
      %v3482 = vpop.f32.mrf.mxu0
      %v3483 = vpop.f32.mrf.mxu0
      %v3484 = vadd.f32 0.0, %v3483
      %v3485 = vpop.f32.mrf.mxu0
      %3486 = vmatprep.mubr.bf16.mxu0 0
      %3487 = vmatmul.mubr.bf16.gmra.mxu0 %v3363
      %v3488 = vpop.f32.mrf.mxu0
      %v3489 = vadd.f32 0.0, %v3488
      %v3490 = vpop.f32.mrf.mxu0
      %v3491 = vpop.f32.mrf.mxu0
      %v3492 = vadd.f32 0.0, %v3491
      %v3493 = vpop.f32.mrf.mxu0
      %3494 = vmatprep.mubr.bf16.mxu0 0
      %3495 = vmatmul.mubr.bf16.gmra.mxu0 %v3366
      %v3496 = vpop.f32.mrf.mxu0
      %v3497 = vadd.f32 0.0, %v3496
      %v3498 = vpop.f32.mrf.mxu0
      %v3499 = vpop.f32.mrf.mxu0
      %v3500 = vadd.f32 0.0, %v3499
      %v3501 = vpop.f32.mrf.mxu0
      %3502 = vmatprep.mubr.bf16.mxu0 0
      %3503 = vmatmul.mubr.bf16.gmra.mxu0 %v3369
      %v3504 = vpop.f32.mrf.mxu0
      %v3505 = vadd.f32 0.0, %v3504
      %v3506 = vpop.f32.mrf.mxu0
      %v3507 = vpop.f32.mrf.mxu0
      %v3508 = vadd.f32 0.0, %v3507
      %v3509 = vpop.f32.mrf.mxu0
      %3510 = vmatprep.mubr.bf16.mxu0 0
      %3511 = vmatmul.mubr.bf16.gmra.mxu0 %v3372
      %v3512 = vpop.f32.mrf.mxu0
      %v3513 = vadd.f32 0.0, %v3512
      %v3514 = vpop.f32.mrf.mxu0
      %v3515 = vpop.f32.mrf.mxu0
      %v3516 = vadd.f32 0.0, %v3515
      %v3517 = vpop.f32.mrf.mxu0
      %3518 = vmatprep.mubr.bf16.mxu0 0
      %3519 = vmatmul.mubr.bf16.gmra.mxu0 %v3375
      %v3520 = vpop.f32.mrf.mxu0
      %v3521 = vadd.f32 0.0, %v3520
      %v3522 = vpop.f32.mrf.mxu0
      %v3523 = vpop.f32.mrf.mxu0
      %v3524 = vadd.f32 0.0, %v3523
      %v3525 = vpop.f32.mrf.mxu0
      %3526 = vmatprep.mubr.bf16.mxu0 0
      %3527 = vmatmul.mubr.bf16.gmra.mxu0 %v3378
      %v3528 = vpop.f32.mrf.mxu0
      %v3529 = vadd.f32 0.0, %v3528
      %v3530 = vpop.f32.mrf.mxu0
      %v3531 = vpop.f32.mrf.mxu0
      %v3532 = vadd.f32 0.0, %v3531
      %v3533 = vpop.f32.mrf.mxu0
      %3534 = vmatprep.mubr.bf16.mxu0 0
      %3535 = vmatmul.mubr.bf16.gmra.mxu0 %v3381
      %v3536 = vpop.f32.mrf.mxu0
      %v3537 = vadd.f32 0.0, %v3536
      %v3538 = vpop.f32.mrf.mxu0
      %v3539 = vpop.f32.mrf.mxu0
      %v3540 = vadd.f32 0.0, %v3539
      %v3541 = vpop.f32.mrf.mxu0
      %3542 = vmatprep.mubr.bf16.mxu0 0
      %3543 = vmatmul.mubr.bf16.gmra.mxu0 %v3384
      %v3544 = vpop.f32.mrf.mxu0
      %v3545 = vadd.f32 0.0, %v3544
      %v3546 = vpop.f32.mrf.mxu0
      %v3547 = vpop.f32.mrf.mxu0
      %v3548 = vadd.f32 0.0, %v3547
      %v3549 = vpop.f32.mrf.mxu0
      %3550 = vmatprep.mubr.bf16.mxu0 0
      %3551 = vmatmul.mubr.bf16.gmra.mxu0 %v3387
      %v3552 = vpop.f32.mrf.mxu0
      %v3553 = vadd.f32 0.0, %v3552
      %v3554 = vpop.f32.mrf.mxu0
      %v3555 = vpop.f32.mrf.mxu0
      %v3556 = vadd.f32 0.0, %v3555
      %v3557 = vpop.f32.mrf.mxu0
      %3558 = vmatprep.mubr.bf16.mxu0 0
      %3559 = vmatmul.mubr.bf16.gmra.mxu0 %v3390
      %v3560 = vpop.f32.mrf.mxu0
      %v3561 = vadd.f32 0.0, %v3560
      %v3562 = vpop.f32.mrf.mxu0
      %v3563 = vpop.f32.mrf.mxu0
      %v3564 = vadd.f32 0.0, %v3563
      %v3565 = vpop.f32.mrf.mxu0
      %3566 = vmatprep.mubr.bf16.mxu0 0
      %3567 = vmatmul.mubr.bf16.gmra.mxu0 %v3393
      %v3568 = vpop.f32.mrf.mxu0
      %v3569 = vadd.f32 0.0, %v3568
      %v3570 = vpop.f32.mrf.mxu0
      %v3571 = vpop.f32.mrf.mxu0
      %v3572 = vadd.f32 0.0, %v3571
      %v3573 = vpop.f32.mrf.mxu0
      %3574 = vdwg.mxu0
      %v3575 = vld [vmem:[#allocation2] sm:$0xff]
      %v3576 = vld [vmem:[#allocation2 + $0x8] sm:$0xff]
      %v3577 = vld [vmem:[#allocation2 + $0x10] sm:$0xff]
      %v3578 = vld [vmem:[#allocation2 + $0x18] sm:$0xff]
      %v3579 = vld [vmem:[#allocation2 + $0x20] sm:$0xff]
      %v3580 = vld [vmem:[#allocation2 + $0x28] sm:$0xff]
      %v3581 = vld [vmem:[#allocation2 + $0x30] sm:$0xff]
      %v3582 = vld [vmem:[#allocation2 + $0x38] sm:$0xff]
      %v3583 = vld [vmem:[#allocation2 + $0x40] sm:$0xff]
      %v3584 = vld [vmem:[#allocation2 + $0x48] sm:$0xff]
      %v3585 = vld [vmem:[#allocation2 + $0x50] sm:$0xff]
      %v3586 = vld [vmem:[#allocation2 + $0x58] sm:$0xff]
      %v3587 = vld [vmem:[#allocation2 + $0x60] sm:$0xff]
      %v3588 = vld [vmem:[#allocation2 + $0x68] sm:$0xff]
      %v3589 = vld [vmem:[#allocation2 + $0x70] sm:$0xff]
      %v3590 = vld [vmem:[#allocation2 + $0x78] sm:$0xff]
      %v3591 = vld [vmem:[#allocation2 + $0x80] sm:$0xff]
      %v3592 = vld [vmem:[#allocation2 + $0x88] sm:$0xff]
      %v3593 = vld [vmem:[#allocation2 + $0x90] sm:$0xff]
      %v3594 = vld [vmem:[#allocation2 + $0x98] sm:$0xff]
      %v3595 = vld [vmem:[#allocation2 + $0xa0] sm:$0xff]
      %v3596 = vld [vmem:[#allocation2 + $0xa8] sm:$0xff]
      %v3597 = vld [vmem:[#allocation2 + $0xb0] sm:$0xff]
      %v3598 = vld [vmem:[#allocation2 + $0xb8] sm:$0xff]
      %v3599 = vld [vmem:[#allocation2 + $0xc0] sm:$0xff]
      %v3600 = vld [vmem:[#allocation2 + $0xc8] sm:$0xff]
      %v3601 = vld [vmem:[#allocation2 + $0xd0] sm:$0xff]
      %v3602 = vld [vmem:[#allocation2 + $0xd8] sm:$0xff]
      %v3603 = vld [vmem:[#allocation2 + $0xe0] sm:$0xff]
      %v3604 = vld [vmem:[#allocation2 + $0xe8] sm:$0xff]
      %v3605 = vld [vmem:[#allocation2 + $0xf0] sm:$0xff]
      %v3606 = vld [vmem:[#allocation2 + $0xf8] sm:$0xff]
      %v3607 = vld [vmem:[#allocation2 + $0x100] sm:$0xff]
      %v3608 = vld [vmem:[#allocation2 + $0x108] sm:$0xff]
      %v3609 = vld [vmem:[#allocation2 + $0x110] sm:$0xff]
      %v3610 = vld [vmem:[#allocation2 + $0x118] sm:$0xff]
      %v3611 = vadd.f32 %v3575, %v3433
      %v3612 = vadd.f32 %v3576, %v3436
      %v3613 = vadd.f32 %v3577, %v3441
      %v3614 = vadd.f32 %v3578, %v3444
      %v3615 = vadd.f32 %v3579, %v3449
      %v3616 = vadd.f32 %v3580, %v3452
      %v3617 = vadd.f32 %v3581, %v3457
      %v3618 = vadd.f32 %v3582, %v3460
      %v3619 = vadd.f32 %v3583, %v3465
      %v3620 = vadd.f32 %v3584, %v3468
      %v3621 = vadd.f32 %v3585, %v3473
      %v3622 = vadd.f32 %v3586, %v3476
      %v3623 = vadd.f32 %v3587, %v3481
      %v3624 = vadd.f32 %v3588, %v3484
      %v3625 = vadd.f32 %v3589, %v3489
      %v3626 = vadd.f32 %v3590, %v3492
      %v3627 = vadd.f32 %v3591, %v3497
      %v3628 = vadd.f32 %v3592, %v3500
      %v3629 = vadd.f32 %v3593, %v3505
      %v3630 = vadd.f32 %v3594, %v3508
      %v3631 = vadd.f32 %v3595, %v3513
      %v3632 = vadd.f32 %v3596, %v3516
      %v3633 = vadd.f32 %v3597, %v3521
      %v3634 = vadd.f32 %v3598, %v3524
      %v3635 = vadd.f32 %v3599, %v3529
      %v3636 = vadd.f32 %v3600, %v3532
      %v3637 = vadd.f32 %v3601, %v3537
      %v3638 = vadd.f32 %v3602, %v3540
      %v3639 = vadd.f32 %v3603, %v3545
      %v3640 = vadd.f32 %v3604, %v3548
      %v3641 = vadd.f32 %v3605, %v3553
      %v3642 = vadd.f32 %v3606, %v3556
      %v3643 = vadd.f32 %v3607, %v3561
      %v3644 = vadd.f32 %v3608, %v3564
      %v3645 = vadd.f32 %v3609, %v3569
      %v3646 = vadd.f32 %v3610, %v3572
      %3647 = vst [vmem:[#allocation2] sm:$0xff] %v3611
      %3648 = vst [vmem:[#allocation2 + $0x8] sm:$0xff] %v3612
      %3649 = vst [vmem:[#allocation2 + $0x10] sm:$0xff] %v3613
      %3650 = vst [vmem:[#allocation2 + $0x18] sm:$0xff] %v3614
      %3651 = vst [vmem:[#allocation2 + $0x20] sm:$0xff] %v3615
      %3652 = vst [vmem:[#allocation2 + $0x28] sm:$0xff] %v3616
      %3653 = vst [vmem:[#allocation2 + $0x30] sm:$0xff] %v3617
      %3654 = vst [vmem:[#allocation2 + $0x38] sm:$0xff] %v3618
      %3655 = vst [vmem:[#allocation2 + $0x40] sm:$0xff] %v3619
      %3656 = vst [vmem:[#allocation2 + $0x48] sm:$0xff] %v3620
      %3657 = vst [vmem:[#allocation2 + $0x50] sm:$0xff] %v3621
      %3658 = vst [vmem:[#allocation2 + $0x58] sm:$0xff] %v3622
      %3659 = vst [vmem:[#allocation2 + $0x60] sm:$0xff] %v3623
      %3660 = vst [vmem:[#allocation2 + $0x68] sm:$0xff] %v3624
      %3661 = vst [vmem:[#allocation2 + $0x70] sm:$0xff] %v3625
      %3662 = vst [vmem:[#allocation2 + $0x78] sm:$0xff] %v3626
      %3663 = vst [vmem:[#allocation2 + $0x80] sm:$0xff] %v3627
      %3664 = vst [vmem:[#allocation2 + $0x88] sm:$0xff] %v3628
      %3665 = vst [vmem:[#allocation2 + $0x90] sm:$0xff] %v3629
      %3666 = vst [vmem:[#allocation2 + $0x98] sm:$0xff] %v3630
      %3667 = vst [vmem:[#allocation2 + $0xa0] sm:$0xff] %v3631
      %3668 = vst [vmem:[#allocation2 + $0xa8] sm:$0xff] %v3632
      %3669 = vst [vmem:[#allocation2 + $0xb0] sm:$0xff] %v3633
      %3670 = vst [vmem:[#allocation2 + $0xb8] sm:$0xff] %v3634
      %3671 = vst [vmem:[#allocation2 + $0xc0] sm:$0xff] %v3635
      %3672 = vst [vmem:[#allocation2 + $0xc8] sm:$0xff] %v3636
      %3673 = vst [vmem:[#allocation2 + $0xd0] sm:$0xff] %v3637
      %3674 = vst [vmem:[#allocation2 + $0xd8] sm:$0xff] %v3638
      %3675 = vst [vmem:[#allocation2 + $0xe0] sm:$0xff] %v3639
      %3676 = vst [vmem:[#allocation2 + $0xe8] sm:$0xff] %v3640
      %3677 = vst [vmem:[#allocation2 + $0xf0] sm:$0xff] %v3641
      %3678 = vst [vmem:[#allocation2 + $0xf8] sm:$0xff] %v3642
      %3679 = vst [vmem:[#allocation2 + $0x100] sm:$0xff] %v3643
      %3680 = vst [vmem:[#allocation2 + $0x108] sm:$0xff] %v3644
      %3681 = vst [vmem:[#allocation2 + $0x110] sm:$0xff] %v3645
      %3682 = vst [vmem:[#allocation2 + $0x118] sm:$0xff] %v3646
      %v3683 = vld [vmem:[#allocation2] sm:$0xff]
      %v3684 = vld [vmem:[#allocation2 + $0x8] sm:$0xff]
      %v3685 = vld [vmem:[#allocation2 + $0x10] sm:$0xff]
      %v3686 = vld [vmem:[#allocation2 + $0x18] sm:$0xff]
      %v3687 = vld [vmem:[#allocation2 + $0x20] sm:$0xff]
      %v3688 = vld [vmem:[#allocation2 + $0x28] sm:$0xff]
      %v3689 = vld [vmem:[#allocation2 + $0x30] sm:$0xff]
      %v3690 = vld [vmem:[#allocation2 + $0x38] sm:$0xff]
      %v3691 = vld [vmem:[#allocation2 + $0x40] sm:$0xff]
      %v3692 = vld [vmem:[#allocation2 + $0x48] sm:$0xff]
      %v3693 = vld [vmem:[#allocation2 + $0x50] sm:$0xff]
      %v3694 = vld [vmem:[#allocation2 + $0x58] sm:$0xff]
      %v3695 = vld [vmem:[#allocation2 + $0x60] sm:$0xff]
      %v3696 = vld [vmem:[#allocation2 + $0x68] sm:$0xff]
      %v3697 = vld [vmem:[#allocation2 + $0x70] sm:$0xff]
      %v3698 = vld [vmem:[#allocation2 + $0x78] sm:$0xff]
      %v3699 = vld [vmem:[#allocation2 + $0x80] sm:$0xff]
      %v3700 = vld [vmem:[#allocation2 + $0x88] sm:$0xff]
      %v3701 = vld [vmem:[#allocation2 + $0x90] sm:$0xff]
      %v3702 = vld [vmem:[#allocation2 + $0x98] sm:$0xff]
      %v3703 = vld [vmem:[#allocation2 + $0xa0] sm:$0xff]
      %v3704 = vld [vmem:[#allocation2 + $0xa8] sm:$0xff]
      %v3705 = vld [vmem:[#allocation2 + $0xb0] sm:$0xff]
      %v3706 = vld [vmem:[#allocation2 + $0xb8] sm:$0xff]
      %v3707 = vld [vmem:[#allocation2 + $0xc0] sm:$0xff]
      %v3708 = vld [vmem:[#allocation2 + $0xc8] sm:$0xff]
      %v3709 = vld [vmem:[#allocation2 + $0xd0] sm:$0xff]
      %v3710 = vld [vmem:[#allocation2 + $0xd8] sm:$0xff]
      %v3711 = vld [vmem:[#allocation2 + $0xe0] sm:$0xff]
      %v3712 = vld [vmem:[#allocation2 + $0xe8] sm:$0xff]
      %v3713 = vld [vmem:[#allocation2 + $0xf0] sm:$0xff]
      %v3714 = vld [vmem:[#allocation2 + $0xf8] sm:$0xff]
      %v3715 = vld [vmem:[#allocation2 + $0x100] sm:$0xff]
      %v3716 = vld [vmem:[#allocation2 + $0x108] sm:$0xff]
      %v3717 = vld [vmem:[#allocation2 + $0x110] sm:$0xff]
      %v3718 = vld [vmem:[#allocation2 + $0x118] sm:$0xff]
      %v3719 = vld [vmem:[%s2] sm:$0x1]
      %v3721 = vlaneseq
      %v3722 = vshrl.u32 %v3721, 7
      %v3723 = vsub.s32 0, %v3722
      %v3724 = vrot.slane %v3719, %v3723
      %v3726 = vadd.f32 %v3683, %v3724
      %v3727 = vadd.f32 %v3684, %v3724
      %v3728 = vadd.f32 %v3685, %v3724
      %v3729 = vadd.f32 %v3686, %v3724
      %v3730 = vadd.f32 %v3687, %v3724
      %v3731 = vadd.f32 %v3688, %v3724
      %v3732 = vadd.f32 %v3689, %v3724
      %v3733 = vadd.f32 %v3690, %v3724
      %v3734 = vadd.f32 %v3691, %v3724
      %v3735 = vadd.f32 %v3692, %v3724
      %v3736 = vadd.f32 %v3693, %v3724
      %v3737 = vadd.f32 %v3694, %v3724
      %v3738 = vadd.f32 %v3695, %v3724
      %v3739 = vadd.f32 %v3696, %v3724
      %v3740 = vadd.f32 %v3697, %v3724
      %v3741 = vadd.f32 %v3698, %v3724
      %v3742 = vadd.f32 %v3699, %v3724
      %v3743 = vadd.f32 %v3700, %v3724
      %v3744 = vadd.f32 %v3701, %v3724
      %v3745 = vadd.f32 %v3702, %v3724
      %v3746 = vadd.f32 %v3703, %v3724
      %v3747 = vadd.f32 %v3704, %v3724
      %v3748 = vadd.f32 %v3705, %v3724
      %v3749 = vadd.f32 %v3706, %v3724
      %v3750 = vadd.f32 %v3707, %v3724
      %v3751 = vadd.f32 %v3708, %v3724
      %v3752 = vadd.f32 %v3709, %v3724
      %v3753 = vadd.f32 %v3710, %v3724
      %v3754 = vadd.f32 %v3711, %v3724
      %v3755 = vadd.f32 %v3712, %v3724
      %v3756 = vadd.f32 %v3713, %v3724
      %v3757 = vadd.f32 %v3714, %v3724
      %v3758 = vadd.f32 %v3715, %v3724
      %v3759 = vadd.f32 %v3716, %v3724
      %v3760 = vadd.f32 %v3717, %v3724
      %v3761 = vadd.f32 %v3718, %v3724
      %v3762 = vlaneseq
      %v3763 = vand.u32 %v3762, 127
      %vm3764 = vcmp.ge.s32.totalorder %v3763, 18
      %vm3765 = vcmp.lt.s32.totalorder %v3763, 27
      %vm3766 = vmand %vm3764, %vm3765
      %v3767 = vxor.u32 %v3726, 2147483648
      %v3768 = vxor.u32 %v3727, 2147483648
      %v3769 = vxor.u32 %v3728, 2147483648
      %v3770 = vxor.u32 %v3729, 2147483648
      %v3771 = vxor.u32 %v3730, 2147483648
      %v3772 = vxor.u32 %v3731, 2147483648
      %v3773 = vxor.u32 %v3732, 2147483648
      %v3774 = vxor.u32 %v3733, 2147483648
      %v3775 = vxor.u32 %v3734, 2147483648
      %v3776 = vxor.u32 %v3735, 2147483648
      %v3777 = vxor.u32 %v3736, 2147483648
      %v3778 = vxor.u32 %v3737, 2147483648
      %v3779 = vxor.u32 %v3738, 2147483648
      %v3780 = vxor.u32 %v3739, 2147483648
      %v3781 = vxor.u32 %v3740, 2147483648
      %v3782 = vxor.u32 %v3741, 2147483648
      %v3783 = vxor.u32 %v3742, 2147483648
      %v3784 = vxor.u32 %v3743, 2147483648
      %v3785 = vxor.u32 %v3744, 2147483648
      %v3786 = vxor.u32 %v3745, 2147483648
      %v3787 = vxor.u32 %v3746, 2147483648
      %v3788 = vxor.u32 %v3747, 2147483648
      %v3789 = vxor.u32 %v3748, 2147483648
      %v3790 = vxor.u32 %v3749, 2147483648
      %v3791 = vxor.u32 %v3750, 2147483648
      %v3792 = vxor.u32 %v3751, 2147483648
      %v3793 = vxor.u32 %v3752, 2147483648
      %v3794 = vxor.u32 %v3753, 2147483648
      %v3795 = vxor.u32 %v3754, 2147483648
      %v3796 = vxor.u32 %v3755, 2147483648
      %v3797 = vxor.u32 %v3756, 2147483648
      %v3798 = vxor.u32 %v3757, 2147483648
      %v3799 = vxor.u32 %v3758, 2147483648
      %v3800 = vxor.u32 %v3759, 2147483648
      %v3801 = vxor.u32 %v3760, 2147483648
      %v3802 = vxor.u32 %v3761, 2147483648
      %v3803 = vmul.f32 %v3767, 1.442695
      %v3804 = vpow.pop %v3803
      %v3805 = vmul.f32 %v3768, 1.442695
      %v3806 = vpow.pop %v3805
      %v3807 = vmul.f32 %v3769, 1.442695
      %v3808 = vpow.pop %v3807
      %v3809 = vmul.f32 %v3770, 1.442695
      %v3810 = vpow.pop %v3809
      %v3811 = vmul.f32 %v3771, 1.442695
      %v3812 = vpow.pop %v3811
      %v3813 = vmul.f32 %v3772, 1.442695
      %v3814 = vpow.pop %v3813
      %v3815 = vmul.f32 %v3773, 1.442695
      %v3816 = vpow.pop %v3815
      %v3817 = vmul.f32 %v3774, 1.442695
      %v3818 = vpow.pop %v3817
      %v3819 = vmul.f32 %v3775, 1.442695
      %v3820 = vpow.pop %v3819
      %v3821 = vmul.f32 %v3776, 1.442695
      %v3822 = vpow.pop %v3821
      %v3823 = vmul.f32 %v3777, 1.442695
      %v3824 = vpow.pop %v3823
      %v3825 = vmul.f32 %v3778, 1.442695
      %v3826 = vpow.pop %v3825
      %v3827 = vmul.f32 %v3779, 1.442695
      %v3828 = vpow.pop %v3827
      %v3829 = vmul.f32 %v3780, 1.442695
      %v3830 = vpow.pop %v3829
      %v3831 = vmul.f32 %v3781, 1.442695
      %v3832 = vpow.pop %v3831
      %v3833 = vmul.f32 %v3782, 1.442695
      %v3834 = vpow.pop %v3833
      %v3835 = vmul.f32 %v3783, 1.442695
      %v3836 = vpow.pop %v3835
      %v3837 = vmul.f32 %v3784, 1.442695
      %v3838 = vpow.pop %v3837
      %v3839 = vmul.f32 %v3785, 1.442695
      %v3840 = vpow.pop %v3839
      %v3841 = vmul.f32 %v3786, 1.442695
      %v3842 = vpow.pop %v3841
      %v3843 = vmul.f32 %v3787, 1.442695
      %v3844 = vpow.pop %v3843
      %v3845 = vmul.f32 %v3788, 1.442695
      %v3846 = vpow.pop %v3845
      %v3847 = vmul.f32 %v3789, 1.442695
      %v3848 = vpow.pop %v3847
      %v3849 = vmul.f32 %v3790, 1.442695
      %v3850 = vpow.pop %v3849
      %v3851 = vmul.f32 %v3791, 1.442695
      %v3852 = vpow.pop %v3851
      %v3853 = vmul.f32 %v3792, 1.442695
      %v3854 = vpow.pop %v3853
      %v3855 = vmul.f32 %v3793, 1.442695
      %v3856 = vpow.pop %v3855
      %v3857 = vmul.f32 %v3794, 1.442695
      %v3858 = vpow.pop %v3857
      %v3859 = vmul.f32 %v3795, 1.442695
      %v3860 = vpow.pop %v3859
      %v3861 = vmul.f32 %v3796, 1.442695
      %v3862 = vpow.pop %v3861
      %v3863 = vmul.f32 %v3797, 1.442695
      %v3864 = vpow.pop %v3863
      %v3865 = vmul.f32 %v3798, 1.442695
      %v3866 = vpow.pop %v3865
      %v3867 = vmul.f32 %v3799, 1.442695
      %v3868 = vpow.pop %v3867
      %v3869 = vmul.f32 %v3800, 1.442695
      %v3870 = vpow.pop %v3869
      %v3871 = vmul.f32 %v3801, 1.442695
      %v3872 = vpow.pop %v3871
      %v3873 = vmul.f32 %v3802, 1.442695
      %v3874 = vpow.pop %v3873
      %v3875 = vadd.f32 %v3804, 1.0
      %v3876 = vadd.f32 %v3806, 1.0
      %v3877 = vadd.f32 %v3808, 1.0
      %v3878 = vadd.f32 %v3810, 1.0
      %v3879 = vadd.f32 %v3812, 1.0
      %v3880 = vadd.f32 %v3814, 1.0
      %v3881 = vadd.f32 %v3816, 1.0
      %v3882 = vadd.f32 %v3818, 1.0
      %v3883 = vadd.f32 %v3820, 1.0
      %v3884 = vadd.f32 %v3822, 1.0
      %v3885 = vadd.f32 %v3824, 1.0
      %v3886 = vadd.f32 %v3826, 1.0
      %v3887 = vadd.f32 %v3828, 1.0
      %v3888 = vadd.f32 %v3830, 1.0
      %v3889 = vadd.f32 %v3832, 1.0
      %v3890 = vadd.f32 %v3834, 1.0
      %v3891 = vadd.f32 %v3836, 1.0
      %v3892 = vadd.f32 %v3838, 1.0
      %v3893 = vadd.f32 %v3840, 1.0
      %v3894 = vadd.f32 %v3842, 1.0
      %v3895 = vadd.f32 %v3844, 1.0
      %v3896 = vadd.f32 %v3846, 1.0
      %v3897 = vadd.f32 %v3848, 1.0
      %v3898 = vadd.f32 %v3850, 1.0
      %v3899 = vadd.f32 %v3852, 1.0
      %v3900 = vadd.f32 %v3854, 1.0
      %v3901 = vadd.f32 %v3856, 1.0
      %v3902 = vadd.f32 %v3858, 1.0
      %v3903 = vadd.f32 %v3860, 1.0
      %v3904 = vadd.f32 %v3862, 1.0
      %v3905 = vadd.f32 %v3864, 1.0
      %v3906 = vadd.f32 %v3866, 1.0
      %v3907 = vadd.f32 %v3868, 1.0
      %v3908 = vadd.f32 %v3870, 1.0
      %v3909 = vadd.f32 %v3872, 1.0
      %v3910 = vadd.f32 %v3874, 1.0
      %v3911 = vrcp.pop %v3875
      %v3912 = vmul.f32 1.0, %v3911
      %v3913 = vrcp.pop %v3876
      %v3914 = vmul.f32 1.0, %v3913
      %v3915 = vrcp.pop %v3877
      %v3916 = vmul.f32 1.0, %v3915
      %v3917 = vrcp.pop %v3878
      %v3918 = vmul.f32 1.0, %v3917
      %v3919 = vrcp.pop %v3879
      %v3920 = vmul.f32 1.0, %v3919
      %v3921 = vrcp.pop %v3880
      %v3922 = vmul.f32 1.0, %v3921
      %v3923 = vrcp.pop %v3881
      %v3924 = vmul.f32 1.0, %v3923
      %v3925 = vrcp.pop %v3882
      %v3926 = vmul.f32 1.0, %v3925
      %v3927 = vrcp.pop %v3883
      %v3928 = vmul.f32 1.0, %v3927
      %v3929 = vrcp.pop %v3884
      %v3930 = vmul.f32 1.0, %v3929
      %v3931 = vrcp.pop %v3885
      %v3932 = vmul.f32 1.0, %v3931
      %v3933 = vrcp.pop %v3886
      %v3934 = vmul.f32 1.0, %v3933
      %v3935 = vrcp.pop %v3887
      %v3936 = vmul.f32 1.0, %v3935
      %v3937 = vrcp.pop %v3888
      %v3938 = vmul.f32 1.0, %v3937
      %v3939 = vrcp.pop %v3889
      %v3940 = vmul.f32 1.0, %v3939
      %v3941 = vrcp.pop %v3890
      %v3942 = vmul.f32 1.0, %v3941
      %v3943 = vrcp.pop %v3891
      %v3944 = vmul.f32 1.0, %v3943
      %v3945 = vrcp.pop %v3892
      %v3946 = vmul.f32 1.0, %v3945
      %v3947 = vrcp.pop %v3893
      %v3948 = vmul.f32 1.0, %v3947
      %v3949 = vrcp.pop %v3894
      %v3950 = vmul.f32 1.0, %v3949
      %v3951 = vrcp.pop %v3895
      %v3952 = vmul.f32 1.0, %v3951
      %v3953 = vrcp.pop %v3896
      %v3954 = vmul.f32 1.0, %v3953
      %v3955 = vrcp.pop %v3897
      %v3956 = vmul.f32 1.0, %v3955
      %v3957 = vrcp.pop %v3898
      %v3958 = vmul.f32 1.0, %v3957
      %v3959 = vrcp.pop %v3899
      %v3960 = vmul.f32 1.0, %v3959
      %v3961 = vrcp.pop %v3900
      %v3962 = vmul.f32 1.0, %v3961
      %v3963 = vrcp.pop %v3901
      %v3964 = vmul.f32 1.0, %v3963
      %v3965 = vrcp.pop %v3902
      %v3966 = vmul.f32 1.0, %v3965
      %v3967 = vrcp.pop %v3903
      %v3968 = vmul.f32 1.0, %v3967
      %v3969 = vrcp.pop %v3904
      %v3970 = vmul.f32 1.0, %v3969
      %v3971 = vrcp.pop %v3905
      %v3972 = vmul.f32 1.0, %v3971
      %v3973 = vrcp.pop %v3906
      %v3974 = vmul.f32 1.0, %v3973
      %v3975 = vrcp.pop %v3907
      %v3976 = vmul.f32 1.0, %v3975
      %v3977 = vrcp.pop %v3908
      %v3978 = vmul.f32 1.0, %v3977
      %v3979 = vrcp.pop %v3909
      %v3980 = vmul.f32 1.0, %v3979
      %v3981 = vrcp.pop %v3910
      %v3982 = vmul.f32 1.0, %v3981
      %v3983 = vsel %vm3766, %v3912, %v3726
      %v3984 = vsel %vm3766, %v3914, %v3727
      %v3985 = vsel %vm3766, %v3916, %v3728
      %v3986 = vsel %vm3766, %v3918, %v3729
      %v3987 = vsel %vm3766, %v3920, %v3730
      %v3988 = vsel %vm3766, %v3922, %v3731
      %v3989 = vsel %vm3766, %v3924, %v3732
      %v3990 = vsel %vm3766, %v3926, %v3733
      %v3991 = vsel %vm3766, %v3928, %v3734
      %v3992 = vsel %vm3766, %v3930, %v3735
      %v3993 = vsel %vm3766, %v3932, %v3736
      %v3994 = vsel %vm3766, %v3934, %v3737
      %v3995 = vsel %vm3766, %v3936, %v3738
      %v3996 = vsel %vm3766, %v3938, %v3739
      %v3997 = vsel %vm3766, %v3940, %v3740
      %v3998 = vsel %vm3766, %v3942, %v3741
      %v3999 = vsel %vm3766, %v3944, %v3742
      %v4000 = vsel %vm3766, %v3946, %v3743
      %v4001 = vsel %vm3766, %v3948, %v3744
      %v4002 = vsel %vm3766, %v3950, %v3745
      %v4003 = vsel %vm3766, %v3952, %v3746
      %v4004 = vsel %vm3766, %v3954, %v3747
      %v4005 = vsel %vm3766, %v3956, %v3748
      %v4006 = vsel %vm3766, %v3958, %v3749
      %v4007 = vsel %vm3766, %v3960, %v3750
      %v4008 = vsel %vm3766, %v3962, %v3751
      %v4009 = vsel %vm3766, %v3964, %v3752
      %v4010 = vsel %vm3766, %v3966, %v3753
      %v4011 = vsel %vm3766, %v3968, %v3754
      %v4012 = vsel %vm3766, %v3970, %v3755
      %v4013 = vsel %vm3766, %v3972, %v3756
      %v4014 = vsel %vm3766, %v3974, %v3757
      %v4015 = vsel %vm3766, %v3976, %v3758
      %v4016 = vsel %vm3766, %v3978, %v3759
      %v4017 = vsel %vm3766, %v3980, %v3760
      %v4018 = vsel %vm3766, %v3982, %v3761
      %4019 = vst [vmem:[%s170] sm:$0xff] %v3983
      %4020 = vst [vmem:[%s170 + $0x8] sm:$0xff] %v3984
      %4021 = vst [vmem:[%s170 + $0x10] sm:$0xff] %v3985
      %4022 = vst [vmem:[%s170 + $0x18] sm:$0xff] %v3986
      %4023 = vst [vmem:[%s170 + $0x20] sm:$0xff] %v3987
      %4024 = vst [vmem:[%s170 + $0x28] sm:$0xff] %v3988
      %4025 = vst [vmem:[%s170 + $0x30] sm:$0xff] %v3989
      %4026 = vst [vmem:[%s170 + $0x38] sm:$0xff] %v3990
      %4027 = vst [vmem:[%s170 + $0x40] sm:$0xff] %v3991
      %4028 = vst [vmem:[%s170 + $0x48] sm:$0xff] %v3992
      %4029 = vst [vmem:[%s170 + $0x50] sm:$0xff] %v3993
      %4030 = vst [vmem:[%s170 + $0x58] sm:$0xff] %v3994
      %4031 = vst [vmem:[%s170 + $0x60] sm:$0xff] %v3995
      %4032 = vst [vmem:[%s170 + $0x68] sm:$0xff] %v3996
      %4033 = vst [vmem:[%s170 + $0x70] sm:$0xff] %v3997
      %4034 = vst [vmem:[%s170 + $0x78] sm:$0xff] %v3998
      %4035 = vst [vmem:[%s170 + $0x80] sm:$0xff] %v3999
      %4036 = vst [vmem:[%s170 + $0x88] sm:$0xff] %v4000
      %4037 = vst [vmem:[%s170 + $0x90] sm:$0xff] %v4001
      %4038 = vst [vmem:[%s170 + $0x98] sm:$0xff] %v4002
      %4039 = vst [vmem:[%s170 + $0xa0] sm:$0xff] %v4003
      %4040 = vst [vmem:[%s170 + $0xa8] sm:$0xff] %v4004
      %4041 = vst [vmem:[%s170 + $0xb0] sm:$0xff] %v4005
      %4042 = vst [vmem:[%s170 + $0xb8] sm:$0xff] %v4006
      %4043 = vst [vmem:[%s170 + $0xc0] sm:$0xff] %v4007
      %4044 = vst [vmem:[%s170 + $0xc8] sm:$0xff] %v4008
      %4045 = vst [vmem:[%s170 + $0xd0] sm:$0xff] %v4009
      %4046 = vst [vmem:[%s170 + $0xd8] sm:$0xff] %v4010
      %4047 = vst [vmem:[%s170 + $0xe0] sm:$0xff] %v4011
      %4048 = vst [vmem:[%s170 + $0xe8] sm:$0xff] %v4012
      %4049 = vst [vmem:[%s170 + $0xf0] sm:$0xff] %v4013
      %4050 = vst [vmem:[%s170 + $0xf8] sm:$0xff] %v4014
      %4051 = vst [vmem:[%s170 + $0x100] sm:$0xff] %v4015
      %4052 = vst [vmem:[%s170 + $0x108] sm:$0xff] %v4016
      %4053 = vst [vmem:[%s170 + $0x110] sm:$0xff] %v4017
      %4054 = vst [vmem:[%s170 + $0x118] sm:$0xff] %v4018
      %p4055 = scmp.lt.s32.totalorder %s14, 1
      %s4056 = scalar_select %p4055, %s14, 1
      %s4057 = smul.addr %s4056, 36
      %s4058 = smul.addr %s4057, 8
      %s4059 = scalar_lea.vmem %s3, %s4058
      // Predicated region
      $region33: #{deform_conv_forward.2} parent=31 // pred_check
        %p4060 = pneg %p100
      $region34: #{deform_conv_forward.2} parent=31 // pred_check_branch
        %4062 = sbr.rel (%p4060) target = $region36
      $region35: #{deform_conv_forward.2} parent=31 // pred_region
        _
      $region36: #{deform_conv_forward.2} parent=31 // pred_fallthru
        _
    $region32: #{deform_conv_forward.2} parent=5 // pred_fallthru
      _
    %p4063 = scmp.le.s32.totalorder 2, %s9
    // Predicated region
    $region37: #{deform_conv_forward.2} parent=5 // pred_check
      %p4064 = pneg %p4063
    $region38: #{deform_conv_forward.2} parent=5 // pred_check_branch
      %4066 = sbr.rel (%p4064) target = $region40
    $region39: #{deform_conv_forward.2} parent=5 // pred_region
      %s4067 = ssub.s32 %s9, 2
      // Predicated region
      $region41: #{deform_conv_forward.2} parent=39 // pred_check
        %p4068 = pneg %p106
      $region42: #{deform_conv_forward.2} parent=39 // pred_check_branch
        %4070 = sbr.rel (%p4068) target = $region44
      $region43: #{deform_conv_forward.2} parent=39 // pred_region
        %p4071 = scmp.lt.s32.totalorder %s15, 1
        %s4072 = scalar_select %p4071, %s15, 1
        %s4073 = smul.addr %s4072, 36
        %s4074 = smul.addr %s4073, 8
        %s4075 = scalar_lea.vmem %s3, %s4074
      $region44: #{deform_conv_forward.2} parent=39 // pred_fallthru
        _
    $region40: #{deform_conv_forward.2} parent=5 // pred_fallthru
      _
  $region6: #{deform_conv_forward.2} parent=0 // loop_footer
    %s13 = sadd.s32 1, %s9
  $region7: #{deform_conv_forward.2} parent=0 // loop_footer_branch
    %8 = sbr.rel target = $region3
  $region8: #{deform_conv_forward.2} parent=0 // loop_exit
    _

// kernel: deform_conv_forward.3
$region0: #{deform_conv_forward.3}
  #allocation0 [shape = 'u32[]', space=smem, size = 0x4, offset = 0x4, fixed_abs, tag = 'smem constant byte address 0x4 - core index']
  #allocation1 [shape = 'u32[144,128]{1,0:T(1,128)}', space=vmem, size = 0x12000, scoped, tag = 'internal scratch']
  #allocation2 [shape = 'f32[256,128]{1,0:T(8,128)}', space=vmem, size = 0x20000, scoped, tag = 'scratch operand']
  %s0 = inlined_call_operand.vmem [shape: bf16[512,128], index: 0, kind: input, shape index: {}]
  %s1 = inlined_call_operand.vmem [shape: bf16[128,128], index: 1, kind: input, shape index: {}]
  %s2 = inlined_call_operand.vmem [shape: f32[1,128], index: 2, kind: input, shape index: {}]
  %s3 = inlined_call_operand.vmem [shape: f32[1,128], index: 3, kind: input, shape index: {}]
  %s4 = inlined_call_operand.vmem [shape: f32[512,128], index: 4, kind: output, shape index: {}]
  %s5 = sld [smem:[#allocation0]]
  $region57: #{deform_conv_forward.3} parent=0
    _
  %s7 = ssub.s32 1, %s5
  %s8 = scalar_select 0, %s7, %s5
  loop: start=0, step=1, limit=4
  $region2: #{deform_conv_forward.3} parent=0 // loop_pre_header
    _
  $region3: #{deform_conv_forward.3} parent=0 // loop_header
    %s10 = sphi 0, %s14
    %p11 = scmp.ge.s32.totalorder %s10, 4
    %s17 = sphi 0, %s36
    %s18 = sphi 0, %s32
    %s19 = sphi 0, %s28
    %s20 = sphi 0, %s17
    %s21 = sphi 0, %s18
    %s22 = sphi 0, %s19
    %s23 = sphi 0, %s20
    %s24 = sphi 0, %s21
    %s25 = sphi 0, %s22
    %s41 = sphi 0, %s43
    %s44 = sphi 0, %s41
    %s45 = sphi 0, %s44
    %s61 = sphi 0, %s45
    %s69 = sphi 0, %s71
    %s72 = sphi 0, %s69
    %s73 = sphi 0, %s72
    %s89 = sphi 0, %s73
    %s95 = sphi 0, %s97
    %s98 = sphi 0, %s95
    %s99 = sphi 0, %s98
    %s115 = sphi 0, %s99
    %s121 = sphi 0, %s123
    %s124 = sphi 0, %s121
    %s125 = sphi 0, %s124
    %s141 = sphi 0, %s125
    %s149 = sphi 0, %s151
    %s152 = sphi 0, %s149
    %s153 = sphi 0, %s152
    %s169 = sphi 0, %s153
  $region4: #{deform_conv_forward.3} parent=0 // loop_header_branch
    %13 = sbr.rel (%p11) target = $region8
  $region5: #{deform_conv_forward.3} parent=0 // loop_body
    %s15 = ssub.s32 %s10, 1
    %s16 = ssub.s32 %s10, 2
    %s26 = sadd.s32 1, %s19
    %p27 = scmp.ge.s32.totalorder %s26, 1
    %s28 = scalar_select %p27, 0, %s26
    %s29 = sadd.s32 1, %s18
    %s30 = scalar_select %p27, %s29, %s18
    %p31 = scmp.ge.s32.totalorder %s30, 1
    %s32 = scalar_select %p31, 0, %s30
    %s33 = sadd.s32 1, %s17
    %s34 = scalar_select %p31, %s33, %s17
    %p35 = scmp.ge.s32.totalorder %s34, 2
    %s36 = scalar_select %p35, 0, %s34
    %s37 = ssub.s32 %s17, %s36
    %s38 = ssub.s32 %s19, %s28
    %s39 = sor.u32 %s37, %s38
    %p40 = scmp.eq.s32.totalorder %s39, 0
    %s42 = sadd.s32 %s41, 1
    %s43 = scalar_select %p40, %s41, %s42
    %p46 = pneg %p40
    %p47 = scmp.eq.s32.totalorder %s10, 1
    %p48 = por %p46, %p47
    %p49 = scmp.ne.s32.totalorder %s41, %s44
    %p50 = scmp.eq.s32.totalorder %s10, 0
    %p51 = por %p49, %p50
    %p52 = scmp.ne.s32.totalorder %s41, %s44
    %p53 = scmp.eq.s32.totalorder %s15, 1
    %p54 = por %p52, %p53
    %p55 = scmp.ne.s32.totalorder %s44, %s45
    %p56 = scmp.eq.s32.totalorder %s15, 0
    %p57 = por %p55, %p56
    %p58 = scmp.ne.s32.totalorder %s44, %s45
    %p59 = scmp.eq.s32.totalorder %s16, 1
    %p60 = por %p58, %p59
    %p62 = scmp.ne.s32.totalorder %s45, %s61
    %p63 = scmp.eq.s32.totalorder %s16, 0
    %p64 = por %p62, %p63
    %s65 = ssub.s32 %s19, %s28
    %s66 = ssub.s32 %s18, %s32
    %s67 = sor.u32 %s65, %s66
    %p68 = scmp.eq.s32.totalorder %s67, 0
    %s70 = sadd.s32 %s69, 1
    %s71 = scalar_select %p68, %s69, %s70
    %p74 = pneg %p68
    %p75 = scmp.eq.s32.totalorder %s10, 1
    %p76 = por %p74, %p75
    %p77 = scmp.ne.s32.totalorder %s69, %s72
    %p78 = scmp.eq.s32.totalorder %s10, 0
    %p79 = por %p77, %p78
    %p80 = scmp.ne.s32.totalorder %s69, %s72
    %p81 = scmp.eq.s32.totalorder %s15, 1
    %p82 = por %p80, %p81
    %p83 = scmp.ne.s32.totalorder %s72, %s73
    %p84 = scmp.eq.s32.totalorder %s15, 0
    %p85 = por %p83, %p84
    %p86 = scmp.ne.s32.totalorder %s72, %s73
    %p87 = scmp.eq.s32.totalorder %s16, 1
    %p88 = por %p86, %p87
    %p90 = scmp.ne.s32.totalorder %s73, %s89
    %p91 = scmp.eq.s32.totalorder %s16, 0
    %p92 = por %p90, %p91
    %s93 = ssub.s32 %s18, %s32
    %p94 = scmp.eq.s32.totalorder %s93, 0
    %s96 = sadd.s32 %s95, 1
    %s97 = scalar_select %p94, %s95, %s96
    %p100 = pneg %p94
    %p101 = scmp.eq.s32.totalorder %s10, 1
    %p102 = por %p100, %p101
    %p103 = scmp.ne.s32.totalorder %s95, %s98
    %p104 = scmp.eq.s32.totalorder %s10, 0
    %p105 = por %p103, %p104
    %p106 = scmp.ne.s32.totalorder %s95, %s98
    %p107 = scmp.eq.s32.totalorder %s15, 1
    %p108 = por %p106, %p107
    %p109 = scmp.ne.s32.totalorder %s98, %s99
    %p110 = scmp.eq.s32.totalorder %s15, 0
    %p111 = por %p109, %p110
    %p112 = scmp.ne.s32.totalorder %s98, %s99
    %p113 = scmp.eq.s32.totalorder %s16, 1
    %p114 = por %p112, %p113
    %p116 = scmp.ne.s32.totalorder %s99, %s115
    %p117 = scmp.eq.s32.totalorder %s16, 0
    %p118 = por %p116, %p117
    %s119 = ssub.s32 %s18, %s32
    %p120 = scmp.eq.s32.totalorder %s119, 0
    %s122 = sadd.s32 %s121, 1
    %s123 = scalar_select %p120, %s121, %s122
    %p126 = pneg %p120
    %p127 = scmp.eq.s32.totalorder %s10, 1
    %p128 = por %p126, %p127
    %p129 = scmp.ne.s32.totalorder %s121, %s124
    %p130 = scmp.eq.s32.totalorder %s10, 0
    %p131 = por %p129, %p130
    %p132 = scmp.ne.s32.totalorder %s121, %s124
    %p133 = scmp.eq.s32.totalorder %s15, 1
    %p134 = por %p132, %p133
    %p135 = scmp.ne.s32.totalorder %s124, %s125
    %p136 = scmp.eq.s32.totalorder %s15, 0
    %p137 = por %p135, %p136
    %p138 = scmp.ne.s32.totalorder %s124, %s125
    %p139 = scmp.eq.s32.totalorder %s16, 1
    %p140 = por %p138, %p139
    %p142 = scmp.ne.s32.totalorder %s125, %s141
    %p143 = scmp.eq.s32.totalorder %s16, 0
    %p144 = por %p142, %p143
    %s145 = ssub.s32 %s17, %s36
    %s146 = ssub.s32 %s18, %s32
    %s147 = sor.u32 %s145, %s146
    %p148 = scmp.eq.s32.totalorder %s147, 0
    %s150 = sadd.s32 %s149, 1
    %s151 = scalar_select %p148, %s149, %s150
    %p154 = pneg %p148
    %p155 = scmp.eq.s32.totalorder %s10, 1
    %p156 = por %p154, %p155
    %p157 = scmp.ne.s32.totalorder %s149, %s152
    %p158 = scmp.eq.s32.totalorder %s10, 0
    %p159 = por %p157, %p158
    %p160 = scmp.ne.s32.totalorder %s149, %s152
    %p161 = scmp.eq.s32.totalorder %s15, 1
    %p162 = por %p160, %p161
    %p163 = scmp.ne.s32.totalorder %s152, %s153
    %p164 = scmp.eq.s32.totalorder %s15, 0
    %p165 = por %p163, %p164
    %p166 = scmp.ne.s32.totalorder %s152, %s153
    %p167 = scmp.eq.s32.totalorder %s16, 1
    %p168 = por %p166, %p167
    %p170 = scmp.ne.s32.totalorder %s153, %s169
    %p171 = scmp.eq.s32.totalorder %s16, 0
    %p172 = por %p170, %p171
    %p173 = scmp.le.s32.totalorder 1, %s10
    %p174 = scmp.lt.s32.totalorder %s10, 3
    %p175 = pnand %p173, %p174
    %p176 = pneg %p175
    // Predicated region
    $region9: #{deform_conv_forward.3} parent=5 // pred_check
      _
    $region10: #{deform_conv_forward.3} parent=5 // pred_check_branch
      %178 = sbr.rel (%p175) target = $region12
    $region11: #{deform_conv_forward.3} parent=5 // pred_region
      %s179 = ssub.s32 %s10, 1
      // Predicated region
      $region13: #{deform_conv_forward.3} parent=11 // pred_check
        %p180 = pneg %p85
      $region14: #{deform_conv_forward.3} parent=11 // pred_check_branch
        %182 = sbr.rel (%p180) target = $region16
      $region15: #{deform_conv_forward.3} parent=11 // pred_region
        %s183 = smul.u32 16, %s22
        %p184 = scmp.lt.s32.totalorder %s183, 15
        %s185 = scalar_select %p184, %s183, 15
        %p186 = scmp.lt.s32.totalorder %s21, 0
        %s187 = scalar_select %p186, %s21, 0
        %s188 = sadd.s32 %s187, %s185
        %s189 = smul.addr %s188, 4
        %s190 = scalar_lea.vmem %s1, %s189
        %s191 = smul.u32 16, %s22
      $region16: #{deform_conv_forward.3} parent=11 // pred_fallthru
        _
      // Predicated region
      $region17: #{deform_conv_forward.3} parent=11 // pred_check
        %p192 = pneg %p111
      $region18: #{deform_conv_forward.3} parent=11 // pred_check_branch
        %194 = sbr.rel (%p192) target = $region20
      $region19: #{deform_conv_forward.3} parent=11 // pred_region
        %p195 = scmp.lt.s32.totalorder %s21, 0
        %s196 = scalar_select %p195, %s21, 0
        %s197 = scalar_lea.vmem %s2, %s196
      $region20: #{deform_conv_forward.3} parent=11 // pred_fallthru
        _
      // Predicated region
      $region21: #{deform_conv_forward.3} parent=11 // pred_check
        %p198 = pneg %p137
      $region22: #{deform_conv_forward.3} parent=11 // pred_check_branch
        %200 = sbr.rel (%p198) target = $region24
      $region23: #{deform_conv_forward.3} parent=11 // pred_region
        %p201 = scmp.lt.s32.totalorder %s21, 0
        %s202 = scalar_select %p201, %s21, 0
        %s203 = scalar_lea.vmem %s3, %s202
      $region24: #{deform_conv_forward.3} parent=11 // pred_fallthru
        _
    $region12: #{deform_conv_forward.3} parent=5 // pred_fallthru
      _
    %p204 = scmp.lt.s32.totalorder %s10, 2
    // Predicated region
    $region25: #{deform_conv_forward.3} parent=5 // pred_check
      %p205 = pneg %p204
    $region26: #{deform_conv_forward.3} parent=5 // pred_check_branch
      %207 = sbr.rel (%p205) target = $region28
    $region27: #{deform_conv_forward.3} parent=5 // pred_region
      // Predicated region
      $region29: #{deform_conv_forward.3} parent=27 // pred_check
        %p208 = pneg %p51
      $region30: #{deform_conv_forward.3} parent=27 // pred_check_branch
        %210 = sbr.rel (%p208) target = $region32
      $region31: #{deform_conv_forward.3} parent=27 // pred_region
        %s211 = smul.u32 32, %s17
        %p212 = scmp.lt.s32.totalorder %s211, 63
        %s213 = scalar_select %p212, %s211, 63
        %p214 = scmp.lt.s32.totalorder %s19, 0
        %s215 = scalar_select %p214, %s19, 0
        %s216 = sadd.s32 %s215, %s213
        %s217 = smul.addr %s216, 4
        %s218 = scalar_lea.vmem %s0, %s217
        %s219 = smul.u32 32, %s17
      $region32: #{deform_conv_forward.3} parent=27 // pred_fallthru
        _
    $region28: #{deform_conv_forward.3} parent=5 // pred_fallthru
      _
    %p220 = scmp.le.s32.totalorder 1, %s10
    %p221 = scmp.lt.s32.totalorder %s10, 3
    %p222 = pnand %p220, %p221
    %p223 = pneg %p222
    // Predicated region
    $region33: #{deform_conv_forward.3} parent=5 // pred_check
      _
    $region34: #{deform_conv_forward.3} parent=5 // pred_check_branch
      %225 = sbr.rel (%p222) target = $region36
    $region35: #{deform_conv_forward.3} parent=5 // pred_region
      %s226 = ssub.s32 %s10, 1
      %s227 = smul.u32 32, %s20
      %p228 = scmp.lt.s32.totalorder %s227, 63
      %s229 = scalar_select %p228, %s227, 63
      %p230 = scmp.lt.s32.totalorder %s22, 0
      %s231 = scalar_select %p230, %s22, 0
      %s232 = sadd.s32 %s231, %s229
      %s233 = smul.addr %s232, 4
      %s234 = scalar_lea.vmem %s0, %s233
      %p235 = pneg %p57
      %p236 = pneg %p54
      %s237 = smul.u32 16, %s22
      %p238 = scmp.lt.s32.totalorder %s237, 15
      %s239 = scalar_select %p238, %s237, 15
      %p240 = scmp.lt.s32.totalorder %s21, 0
      %s241 = scalar_select %p240, %s21, 0
      %s242 = sadd.s32 %s241, %s239
      %s243 = smul.addr %s242, 4
      %s244 = scalar_lea.vmem %s1, %s243
      %p245 = pneg %p85
      %p246 = pneg %p82
      %p247 = scmp.lt.s32.totalorder %s21, 0
      %s248 = scalar_select %p247, %s21, 0
      %s249 = scalar_lea.vmem %s2, %s248
      %p250 = pneg %p111
      %p251 = pneg %p108
      %p252 = scmp.lt.s32.totalorder %s21, 0
      %s253 = scalar_select %p252, %s21, 0
      %s254 = scalar_lea.vmem %s3, %s253
      %p255 = pneg %p137
      %p256 = pneg %p134
      %p257 = pneg %p165
      %p258 = pneg %p162
      %s259 = smul.u32 32, %s20
      %p260 = scmp.lt.s32.totalorder %s259, 63
      %s261 = scalar_select %p260, %s259, 63
      %p262 = scmp.lt.s32.totalorder %s21, 0
      %s263 = scalar_select %p262, %s21, 0
      %s264 = sadd.s32 %s263, %s261
      %s265 = smul.addr %s264, 8
      %s266 = scalar_lea.vmem %s4, %s265
      %s267 = smul.u32 32, %s20
      %p268 = scmp.lt.s32.totalorder %s267, 63
      %s269 = scalar_select %p268, %s267, 63
      %p270 = scmp.lt.s32.totalorder %s22, 0
      %s271 = scalar_select %p270, %s22, 0
      %s272 = sadd.s32 %s271, %s269
      %s273 = smul.addr %s272, 4
      %s274 = scalar_lea.vmem %s0, %s273
      %s275 = smul.u32 32, %s20
      %s276 = smul.u32 16, %s22
      %p277 = scmp.lt.s32.totalorder %s276, 15
      %s278 = scalar_select %p277, %s276, 15
      %p279 = scmp.lt.s32.totalorder %s21, 0
      %s280 = scalar_select %p279, %s21, 0
      %s281 = sadd.s32 %s280, %s278
      %s282 = smul.addr %s281, 4
      %s283 = scalar_lea.vmem %s1, %s282
      %s284 = smul.u32 16, %s22
      %p285 = scmp.lt.s32.totalorder %s21, 0
      %s286 = scalar_select %p285, %s21, 0
      %s287 = scalar_lea.vmem %s2, %s286
      %p288 = scmp.lt.s32.totalorder %s21, 0
      %s289 = scalar_select %p288, %s21, 0
      %s290 = scalar_lea.vmem %s3, %s289
      %s291 = smul.u32 32, %s20
      %p292 = scmp.lt.s32.totalorder %s291, 63
      %s293 = scalar_select %p292, %s291, 63
      %p294 = scmp.lt.s32.totalorder %s21, 0
      %s295 = scalar_select %p294, %s21, 0
      %s296 = sadd.s32 %s295, %s293
      %s297 = smul.addr %s296, 8
      %s298 = scalar_lea.vmem %s4, %s297
      %s299 = smul.u32 32, %s20
      %p301 = scmp.eq.s32.totalorder %s22, 0
      // Predicated region
      $region37: #{deform_conv_forward.3} parent=35 // pred_check
        %p302 = pneg %p301
      $region38: #{deform_conv_forward.3} parent=35 // pred_check_branch
        %304 = sbr.rel (%p302) target = $region40
      $region39: #{deform_conv_forward.3} parent=35 // pred_region
        %305 = vst [vmem:[#allocation2] sm:$0xff] 0.0
        %306 = vst [vmem:[#allocation2 + $0x8] sm:$0xff] 0.0
        %307 = vst [vmem:[#allocation2 + $0x10] sm:$0xff] 0.0
        %308 = vst [vmem:[#allocation2 + $0x18] sm:$0xff] 0.0
        %309 = vst [vmem:[#allocation2 + $0x20] sm:$0xff] 0.0
        %310 = vst [vmem:[#allocation2 + $0x28] sm:$0xff] 0.0
        %311 = vst [vmem:[#allocation2 + $0x30] sm:$0xff] 0.0
        %312 = vst [vmem:[#allocation2 + $0x38] sm:$0xff] 0.0
        %313 = vst [vmem:[#allocation2 + $0x40] sm:$0xff] 0.0
        %314 = vst [vmem:[#allocation2 + $0x48] sm:$0xff] 0.0
        %315 = vst [vmem:[#allocation2 + $0x50] sm:$0xff] 0.0
        %316 = vst [vmem:[#allocation2 + $0x58] sm:$0xff] 0.0
        %317 = vst [vmem:[#allocation2 + $0x60] sm:$0xff] 0.0
        %318 = vst [vmem:[#allocation2 + $0x68] sm:$0xff] 0.0
        %319 = vst [vmem:[#allocation2 + $0x70] sm:$0xff] 0.0
        %320 = vst [vmem:[#allocation2 + $0x78] sm:$0xff] 0.0
        %321 = vst [vmem:[#allocation2 + $0x80] sm:$0xff] 0.0
        %322 = vst [vmem:[#allocation2 + $0x88] sm:$0xff] 0.0
        %323 = vst [vmem:[#allocation2 + $0x90] sm:$0xff] 0.0
        %324 = vst [vmem:[#allocation2 + $0x98] sm:$0xff] 0.0
        %325 = vst [vmem:[#allocation2 + $0xa0] sm:$0xff] 0.0
        %326 = vst [vmem:[#allocation2 + $0xa8] sm:$0xff] 0.0
        %327 = vst [vmem:[#allocation2 + $0xb0] sm:$0xff] 0.0
        %328 = vst [vmem:[#allocation2 + $0xb8] sm:$0xff] 0.0
        %329 = vst [vmem:[#allocation2 + $0xc0] sm:$0xff] 0.0
        %330 = vst [vmem:[#allocation2 + $0xc8] sm:$0xff] 0.0
        %331 = vst [vmem:[#allocation2 + $0xd0] sm:$0xff] 0.0
        %332 = vst [vmem:[#allocation2 + $0xd8] sm:$0xff] 0.0
        %333 = vst [vmem:[#allocation2 + $0xe0] sm:$0xff] 0.0
        %334 = vst [vmem:[#allocation2 + $0xe8] sm:$0xff] 0.0
        %335 = vst [vmem:[#allocation2 + $0xf0] sm:$0xff] 0.0
        %336 = vst [vmem:[#allocation2 + $0xf8] sm:$0xff] 0.0
      $region40: #{deform_conv_forward.3} parent=35 // pred_fallthru
        _
      %v337 = vld [vmem:[#allocation2] sm:$0xff]
      %v338 = vld [vmem:[#allocation2 + $0x8] sm:$0xff]
      %v339 = vld [vmem:[#allocation2 + $0x10] sm:$0xff]
      %v340 = vld [vmem:[#allocation2 + $0x18] sm:$0xff]
      %v341 = vld [vmem:[#allocation2 + $0x20] sm:$0xff]
      %v342 = vld [vmem:[#allocation2 + $0x28] sm:$0xff]
      %v343 = vld [vmem:[#allocation2 + $0x30] sm:$0xff]
      %v344 = vld [vmem:[#allocation2 + $0x38] sm:$0xff]
      %v345 = vld [vmem:[#allocation2 + $0x40] sm:$0xff]
      %v346 = vld [vmem:[#allocation2 + $0x48] sm:$0xff]
      %v347 = vld [vmem:[#allocation2 + $0x50] sm:$0xff]
      %v348 = vld [vmem:[#allocation2 + $0x58] sm:$0xff]
      %v349 = vld [vmem:[#allocation2 + $0x60] sm:$0xff]
      %v350 = vld [vmem:[#allocation2 + $0x68] sm:$0xff]
      %v351 = vld [vmem:[#allocation2 + $0x70] sm:$0xff]
      %v352 = vld [vmem:[#allocation2 + $0x78] sm:$0xff]
      %v353 = vld [vmem:[#allocation2 + $0x80] sm:$0xff]
      %v354 = vld [vmem:[#allocation2 + $0x88] sm:$0xff]
      %v355 = vld [vmem:[#allocation2 + $0x90] sm:$0xff]
      %v356 = vld [vmem:[#allocation2 + $0x98] sm:$0xff]
      %v357 = vld [vmem:[#allocation2 + $0xa0] sm:$0xff]
      %v358 = vld [vmem:[#allocation2 + $0xa8] sm:$0xff]
      %v359 = vld [vmem:[#allocation2 + $0xb0] sm:$0xff]
      %v360 = vld [vmem:[#allocation2 + $0xb8] sm:$0xff]
      %v361 = vld [vmem:[#allocation2 + $0xc0] sm:$0xff]
      %v362 = vld [vmem:[#allocation2 + $0xc8] sm:$0xff]
      %v363 = vld [vmem:[#allocation2 + $0xd0] sm:$0xff]
      %v364 = vld [vmem:[#allocation2 + $0xd8] sm:$0xff]
      %v365 = vld [vmem:[#allocation2 + $0xe0] sm:$0xff]
      %v366 = vld [vmem:[#allocation2 + $0xe8] sm:$0xff]
      %v367 = vld [vmem:[#allocation2 + $0xf0] sm:$0xff]
      %v368 = vld [vmem:[#allocation2 + $0xf8] sm:$0xff]
      %v369 = vld [vmem:[%s274] sm:$0xf]
      %v370 = vld [vmem:[%s274 + $0x4] sm:$0xf]
      %v371 = vld [vmem:[%s274 + $0x8] sm:$0xf]
      %v372 = vld [vmem:[%s274 + $0xc] sm:$0xf]
      %v373 = vld [vmem:[%s274 + $0x10] sm:$0xf]
      %v374 = vld [vmem:[%s274 + $0x14] sm:$0xf]
      %v375 = vld [vmem:[%s274 + $0x18] sm:$0xf]
      %v376 = vld [vmem:[%s274 + $0x1c] sm:$0xf]
      %v377 = vld [vmem:[%s274 + $0x20] sm:$0xf]
      %v378 = vld [vmem:[%s274 + $0x24] sm:$0xf]
      %v379 = vld [vmem:[%s274 + $0x28] sm:$0xf]
      %v380 = vld [vmem:[%s274 + $0x2c] sm:$0xf]
      %v381 = vld [vmem:[%s274 + $0x30] sm:$0xf]
      %v382 = vld [vmem:[%s274 + $0x34] sm:$0xf]
      %v383 = vld [vmem:[%s274 + $0x38] sm:$0xf]
      %v384 = vld [vmem:[%s274 + $0x3c] sm:$0xf]
      %v385 = vld [vmem:[%s274 + $0x40] sm:$0xf]
      %v386 = vld [vmem:[%s274 + $0x44] sm:$0xf]
      %v387 = vld [vmem:[%s274 + $0x48] sm:$0xf]
      %v388 = vld [vmem:[%s274 + $0x4c] sm:$0xf]
      %v389 = vld [vmem:[%s274 + $0x50] sm:$0xf]
      %v390 = vld [vmem:[%s274 + $0x54] sm:$0xf]
      %v391 = vld [vmem:[%s274 + $0x58] sm:$0xf]
      %v392 = vld [vmem:[%s274 + $0x5c] sm:$0xf]
      %v393 = vld [vmem:[%s274 + $0x60] sm:$0xf]
      %v394 = vld [vmem:[%s274 + $0x64] sm:$0xf]
      %v395 = vld [vmem:[%s274 + $0x68] sm:$0xf]
      %v396 = vld [vmem:[%s274 + $0x6c] sm:$0xf]
      %v397 = vld [vmem:[%s274 + $0x70] sm:$0xf]
      %v398 = vld [vmem:[%s274 + $0x74] sm:$0xf]
      %v399 = vld [vmem:[%s274 + $0x78] sm:$0xf]
      %v400 = vld [vmem:[%s274 + $0x7c] sm:$0xf]
      %v401 = vld [vmem:[%s283] sm:$0xf]
      %v402 = vld [vmem:[%s283 + $0x4] sm:$0xf]
      %v403 = vld [vmem:[%s283 + $0x8] sm:$0xf]
      %v404 = vld [vmem:[%s283 + $0xc] sm:$0xf]
      %v405 = vld [vmem:[%s283 + $0x10] sm:$0xf]
      %v406 = vld [vmem:[%s283 + $0x14] sm:$0xf]
      %v407 = vld [vmem:[%s283 + $0x18] sm:$0xf]
      %v408 = vld [vmem:[%s283 + $0x1c] sm:$0xf]
      %v409 = vld [vmem:[%s283 + $0x20] sm:$0xf]
      %v410 = vld [vmem:[%s283 + $0x24] sm:$0xf]
      %v411 = vld [vmem:[%s283 + $0x28] sm:$0xf]
      %v412 = vld [vmem:[%s283 + $0x2c] sm:$0xf]
      %v413 = vld [vmem:[%s283 + $0x30] sm:$0xf]
      %v414 = vld [vmem:[%s283 + $0x34] sm:$0xf]
      %v415 = vld [vmem:[%s283 + $0x38] sm:$0xf]
      %v416 = vld [vmem:[%s283 + $0x3c] sm:$0xf]
      %v449 = vunpack.c.l.b16 %v369
      %v450 = vunpack.c.l.b16 %v370
      %v451 = vunpack.c.l.b16 %v371
      %v452 = vunpack.c.l.b16 %v372
      %v453 = vunpack.c.l.b16 %v373
      %v454 = vunpack.c.l.b16 %v374
      %v455 = vunpack.c.l.b16 %v375
      %v456 = vunpack.c.l.b16 %v376
      %v457 = vunpack.c.l.b16 %v377
      %v458 = vunpack.c.l.b16 %v378
      %v459 = vunpack.c.l.b16 %v379
      %v460 = vunpack.c.l.b16 %v380
      %v461 = vunpack.c.l.b16 %v381
      %v462 = vunpack.c.l.b16 %v382
      %v463 = vunpack.c.l.b16 %v383
      %v464 = vunpack.c.l.b16 %v384
      %v465 = vunpack.c.l.b16 %v385
      %v466 = vunpack.c.l.b16 %v386
      %v467 = vunpack.c.l.b16 %v387
      %v468 = vunpack.c.l.b16 %v388
      %v469 = vunpack.c.l.b16 %v389
      %v470 = vunpack.c.l.b16 %v390
      %v471 = vunpack.c.l.b16 %v391
      %v472 = vunpack.c.l.b16 %v392
      %v473 = vunpack.c.l.b16 %v393
      %v474 = vunpack.c.l.b16 %v394
      %v475 = vunpack.c.l.b16 %v395
      %v476 = vunpack.c.l.b16 %v396
      %v477 = vunpack.c.l.b16 %v397
      %v478 = vunpack.c.l.b16 %v398
      %v479 = vunpack.c.l.b16 %v399
      %v480 = vunpack.c.l.b16 %v400
      %v481 = vpack.c.b16 %v450, %v449
      %v482 = vpack.c.b16 %v452, %v451
      %v483 = vpack.c.b16 %v454, %v453
      %v484 = vpack.c.b16 %v456, %v455
      %v485 = vpack.c.b16 %v458, %v457
      %v486 = vpack.c.b16 %v460, %v459
      %v487 = vpack.c.b16 %v462, %v461
      %v488 = vpack.c.b16 %v464, %v463
      %v489 = vpack.c.b16 %v466, %v465
      %v490 = vpack.c.b16 %v468, %v467
      %v491 = vpack.c.b16 %v470, %v469
      %v492 = vpack.c.b16 %v472, %v471
      %v493 = vpack.c.b16 %v474, %v473
      %v494 = vpack.c.b16 %v476, %v475
      %v495 = vpack.c.b16 %v478, %v477
      %v496 = vpack.c.b16 %v480, %v479
      %v529 = vunpack.c.l.b16 %v401
      %v530 = vunpack.c.l.b16 %v402
      %v531 = vunpack.c.l.b16 %v403
      %v532 = vunpack.c.l.b16 %v404
      %v533 = vunpack.c.l.b16 %v405
      %v534 = vunpack.c.l.b16 %v406
      %v535 = vunpack.c.l.b16 %v407
      %v536 = vunpack.c.l.b16 %v408
      %v537 = vunpack.c.l.b16 %v409
      %v538 = vunpack.c.l.b16 %v410
      %v539 = vunpack.c.l.b16 %v411
      %v540 = vunpack.c.l.b16 %v412
      %v541 = vunpack.c.l.b16 %v413
      %v542 = vunpack.c.l.b16 %v414
      %v543 = vunpack.c.l.b16 %v415
      %v544 = vunpack.c.l.b16 %v416
      %v545 = vpack.c.b16 %v530, %v529
      %v546 = vpack.c.b16 %v532, %v531
      %v547 = vpack.c.b16 %v534, %v533
      %v548 = vpack.c.b16 %v536, %v535
      %v549 = vpack.c.b16 %v538, %v537
      %v550 = vpack.c.b16 %v540, %v539
      %v551 = vpack.c.b16 %v542, %v541
      %v552 = vpack.c.b16 %v544, %v543
      %561 = vmatprep.subr.bf16.mxu0 0
      %562 = vmatpush1.bf16.msra.mxu0 %v552
      %563 = vmatprep.subr.bf16.mxu0 0
      %564 = vmatpush1.bf16.msra.mxu0 %v551
      %565 = vmatprep.subr.bf16.mxu0 0
      %566 = vmatpush1.bf16.msra.mxu0 %v550
      %567 = vmatprep.subr.bf16.mxu0 0
      %568 = vmatpush1.bf16.msra.mxu0 %v549
      %569 = vmatprep.subr.bf16.mxu0 0
      %570 = vmatpush1.bf16.msra.mxu0 %v548
      %571 = vmatprep.subr.bf16.mxu0 0
      %572 = vmatpush1.bf16.msra.mxu0 %v547
      %573 = vmatprep.subr.bf16.mxu0 0
      %574 = vmatpush1.bf16.msra.mxu0 %v546
      %575 = vmatprep.subr.bf16.mxu0 0
      %576 = vmatpush1.bf16.msra.mxu0 %v545
      %577 = vmatprep.subr.bf16.mxu0 0
      %578 = vmatpush2.bf16.msra.mxu0 0
      %579 = vmatprep.subr.bf16.mxu0 0
      %580 = vmatpush2.bf16.msra.mxu0 0
      %581 = vmatprep.subr.bf16.mxu0 0
      %582 = vmatpush2.bf16.msra.mxu0 0
      %583 = vmatprep.subr.bf16.mxu0 0
      %584 = vmatpush2.bf16.msra.mxu0 0
      %585 = vmatprep.subr.bf16.mxu0 0
      %586 = vmatpush2.bf16.msra.mxu0 0
      %587 = vmatprep.subr.bf16.mxu0 0
      %588 = vmatpush2.bf16.msra.mxu0 0
      %589 = vmatprep.subr.bf16.mxu0 0
      %590 = vmatpush2.bf16.msra.mxu0 0
      %591 = vmatprep.subr.bf16.mxu0 0
      %592 = vmatpush2.bf16.msra.mxu0 0
      %593 = vmatprep.mubr.bf16.mxu0 0
      %594 = vmatmul.mubr.bf16.gmra.mxu0 %v481
      %v595 = vpop.f32.mrf.mxu0
      %v596 = vadd.f32 0.0, %v595
      %v597 = vpop.f32.mrf.mxu0
      %v598 = vpop.f32.mrf.mxu0
      %v599 = vadd.f32 0.0, %v598
      %v600 = vpop.f32.mrf.mxu0
      %601 = vmatprep.mubr.bf16.mxu0 0
      %602 = vmatmul.mubr.bf16.gmra.mxu0 %v482
      %v603 = vpop.f32.mrf.mxu0
      %v604 = vadd.f32 0.0, %v603
      %v605 = vpop.f32.mrf.mxu0
      %v606 = vpop.f32.mrf.mxu0
      %v607 = vadd.f32 0.0, %v606
      %v608 = vpop.f32.mrf.mxu0
      %609 = vmatprep.mubr.bf16.mxu0 0
      %610 = vmatmul.mubr.bf16.gmra.mxu0 %v483
      %v611 = vpop.f32.mrf.mxu0
      %v612 = vadd.f32 0.0, %v611
      %v613 = vpop.f32.mrf.mxu0
      %v614 = vpop.f32.mrf.mxu0
      %v615 = vadd.f32 0.0, %v614
      %v616 = vpop.f32.mrf.mxu0
      %617 = vmatprep.mubr.bf16.mxu0 0
      %618 = vmatmul.mubr.bf16.gmra.mxu0 %v484
      %v619 = vpop.f32.mrf.mxu0
      %v620 = vadd.f32 0.0, %v619
      %v621 = vpop.f32.mrf.mxu0
      %v622 = vpop.f32.mrf.mxu0
      %v623 = vadd.f32 0.0, %v622
      %v624 = vpop.f32.mrf.mxu0
      %625 = vmatprep.mubr.bf16.mxu0 0
      %626 = vmatmul.mubr.bf16.gmra.mxu0 %v485
      %v627 = vpop.f32.mrf.mxu0
      %v628 = vadd.f32 0.0, %v627
      %v629 = vpop.f32.mrf.mxu0
      %v630 = vpop.f32.mrf.mxu0
      %v631 = vadd.f32 0.0, %v630
      %v632 = vpop.f32.mrf.mxu0
      %633 = vmatprep.mubr.bf16.mxu0 0
      %634 = vmatmul.mubr.bf16.gmra.mxu0 %v486
      %v635 = vpop.f32.mrf.mxu0
      %v636 = vadd.f32 0.0, %v635
      %v637 = vpop.f32.mrf.mxu0
      %v638 = vpop.f32.mrf.mxu0
      %v639 = vadd.f32 0.0, %v638
      %v640 = vpop.f32.mrf.mxu0
      %641 = vmatprep.mubr.bf16.mxu0 0
      %642 = vmatmul.mubr.bf16.gmra.mxu0 %v487
      %v643 = vpop.f32.mrf.mxu0
      %v644 = vadd.f32 0.0, %v643
      %v645 = vpop.f32.mrf.mxu0
      %v646 = vpop.f32.mrf.mxu0
      %v647 = vadd.f32 0.0, %v646
      %v648 = vpop.f32.mrf.mxu0
      %649 = vmatprep.mubr.bf16.mxu0 0
      %650 = vmatmul.mubr.bf16.gmra.mxu0 %v488
      %v651 = vpop.f32.mrf.mxu0
      %v652 = vadd.f32 0.0, %v651
      %v653 = vpop.f32.mrf.mxu0
      %v654 = vpop.f32.mrf.mxu0
      %v655 = vadd.f32 0.0, %v654
      %v656 = vpop.f32.mrf.mxu0
      %657 = vmatprep.mubr.bf16.mxu0 0
      %658 = vmatmul.mubr.bf16.gmra.mxu0 %v489
      %v659 = vpop.f32.mrf.mxu0
      %v660 = vadd.f32 0.0, %v659
      %v661 = vpop.f32.mrf.mxu0
      %v662 = vpop.f32.mrf.mxu0
      %v663 = vadd.f32 0.0, %v662
      %v664 = vpop.f32.mrf.mxu0
      %665 = vmatprep.mubr.bf16.mxu0 0
      %666 = vmatmul.mubr.bf16.gmra.mxu0 %v490
      %v667 = vpop.f32.mrf.mxu0
      %v668 = vadd.f32 0.0, %v667
      %v669 = vpop.f32.mrf.mxu0
      %v670 = vpop.f32.mrf.mxu0
      %v671 = vadd.f32 0.0, %v670
      %v672 = vpop.f32.mrf.mxu0
      %673 = vmatprep.mubr.bf16.mxu0 0
      %674 = vmatmul.mubr.bf16.gmra.mxu0 %v491
      %v675 = vpop.f32.mrf.mxu0
      %v676 = vadd.f32 0.0, %v675
      %v677 = vpop.f32.mrf.mxu0
      %v678 = vpop.f32.mrf.mxu0
      %v679 = vadd.f32 0.0, %v678
      %v680 = vpop.f32.mrf.mxu0
      %681 = vmatprep.mubr.bf16.mxu0 0
      %682 = vmatmul.mubr.bf16.gmra.mxu0 %v492
      %v683 = vpop.f32.mrf.mxu0
      %v684 = vadd.f32 0.0, %v683
      %v685 = vpop.f32.mrf.mxu0
      %v686 = vpop.f32.mrf.mxu0
      %v687 = vadd.f32 0.0, %v686
      %v688 = vpop.f32.mrf.mxu0
      %689 = vmatprep.mubr.bf16.mxu0 0
      %690 = vmatmul.mubr.bf16.gmra.mxu0 %v493
      %v691 = vpop.f32.mrf.mxu0
      %v692 = vadd.f32 0.0, %v691
      %v693 = vpop.f32.mrf.mxu0
      %v694 = vpop.f32.mrf.mxu0
      %v695 = vadd.f32 0.0, %v694
      %v696 = vpop.f32.mrf.mxu0
      %697 = vmatprep.mubr.bf16.mxu0 0
      %698 = vmatmul.mubr.bf16.gmra.mxu0 %v494
      %v699 = vpop.f32.mrf.mxu0
      %v700 = vadd.f32 0.0, %v699
      %v701 = vpop.f32.mrf.mxu0
      %v702 = vpop.f32.mrf.mxu0
      %v703 = vadd.f32 0.0, %v702
      %v704 = vpop.f32.mrf.mxu0
      %705 = vmatprep.mubr.bf16.mxu0 0
      %706 = vmatmul.mubr.bf16.gmra.mxu0 %v495
      %v707 = vpop.f32.mrf.mxu0
      %v708 = vadd.f32 0.0, %v707
      %v709 = vpop.f32.mrf.mxu0
      %v710 = vpop.f32.mrf.mxu0
      %v711 = vadd.f32 0.0, %v710
      %v712 = vpop.f32.mrf.mxu0
      %713 = vmatprep.mubr.bf16.mxu0 0
      %714 = vmatmul.mubr.bf16.gmra.mxu0 %v496
      %v715 = vpop.f32.mrf.mxu0
      %v716 = vadd.f32 0.0, %v715
      %v717 = vpop.f32.mrf.mxu0
      %v718 = vpop.f32.mrf.mxu0
      %v719 = vadd.f32 0.0, %v718
      %v720 = vpop.f32.mrf.mxu0
      %721 = vdwg.mxu0
      %v722 = vadd.f32 %v337, %v596
      %v723 = vadd.f32 %v338, %v599
      %v724 = vadd.f32 %v339, %v604
      %v725 = vadd.f32 %v340, %v607
      %v726 = vadd.f32 %v341, %v612
      %v727 = vadd.f32 %v342, %v615
      %v728 = vadd.f32 %v343, %v620
      %v729 = vadd.f32 %v344, %v623
      %v730 = vadd.f32 %v345, %v628
      %v731 = vadd.f32 %v346, %v631
      %v732 = vadd.f32 %v347, %v636
      %v733 = vadd.f32 %v348, %v639
      %v734 = vadd.f32 %v349, %v644
      %v735 = vadd.f32 %v350, %v647
      %v736 = vadd.f32 %v351, %v652
      %v737 = vadd.f32 %v352, %v655
      %v738 = vadd.f32 %v353, %v660
      %v739 = vadd.f32 %v354, %v663
      %v740 = vadd.f32 %v355, %v668
      %v741 = vadd.f32 %v356, %v671
      %v742 = vadd.f32 %v357, %v676
      %v743 = vadd.f32 %v358, %v679
      %v744 = vadd.f32 %v359, %v684
      %v745 = vadd.f32 %v360, %v687
      %v746 = vadd.f32 %v361, %v692
      %v747 = vadd.f32 %v362, %v695
      %v748 = vadd.f32 %v363, %v700
      %v749 = vadd.f32 %v364, %v703
      %v750 = vadd.f32 %v365, %v708
      %v751 = vadd.f32 %v366, %v711
      %v752 = vadd.f32 %v367, %v716
      %v753 = vadd.f32 %v368, %v719
      %754 = vst [vmem:[#allocation2] sm:$0xff] %v722
      %755 = vst [vmem:[#allocation2 + $0x8] sm:$0xff] %v723
      %756 = vst [vmem:[#allocation2 + $0x10] sm:$0xff] %v724
      %757 = vst [vmem:[#allocation2 + $0x18] sm:$0xff] %v725
      %758 = vst [vmem:[#allocation2 + $0x20] sm:$0xff] %v726
      %759 = vst [vmem:[#allocation2 + $0x28] sm:$0xff] %v727
      %760 = vst [vmem:[#allocation2 + $0x30] sm:$0xff] %v728
      %761 = vst [vmem:[#allocation2 + $0x38] sm:$0xff] %v729
      %762 = vst [vmem:[#allocation2 + $0x40] sm:$0xff] %v730
      %763 = vst [vmem:[#allocation2 + $0x48] sm:$0xff] %v731
      %764 = vst [vmem:[#allocation2 + $0x50] sm:$0xff] %v732
      %765 = vst [vmem:[#allocation2 + $0x58] sm:$0xff] %v733
      %766 = vst [vmem:[#allocation2 + $0x60] sm:$0xff] %v734
      %767 = vst [vmem:[#allocation2 + $0x68] sm:$0xff] %v735
      %768 = vst [vmem:[#allocation2 + $0x70] sm:$0xff] %v736
      %769 = vst [vmem:[#allocation2 + $0x78] sm:$0xff] %v737
      %770 = vst [vmem:[#allocation2 + $0x80] sm:$0xff] %v738
      %771 = vst [vmem:[#allocation2 + $0x88] sm:$0xff] %v739
      %772 = vst [vmem:[#allocation2 + $0x90] sm:$0xff] %v740
      %773 = vst [vmem:[#allocation2 + $0x98] sm:$0xff] %v741
      %774 = vst [vmem:[#allocation2 + $0xa0] sm:$0xff] %v742
      %775 = vst [vmem:[#allocation2 + $0xa8] sm:$0xff] %v743
      %776 = vst [vmem:[#allocation2 + $0xb0] sm:$0xff] %v744
      %777 = vst [vmem:[#allocation2 + $0xb8] sm:$0xff] %v745
      %778 = vst [vmem:[#allocation2 + $0xc0] sm:$0xff] %v746
      %779 = vst [vmem:[#allocation2 + $0xc8] sm:$0xff] %v747
      %780 = vst [vmem:[#allocation2 + $0xd0] sm:$0xff] %v748
      %781 = vst [vmem:[#allocation2 + $0xd8] sm:$0xff] %v749
      %782 = vst [vmem:[#allocation2 + $0xe0] sm:$0xff] %v750
      %783 = vst [vmem:[#allocation2 + $0xe8] sm:$0xff] %v751
      %784 = vst [vmem:[#allocation2 + $0xf0] sm:$0xff] %v752
      %785 = vst [vmem:[#allocation2 + $0xf8] sm:$0xff] %v753
      // Predicated region
      $region41: #{deform_conv_forward.3} parent=35 // pred_check
        %p786 = pneg %p301
      $region42: #{deform_conv_forward.3} parent=35 // pred_check_branch
        %788 = sbr.rel (%p786) target = $region44
      $region43: #{deform_conv_forward.3} parent=35 // pred_region
        %v789 = vld [vmem:[#allocation2] sm:$0xff]
        %v790 = vld [vmem:[#allocation2 + $0x8] sm:$0xff]
        %v791 = vld [vmem:[#allocation2 + $0x10] sm:$0xff]
        %v792 = vld [vmem:[#allocation2 + $0x18] sm:$0xff]
        %v793 = vld [vmem:[#allocation2 + $0x20] sm:$0xff]
        %v794 = vld [vmem:[#allocation2 + $0x28] sm:$0xff]
        %v795 = vld [vmem:[#allocation2 + $0x30] sm:$0xff]
        %v796 = vld [vmem:[#allocation2 + $0x38] sm:$0xff]
        %v797 = vld [vmem:[#allocation2 + $0x40] sm:$0xff]
        %v798 = vld [vmem:[#allocation2 + $0x48] sm:$0xff]
        %v799 = vld [vmem:[#allocation2 + $0x50] sm:$0xff]
        %v800 = vld [vmem:[#allocation2 + $0x58] sm:$0xff]
        %v801 = vld [vmem:[#allocation2 + $0x60] sm:$0xff]
        %v802 = vld [vmem:[#allocation2 + $0x68] sm:$0xff]
        %v803 = vld [vmem:[#allocation2 + $0x70] sm:$0xff]
        %v804 = vld [vmem:[#allocation2 + $0x78] sm:$0xff]
        %v805 = vld [vmem:[#allocation2 + $0x80] sm:$0xff]
        %v806 = vld [vmem:[#allocation2 + $0x88] sm:$0xff]
        %v807 = vld [vmem:[#allocation2 + $0x90] sm:$0xff]
        %v808 = vld [vmem:[#allocation2 + $0x98] sm:$0xff]
        %v809 = vld [vmem:[#allocation2 + $0xa0] sm:$0xff]
        %v810 = vld [vmem:[#allocation2 + $0xa8] sm:$0xff]
        %v811 = vld [vmem:[#allocation2 + $0xb0] sm:$0xff]
        %v812 = vld [vmem:[#allocation2 + $0xb8] sm:$0xff]
        %v813 = vld [vmem:[#allocation2 + $0xc0] sm:$0xff]
        %v814 = vld [vmem:[#allocation2 + $0xc8] sm:$0xff]
        %v815 = vld [vmem:[#allocation2 + $0xd0] sm:$0xff]
        %v816 = vld [vmem:[#allocation2 + $0xd8] sm:$0xff]
        %v817 = vld [vmem:[#allocation2 + $0xe0] sm:$0xff]
        %v818 = vld [vmem:[#allocation2 + $0xe8] sm:$0xff]
        %v819 = vld [vmem:[#allocation2 + $0xf0] sm:$0xff]
        %v820 = vld [vmem:[#allocation2 + $0xf8] sm:$0xff]
        %v821 = vld [vmem:[%s287] sm:$0x1]
        %v823 = vlaneseq
        %v824 = vshrl.u32 %v823, 7
        %v825 = vsub.s32 0, %v824
        %v826 = vrot.slane %v821, %v825
        %v828 = vmul.f32 %v789, %v826
        %v829 = vmul.f32 %v790, %v826
        %v830 = vmul.f32 %v791, %v826
        %v831 = vmul.f32 %v792, %v826
        %v832 = vmul.f32 %v793, %v826
        %v833 = vmul.f32 %v794, %v826
        %v834 = vmul.f32 %v795, %v826
        %v835 = vmul.f32 %v796, %v826
        %v836 = vmul.f32 %v797, %v826
        %v837 = vmul.f32 %v798, %v826
        %v838 = vmul.f32 %v799, %v826
        %v839 = vmul.f32 %v800, %v826
        %v840 = vmul.f32 %v801, %v826
        %v841 = vmul.f32 %v802, %v826
        %v842 = vmul.f32 %v803, %v826
        %v843 = vmul.f32 %v804, %v826
        %v844 = vmul.f32 %v805, %v826
        %v845 = vmul.f32 %v806, %v826
        %v846 = vmul.f32 %v807, %v826
        %v847 = vmul.f32 %v808, %v826
        %v848 = vmul.f32 %v809, %v826
        %v849 = vmul.f32 %v810, %v826
        %v850 = vmul.f32 %v811, %v826
        %v851 = vmul.f32 %v812, %v826
        %v852 = vmul.f32 %v813, %v826
        %v853 = vmul.f32 %v814, %v826
        %v854 = vmul.f32 %v815, %v826
        %v855 = vmul.f32 %v816, %v826
        %v856 = vmul.f32 %v817, %v826
        %v857 = vmul.f32 %v818, %v826
        %v858 = vmul.f32 %v819, %v826
        %v859 = vmul.f32 %v820, %v826
        %v860 = vld [vmem:[%s290] sm:$0x1]
        %v862 = vlaneseq
        %v863 = vshrl.u32 %v862, 7
        %v864 = vsub.s32 0, %v863
        %v865 = vrot.slane %v860, %v864
        %v867 = vadd.f32 %v828, %v865
        %v868 = vadd.f32 %v829, %v865
        %v869 = vadd.f32 %v830, %v865
        %v870 = vadd.f32 %v831, %v865
        %v871 = vadd.f32 %v832, %v865
        %v872 = vadd.f32 %v833, %v865
        %v873 = vadd.f32 %v834, %v865
        %v874 = vadd.f32 %v835, %v865
        %v875 = vadd.f32 %v836, %v865
        %v876 = vadd.f32 %v837, %v865
        %v877 = vadd.f32 %v838, %v865
        %v878 = vadd.f32 %v839, %v865
        %v879 = vadd.f32 %v840, %v865
        %v880 = vadd.f32 %v841, %v865
        %v881 = vadd.f32 %v842, %v865
        %v882 = vadd.f32 %v843, %v865
        %v883 = vadd.f32 %v844, %v865
        %v884 = vadd.f32 %v845, %v865
        %v885 = vadd.f32 %v846, %v865
        %v886 = vadd.f32 %v847, %v865
        %v887 = vadd.f32 %v848, %v865
        %v888 = vadd.f32 %v849, %v865
        %v889 = vadd.f32 %v850, %v865
        %v890 = vadd.f32 %v851, %v865
        %v891 = vadd.f32 %v852, %v865
        %v892 = vadd.f32 %v853, %v865
        %v893 = vadd.f32 %v854, %v865
        %v894 = vadd.f32 %v855, %v865
        %v895 = vadd.f32 %v856, %v865
        %v896 = vadd.f32 %v857, %v865
        %v897 = vadd.f32 %v858, %v865
        %v898 = vadd.f32 %v859, %v865
        %v899 = vmax.f32 %v867, 0.0
        %v900 = vmax.f32 %v868, 0.0
        %v901 = vmax.f32 %v869, 0.0
        %v902 = vmax.f32 %v870, 0.0
        %v903 = vmax.f32 %v871, 0.0
        %v904 = vmax.f32 %v872, 0.0
        %v905 = vmax.f32 %v873, 0.0
        %v906 = vmax.f32 %v874, 0.0
        %v907 = vmax.f32 %v875, 0.0
        %v908 = vmax.f32 %v876, 0.0
        %v909 = vmax.f32 %v877, 0.0
        %v910 = vmax.f32 %v878, 0.0
        %v911 = vmax.f32 %v879, 0.0
        %v912 = vmax.f32 %v880, 0.0
        %v913 = vmax.f32 %v881, 0.0
        %v914 = vmax.f32 %v882, 0.0
        %v915 = vmax.f32 %v883, 0.0
        %v916 = vmax.f32 %v884, 0.0
        %v917 = vmax.f32 %v885, 0.0
        %v918 = vmax.f32 %v886, 0.0
        %v919 = vmax.f32 %v887, 0.0
        %v920 = vmax.f32 %v888, 0.0
        %v921 = vmax.f32 %v889, 0.0
        %v922 = vmax.f32 %v890, 0.0
        %v923 = vmax.f32 %v891, 0.0
        %v924 = vmax.f32 %v892, 0.0
        %v925 = vmax.f32 %v893, 0.0
        %v926 = vmax.f32 %v894, 0.0
        %v927 = vmax.f32 %v895, 0.0
        %v928 = vmax.f32 %v896, 0.0
        %v929 = vmax.f32 %v897, 0.0
        %v930 = vmax.f32 %v898, 0.0
        %931 = vst [vmem:[%s298] sm:$0xff] %v899
        %932 = vst [vmem:[%s298 + $0x8] sm:$0xff] %v900
        %933 = vst [vmem:[%s298 + $0x10] sm:$0xff] %v901
        %934 = vst [vmem:[%s298 + $0x18] sm:$0xff] %v902
        %935 = vst [vmem:[%s298 + $0x20] sm:$0xff] %v903
        %936 = vst [vmem:[%s298 + $0x28] sm:$0xff] %v904
        %937 = vst [vmem:[%s298 + $0x30] sm:$0xff] %v905
        %938 = vst [vmem:[%s298 + $0x38] sm:$0xff] %v906
        %939 = vst [vmem:[%s298 + $0x40] sm:$0xff] %v907
        %940 = vst [vmem:[%s298 + $0x48] sm:$0xff] %v908
        %941 = vst [vmem:[%s298 + $0x50] sm:$0xff] %v909
        %942 = vst [vmem:[%s298 + $0x58] sm:$0xff] %v910
        %943 = vst [vmem:[%s298 + $0x60] sm:$0xff] %v911
        %944 = vst [vmem:[%s298 + $0x68] sm:$0xff] %v912
        %945 = vst [vmem:[%s298 + $0x70] sm:$0xff] %v913
        %946 = vst [vmem:[%s298 + $0x78] sm:$0xff] %v914
        %947 = vst [vmem:[%s298 + $0x80] sm:$0xff] %v915
        %948 = vst [vmem:[%s298 + $0x88] sm:$0xff] %v916
        %949 = vst [vmem:[%s298 + $0x90] sm:$0xff] %v917
        %950 = vst [vmem:[%s298 + $0x98] sm:$0xff] %v918
        %951 = vst [vmem:[%s298 + $0xa0] sm:$0xff] %v919
        %952 = vst [vmem:[%s298 + $0xa8] sm:$0xff] %v920
        %953 = vst [vmem:[%s298 + $0xb0] sm:$0xff] %v921
        %954 = vst [vmem:[%s298 + $0xb8] sm:$0xff] %v922
        %955 = vst [vmem:[%s298 + $0xc0] sm:$0xff] %v923
        %956 = vst [vmem:[%s298 + $0xc8] sm:$0xff] %v924
        %957 = vst [vmem:[%s298 + $0xd0] sm:$0xff] %v925
        %958 = vst [vmem:[%s298 + $0xd8] sm:$0xff] %v926
        %959 = vst [vmem:[%s298 + $0xe0] sm:$0xff] %v927
        %960 = vst [vmem:[%s298 + $0xe8] sm:$0xff] %v928
        %961 = vst [vmem:[%s298 + $0xf0] sm:$0xff] %v929
        %962 = vst [vmem:[%s298 + $0xf8] sm:$0xff] %v930
      $region44: #{deform_conv_forward.3} parent=35 // pred_fallthru
        _
      %s963 = smul.u32 32, %s20
      %p964 = scmp.lt.s32.totalorder %s963, 63
      %s965 = scalar_select %p964, %s963, 63
      %p966 = scmp.lt.s32.totalorder %s21, 0
      %s967 = scalar_select %p966, %s21, 0
      %s968 = sadd.s32 %s967, %s965
      %s969 = smul.addr %s968, 8
      %s970 = scalar_lea.vmem %s4, %s969
      // Predicated region
      $region45: #{deform_conv_forward.3} parent=35 // pred_check
        %p971 = pneg %p162
      $region46: #{deform_conv_forward.3} parent=35 // pred_check_branch
        %973 = sbr.rel (%p971) target = $region48
      $region47: #{deform_conv_forward.3} parent=35 // pred_region
        %s974 = smul.u32 32, %s20
      $region48: #{deform_conv_forward.3} parent=35 // pred_fallthru
        _
    $region36: #{deform_conv_forward.3} parent=5 // pred_fallthru
      _
    %p975 = scmp.le.s32.totalorder 2, %s10
    // Predicated region
    $region49: #{deform_conv_forward.3} parent=5 // pred_check
      %p976 = pneg %p975
    $region50: #{deform_conv_forward.3} parent=5 // pred_check_branch
      %978 = sbr.rel (%p976) target = $region52
    $region51: #{deform_conv_forward.3} parent=5 // pred_region
      %s979 = ssub.s32 %s10, 2
      // Predicated region
      $region53: #{deform_conv_forward.3} parent=51 // pred_check
        %p980 = pneg %p168
      $region54: #{deform_conv_forward.3} parent=51 // pred_check_branch
        %982 = sbr.rel (%p980) target = $region56
      $region55: #{deform_conv_forward.3} parent=51 // pred_region
        %s983 = smul.u32 32, %s23
        %p984 = scmp.lt.s32.totalorder %s983, 63
        %s985 = scalar_select %p984, %s983, 63
        %p986 = scmp.lt.s32.totalorder %s24, 0
        %s987 = scalar_select %p986, %s24, 0
        %s988 = sadd.s32 %s987, %s985
        %s989 = smul.addr %s988, 8
        %s990 = scalar_lea.vmem %s4, %s989
      $region56: #{deform_conv_forward.3} parent=51 // pred_fallthru
        _
    $region52: #{deform_conv_forward.3} parent=5 // pred_fallthru
      _
  $region6: #{deform_conv_forward.3} parent=0 // loop_footer
    %s14 = sadd.s32 1, %s10
  $region7: #{deform_conv_forward.3} parent=0 // loop_footer_branch
    %9 = sbr.rel target = $region3
  $region8: #{deform_conv_forward.3} parent=0 // loop_exit
    _

</llo_original>
